<compile_context>
chip_gen: v7x
topology: tpu7x:2x2x1
jax: 0.10.0
libtpu: 0.0.40
codegen_flags: <defaults>
</compile_context>

<pallas_src>
import functools

import jax
import jax.numpy as jnp
from jax.experimental import pallas as pl
from jax.experimental.pallas import tpu as pltpu


def _round_up(x, m):
    return (x + m - 1) // m * m


def _pick_conv_row_block(H, W, target_m=256):
    """Largest even divisor HB of H with HB * W <= target_m (>= 2)."""
    assert H % 2 == 0, "conv kernels assume even spatial height"
    best = 2
    for d in range(2, H + 1, 2):
        if H % d == 0 and d * W <= target_m:
            best = d
    return best


def _pick_pool_row_block(Ho, Wo, target_m=256):
    """Largest divisor HBo of Ho with (2 * HBo) * Wo <= target_m (>= 1)."""
    best = 1
    for d in range(1, Ho + 1):
        if Ho % d == 0 and 2 * d * Wo <= target_m:
            best = d
    return best


# ---------------------------------------------------------------------------
# 3x3 SAME conv + ReLU (NHWC, bf16 activations), HB output rows per grid step.
# ---------------------------------------------------------------------------
def _conv3x3_relu_kernel(xa_ref, xb_ref, w_ref, b_ref, o_ref,
                         win_ref, acc_ref, *, HB, W):
    # xa_ref: (HB, W+2, Ci)  bf16  (row block of the padded input)
    # xb_ref: (2,  W+2, Ci)  bf16  (2-row halo below the block)
    # w_ref : (9, Ci, Co)    bf16,  b_ref: (1, Co) f32
    # o_ref : (HB, W, Co)    bf16
    Ci = w_ref.shape[1]
    Co = w_ref.shape[2]
    M = HB * W
    # Assemble the (HB + 2)-row halo window in VMEM scratch.
    win_ref[0:HB] = xa_ref[...]
    win_ref[HB:HB + 2] = xb_ref[...]
    acc_ref[...] = jnp.zeros_like(acc_ref)                    # f32 VMEM accumulator
    for dy in range(3):
        band = win_ref[dy:dy + HB, :, :]                      # (HB, W+2, Ci)
        for dx in range(3):
            patch = band[:, dx:dx + W, :].reshape(M, Ci)      # (HB*W, Ci)
            acc_ref[...] += jnp.dot(patch, w_ref[dy * 3 + dx],
                                    preferred_element_type=jnp.float32)
    y = jnp.maximum(acc_ref[...] + b_ref[...], 0.0)
    o_ref[...] = y.reshape(HB, W, w_ref.shape[2]).astype(o_ref.dtype)


def conv3x3_relu(x_nhwc, w9, b):
    N, H, W, Ci = x_nhwc.shape
    Co = w9.shape[-1]
    HB = _pick_conv_row_block(H, W)
    # TODO(synk): per-conv pad costs one extra HBM pass; could be folded in-kernel.
    xp = jnp.pad(x_nhwc, ((0, 0), (1, 1), (1, 1), (0, 0)))
    Wp = W + 2
    return pl.pallas_call(
        functools.partial(_conv3x3_relu_kernel, HB=HB, W=W),
        out_shape=jax.ShapeDtypeStruct((N, H, W, Co), jnp.bfloat16),
        grid=(N, H // HB),
        in_specs=[
            # HB-row block of the padded input (starts at padded row h*HB)
            pl.BlockSpec((None, HB, Wp, Ci), lambda n, h: (n, h, 0, 0)),
            # 2-row halo just below the block (block index in units of 2 rows)
            pl.BlockSpec((None, 2, Wp, Ci),
                         lambda n, h: (n, (h + 1) * (HB // 2), 0, 0)),
            pl.BlockSpec((9, Ci, Co), lambda n, h: (0, 0, 0)),   # resident weights
            pl.BlockSpec((1, Co), lambda n, h: (0, 0)),          # resident bias
        ],
        out_specs=pl.BlockSpec((None, HB, W, Co), lambda n, h: (n, h, 0, 0)),
        scratch_shapes=[
            pltpu.VMEM((HB + 2, Wp, Ci), jnp.bfloat16),          # halo window
            pltpu.VMEM((HB * W, Co), jnp.float32),               # accumulator
        ],
        compiler_params=pltpu.CompilerParams(
            dimension_semantics=("parallel", "parallel"),
            vmem_limit_bytes=32 * 1024 * 1024),
    )(xp, xp, w9, b)


# ---------------------------------------------------------------------------
# 3x3 SAME conv + ReLU + fused 2x2/stride-2 max-pool, HBo pooled rows per step.
# Even / odd output columns are computed as two matmul accumulators, so the
# column pool is a single elementwise max (no strided stores, no extra kernel).
# ---------------------------------------------------------------------------
def _conv3x3_relu_pool_kernel(xa_ref, xb_ref, w_ref, b_ref, o_ref,
                              win_ref, acce_ref, acco_ref, *, HBo, Wo):
    # xa_ref: (HB, Wp/2, 2*Ci) bf16  (padded width split into (even, odd) pairs)
    # xb_ref: (2,  Wp/2, 2*Ci) bf16  halo
    # o_ref : (HBo, Wo, Co)    bf16  pooled output rows
    HB = 2 * HBo
    Ci = w_ref.shape[1]
    Co = w_ref.shape[2]
    M = HB * Wo
    win_ref[0:HB] = xa_ref[...]
    win_ref[HB:HB + 2] = xb_ref[...]
    acce_ref[...] = jnp.zeros_like(acce_ref)
    acco_ref[...] = jnp.zeros_like(acco_ref)
    for dy in range(3):
        xe = win_ref[dy:dy + HB, :, 0:Ci]            # even padded cols 0,2,...,W
        xo = win_ref[dy:dy + HB, :, Ci:2 * Ci]       # odd  padded cols 1,3,...,W+1
        # even output col 2j   uses padded cols (2j,   2j+1, 2j+2)
        lhs_e = (xe[:, 0:Wo, :], xo[:, 0:Wo, :], xe[:, 1:Wo + 1, :])
        # odd  output col 2j+1 uses padded cols (2j+1, 2j+2, 2j+3)
        lhs_o = (xo[:, 0:Wo, :], xe[:, 1:Wo + 1, :], xo[:, 1:Wo + 1, :])
        for dx in range(3):
            w_tap = w_ref[dy * 3 + dx]
            acce_ref[...] += jnp.dot(lhs_e[dx].reshape(M, Ci), w_tap,
                                     preferred_element_type=jnp.float32)
            acco_ref[...] += jnp.dot(lhs_o[dx].reshape(M, Ci), w_tap,
                                     preferred_element_type=jnp.float32)
    bias = b_ref[...]
    ye = jnp.maximum(acce_ref[...] + bias, 0.0)      # even output columns
    yo = jnp.maximum(acco_ref[...] + bias, 0.0)      # odd output columns
    cp = jnp.maximum(ye, yo)                         # 2-wide column pool
    pooled = jnp.max(cp.reshape(HBo, 2, Wo, Co), axis=1)     # 2-tall row pool
    o_ref[...] = pooled.astype(o_ref.dtype)


def conv3x3_relu_maxpool(x_nhwc, w9, b):
    N, H, W, Ci = x_nhwc.shape
    assert H % 2 == 0 and W % 2 == 0, "2x2 max-pool needs even H and W"
    Co = w9.shape[-1]
    Ho, Wo = H // 2, W // 2
    HBo = _pick_pool_row_block(Ho, Wo)
    HB = 2 * HBo
    xp = jnp.pad(x_nhwc, ((0, 0), (1, 1), (1, 1), (0, 0)))
    Wp = W + 2
    # Free reinterpretation: group padded columns into (even, odd) channel pairs.
    xq = xp.reshape(N, H + 2, Wp // 2, 2 * Ci)
    return pl.pallas_call(
        functools.partial(_conv3x3_relu_pool_kernel, HBo=HBo, Wo=Wo),
        out_shape=jax.ShapeDtypeStruct((N, Ho, Wo, Co), jnp.bfloat16),
        grid=(N, Ho // HBo),
        in_specs=[
            pl.BlockSpec((None, HB, Wp // 2, 2 * Ci), lambda n, h: (n, h, 0, 0)),
            pl.BlockSpec((None, 2, Wp // 2, 2 * Ci),
                         lambda n, h: (n, (h + 1) * HBo, 0, 0)),
            pl.BlockSpec((9, Ci, Co), lambda n, h: (0, 0, 0)),
            pl.BlockSpec((1, Co), lambda n, h: (0, 0)),
        ],
        out_specs=pl.BlockSpec((None, HBo, Wo, Co), lambda n, h: (n, h, 0, 0)),
        scratch_shapes=[
            pltpu.VMEM((HB + 2, Wp // 2, 2 * Ci), jnp.bfloat16),  # halo window
            pltpu.VMEM((HB * Wo, Co), jnp.float32),               # even-col acc
            pltpu.VMEM((HB * Wo, Co), jnp.float32),               # odd-col acc
        ],
        compiler_params=pltpu.CompilerParams(
            dimension_semantics=("parallel", "parallel"),
            vmem_limit_bytes=32 * 1024 * 1024),
    )(xq, xq, w9, b)


# ---------------------------------------------------------------------------
# Tiled Linear (+ fused bias / ReLU): out = relu(x @ W + b)
#   Weights stored pre-transposed (K, N) bf16, zero-padded once at init time.
#   Large weight-streaming tiles (tk<=2048, tn<=512 => 2 MB bf16 tile); total
#   double-buffered working set ~6 MB, inside v5e's 16 MiB scoped-VMEM default.
# ---------------------------------------------------------------------------
def _linear_tiling(M, K, N):
    tm = min(128, _round_up(max(M, 1), 8))
    tk = min(2048, _round_up(K, 128))
    tn = min(512, _round_up(N, 128))          # lane-dense output tiles
    return tm, tk, tn, _round_up(M, tm), _round_up(K, tk), _round_up(N, tn)


def _linear_relu_kernel(x_ref, w_ref, b_ref, o_ref, acc_ref, *, apply_relu):
    k = pl.program_id(2)

    @pl.when(k == 0)
    def _():
        acc_ref[...] = jnp.zeros_like(acc_ref)

    acc_ref[...] += jnp.dot(x_ref[...].astype(jnp.bfloat16), w_ref[...],
                            preferred_element_type=jnp.float32)

    @pl.when(k == pl.num_programs(2) - 1)
    def _():
        out = acc_ref[...] + b_ref[...]
        if apply_relu:
            out = jnp.maximum(out, 0.0)
        o_ref[...] = out.astype(o_ref.dtype)


def linear(lin, x, *, relu=True):
    M, K = x.shape
    N = lin["out_dim"]
    assert K == lin["in_dim"]
    tm, tk, tn, Mp, Kp, Np = _linear_tiling(M, K, N)
    assert lin["w"].shape == (Kp, Np)         # weights pre-padded with same tiling
    x_p = x
    if (Mp, Kp) != (M, K):                    # pad activations only
        x_p = jnp.zeros((Mp, Kp), x.dtype).at[:M, :K].set(x)
    out = pl.pallas_call(
        functools.partial(_linear_relu_kernel, apply_relu=relu),
        out_shape=jax.ShapeDtypeStruct((Mp, Np), jnp.float32),
        grid=(Mp // tm, Np // tn, Kp // tk),
        in_specs=[
            pl.BlockSpec((tm, tk), lambda i, j, k: (i, k)),
            pl.BlockSpec((tk, tn), lambda i, j, k: (k, j)),
            pl.BlockSpec((1, tn), lambda i, j, k: (0, j)),
        ],
        out_specs=pl.BlockSpec((tm, tn), lambda i, j, k: (i, j)),
        scratch_shapes=[pltpu.VMEM((tm, tn), jnp.float32)],
        compiler_params=pltpu.CompilerParams(
            dimension_semantics=("parallel", "parallel", "arbitrary"),
            vmem_limit_bytes=32 * 1024 * 1024),
    )(x_p, lin["w"], lin["b"])
    return out[:M, :N]


# ---------------------------------------------------------------------------
# Parameter init (random; pretrained torchvision weights are not available).
# ---------------------------------------------------------------------------
def init_linear_params(key, in_dim, out_dim):
    _, _, _, _, Kp, Np = _linear_tiling(1, in_dim, out_dim)
    kw, kb = jax.random.split(key)
    std = (2.0 / (in_dim + out_dim)) ** 0.5
    w = std * jax.random.normal(kw, (in_dim, out_dim), jnp.float32)
    wp = jnp.zeros((Kp, Np), jnp.bfloat16).at[:in_dim, :out_dim].set(
        w.astype(jnp.bfloat16))
    b = 0.05 * jax.random.normal(kb, (out_dim,), jnp.float32)
    bp = jnp.zeros((1, Np), jnp.float32).at[0, :out_dim].set(b)
    return {"w": wp, "b": bp, "in_dim": in_dim, "out_dim": out_dim}


def init_vgg_params(key, *, in_ch=3, in_hw=64,
                    stage_channels=((16, 32), (32, 64)), hidden_dim=256):
    keys = iter(jax.random.split(key, 64))
    params = {"features": [], "classifier": []}
    ci, hw = in_ch, in_hw
    for stage in stage_channels:
        convs = []
        for co in stage:
            std = (2.0 / (9 * ci)) ** 0.5
            w = std * jax.random.normal(next(keys), (3, 3, ci, co), jnp.float32)
            b = 0.05 * jax.random.normal(next(keys), (co,), jnp.float32)
            convs.append({"w": w.reshape(9, ci, co).astype(jnp.bfloat16),
                          "b": b.reshape(1, co)})
            ci = co
        params["features"].append(convs)
        hw //= 2                                             # max-pool per stage
    flat = hw * hw * ci
    params["classifier"].append(init_linear_params(next(keys), flat, hidden_dim))
    params["classifier"].append(init_linear_params(next(keys), hidden_dim, hidden_dim))
    return params


# ---------------------------------------------------------------------------
# Forward pass (Pallas) and pure-JAX reference.
# ---------------------------------------------------------------------------
def vgg_base_forward(params, x_nchw):
    x = jnp.transpose(x_nchw, (0, 2, 3, 1)).astype(jnp.bfloat16)  # NCHW->NHWC once
    for convs in params["features"]:
        for conv in convs[:-1]:
            x = conv3x3_relu(x, conv["w"], conv["b"])
        last = convs[-1]                      # pool fused into the stage's last conv
        x = conv3x3_relu_maxpool(x, last["w"], last["b"])
    h = x.reshape(x.shape[0], -1)
    # classifier[0..5]: Linear+ReLU+Dropout, Linear+ReLU+Dropout (Dropout = id at eval)
    for lin in params["classifier"]:
        h = linear(lin, h, relu=True)
    return h


def ref_forward(params, x_nchw):
    x = jnp.transpose(x_nchw, (0, 2, 3, 1)).astype(jnp.bfloat16)
    for convs in params["features"]:
        for conv in convs:
            N, H, W, Ci = x.shape
            Co = conv["w"].shape[-1]
            xp = jnp.pad(x, ((0, 0), (1, 1), (1, 1), (0, 0)))
            acc = jnp.zeros((N, H, W, Co), jnp.float32)
            for dy in range(3):
                for dx in range(3):
                    patch = xp[:, dy:dy + H, dx:dx + W, :]
                    acc = acc + jax.lax.dot_general(
                        patch, conv["w"][dy * 3 + dx],
                        dimension_numbers=(((3,), (0,)), ((), ())),
                        preferred_element_type=jnp.float32)
            x = jnp.maximum(acc + conv["b"].reshape(1, 1, 1, Co),
                            0.0).astype(jnp.bfloat16)
        N, H, W, C = x.shape
        x = x.reshape(N, H // 2, 2, W // 2, 2, C).max(axis=(2, 4))
    h = x.reshape(x.shape[0], -1)
    for lin in params["classifier"]:
        K, Nn = lin["in_dim"], lin["out_dim"]
        w = lin["w"][:K, :Nn]
        b = lin["b"][0, :Nn]
        h = jnp.dot(h.astype(jnp.bfloat16), w,
                    preferred_element_type=jnp.float32) + b
        h = jnp.maximum(h, 0.0)
    return h


if __name__ == "__main__":
    key = jax.random.PRNGKey(0)
    k_x, k_p = jax.random.split(key)

    x = jax.random.normal(k_x, (2, 3, 64, 64), jnp.float32)   # small NCHW input
    params = init_vgg_params(k_p, in_ch=3, in_hw=64,
                             stage_channels=((16, 32), (32, 64)), hidden_dim=256)

    out = jax.block_until_ready(vgg_base_forward(params, x))
    ref = jax.block_until_ready(ref_forward(params, x))

    assert out.shape == (2, 256), out.shape
    max_err = float(jnp.max(jnp.abs(out - ref)))
    assert jnp.allclose(out, ref, atol=2e-2, rtol=2e-2), max_err
    print("KERNEL_OK")
</pallas_src>

<mosaic_0001>
module attributes {stable_mosaic.version = 11 : i64} {
  func.func @_conv3x3_relu_kernel(%arg0: i32, %arg1: i32, %arg2: memref<1x4x66x3xbf16, #tpu.memory_space<vmem>>, %arg3: memref<1x2x66x3xbf16, #tpu.memory_space<vmem>>, %arg4: memref<9x3x16xbf16, #tpu.memory_space<vmem>>, %arg5: memref<1x16xf32, #tpu.memory_space<vmem>>, %arg6: memref<1x4x64x16xbf16, #tpu.memory_space<vmem>>, %arg7: memref<6x66x3xbf16, #tpu.memory_space<vmem>>, %arg8: memref<256x16xf32, #tpu.memory_space<vmem>>) attributes {dimension_semantics = [#tpu.dimension_semantics<parallel>, #tpu.dimension_semantics<parallel>], iteration_bounds = array<i64: 2, 16>, scalar_prefetch = 0 : i64, scratch_operands = 2 : i64, tpu.core_type = #tpu.core_type<tc>, window_params = [{transform_indices = @transform_0, window_bounds = array<i64: 1, 4, 66, 3>}, {transform_indices = @transform_1, window_bounds = array<i64: 1, 2, 66, 3>}, {pipeline_mode = #tpu.pipeline_mode<synchronous>, transform_indices = @transform_2, window_bounds = array<i64: 9, 3, 16>}, {pipeline_mode = #tpu.pipeline_mode<synchronous>, transform_indices = @transform_3, window_bounds = array<i64: 1, 16>}, {transform_indices = @transform_4, window_bounds = array<i64: 1, 4, 64, 16>}]} {
    %c0 = arith.constant 0 : index
    %c0_0 = arith.constant 0 : index
    %c0_1 = arith.constant 0 : index
    %c0_2 = arith.constant 0 : index
    %0 = vector.load %arg2[%c0, %c0_0, %c0_1, %c0_2] : memref<1x4x66x3xbf16, #tpu.memory_space<vmem>>, vector<1x4x66x3xbf16>
    %1 = vector.shape_cast %0 : vector<1x4x66x3xbf16> to vector<4x66x3xbf16>
    %c0_3 = arith.constant 0 : index
    %c0_4 = arith.constant 0 : index
    %c0_5 = arith.constant 0 : index
    %2 = vector.load %arg7[%c0_3, %c0_4, %c0_5] : memref<6x66x3xbf16, #tpu.memory_space<vmem>>, vector<4x66x3xbf16>
    tpu.vector_store %arg7[%c0_3, %c0_4, %c0_5], %1 {strides = array<i32>} : memref<6x66x3xbf16, #tpu.memory_space<vmem>>, vector<4x66x3xbf16>,
    %c0_6 = arith.constant 0 : index
    %c0_7 = arith.constant 0 : index
    %c0_8 = arith.constant 0 : index
    %c0_9 = arith.constant 0 : index
    %3 = vector.load %arg3[%c0_6, %c0_7, %c0_8, %c0_9] : memref<1x2x66x3xbf16, #tpu.memory_space<vmem>>, vector<1x2x66x3xbf16>
    %4 = vector.shape_cast %3 : vector<1x2x66x3xbf16> to vector<2x66x3xbf16>
    %c4 = arith.constant 4 : index
    %c0_10 = arith.constant 0 : index
    %c0_11 = arith.constant 0 : index
    %5 = vector.load %arg7[%c4, %c0_10, %c0_11] : memref<6x66x3xbf16, #tpu.memory_space<vmem>>, vector<2x66x3xbf16>
    tpu.vector_store %arg7[%c4, %c0_10, %c0_11], %4 {strides = array<i32>} : memref<6x66x3xbf16, #tpu.memory_space<vmem>>, vector<2x66x3xbf16>,
    %cst = arith.constant 0.000000e+00 : f32
    %6 = vector.broadcast %cst : f32 to vector<256x16xf32>
    %c0_12 = arith.constant 0 : index
    %c0_13 = arith.constant 0 : index
    %7 = vector.load %arg8[%c0_12, %c0_13] : memref<256x16xf32, #tpu.memory_space<vmem>>, vector<256x16xf32>
    tpu.vector_store %arg8[%c0_12, %c0_13], %6 {strides = array<i32>} : memref<256x16xf32, #tpu.memory_space<vmem>>, vector<256x16xf32>,
    %c0_14 = arith.constant 0 : index
    %c0_15 = arith.constant 0 : index
    %c0_16 = arith.constant 0 : index
    %8 = vector.load %arg7[%c0_14, %c0_15, %c0_16] : memref<6x66x3xbf16, #tpu.memory_space<vmem>>, vector<4x66x3xbf16>
    %9 = vector.extract_strided_slice %8 {offsets = [0, 0, 0], sizes = [4, 64, 3], strides = [1, 1, 1]} : vector<4x66x3xbf16> to vector<4x64x3xbf16>
    %10 = vector.shape_cast %9 : vector<4x64x3xbf16> to vector<256x3xbf16>
    %c0_17 = arith.constant 0 : index
    %c0_18 = arith.constant 0 : index
    %11 = vector.load %arg8[%c0_17, %c0_18] : memref<256x16xf32, #tpu.memory_space<vmem>>, vector<256x16xf32>
    %c0_19 = arith.constant 0 : index
    %c0_20 = arith.constant 0 : index
    %c0_21 = arith.constant 0 : index
    %12 = vector.load %arg4[%c0_19, %c0_20, %c0_21] : memref<9x3x16xbf16, #tpu.memory_space<vmem>>, vector<1x3x16xbf16>
    %13 = vector.shape_cast %12 : vector<1x3x16xbf16> to vector<3x16xbf16>
    %cst_22 = arith.constant dense<0.000000e+00> : vector<256x16xf32>
    %14 = tpu.matmul %10, %13, %cst_22 {dimension_numbers = #tpu.dot_dimension_numbers<[1], [0], [0], [1], [0, 0, 1, 1], [], []>} : vector<256x3xbf16>, vector<3x16xbf16>, vector<256x16xf32> -> vector<256x16xf32>
    %15 = arith.addf %11, %14 : vector<256x16xf32>
    %c0_23 = arith.constant 0 : index
    %c0_24 = arith.constant 0 : index
    %16 = vector.load %arg8[%c0_23, %c0_24] : memref<256x16xf32, #tpu.memory_space<vmem>>, vector<256x16xf32>
    tpu.vector_store %arg8[%c0_23, %c0_24], %15 {strides = array<i32>} : memref<256x16xf32, #tpu.memory_space<vmem>>, vector<256x16xf32>,
    %17 = vector.extract_strided_slice %8 {offsets = [0, 1, 0], sizes = [4, 64, 3], strides = [1, 1, 1]} : vector<4x66x3xbf16> to vector<4x64x3xbf16>
    %18 = vector.shape_cast %17 : vector<4x64x3xbf16> to vector<256x3xbf16>
    %c0_25 = arith.constant 0 : index
    %c0_26 = arith.constant 0 : index
    %19 = vector.load %arg8[%c0_25, %c0_26] : memref<256x16xf32, #tpu.memory_space<vmem>>, vector<256x16xf32>
    %c1 = arith.constant 1 : index
    %c0_27 = arith.constant 0 : index
    %c0_28 = arith.constant 0 : index
    %20 = vector.load %arg4[%c1, %c0_27, %c0_28] : memref<9x3x16xbf16, #tpu.memory_space<vmem>>, vector<1x3x16xbf16>
    %21 = vector.shape_cast %20 : vector<1x3x16xbf16> to vector<3x16xbf16>
    %cst_29 = arith.constant dense<0.000000e+00> : vector<256x16xf32>
    %22 = tpu.matmul %18, %21, %cst_29 {dimension_numbers = #tpu.dot_dimension_numbers<[1], [0], [0], [1], [0, 0, 1, 1], [], []>} : vector<256x3xbf16>, vector<3x16xbf16>, vector<256x16xf32> -> vector<256x16xf32>
    %23 = arith.addf %19, %22 : vector<256x16xf32>
    %c0_30 = arith.constant 0 : index
    %c0_31 = arith.constant 0 : index
    %24 = vector.load %arg8[%c0_30, %c0_31] : memref<256x16xf32, #tpu.memory_space<vmem>>, vector<256x16xf32>
    tpu.vector_store %arg8[%c0_30, %c0_31], %23 {strides = array<i32>} : memref<256x16xf32, #tpu.memory_space<vmem>>, vector<256x16xf32>,
    %25 = vector.extract_strided_slice %8 {offsets = [0, 2, 0], sizes = [4, 64, 3], strides = [1, 1, 1]} : vector<4x66x3xbf16> to vector<4x64x3xbf16>
    %26 = vector.shape_cast %25 : vector<4x64x3xbf16> to vector<256x3xbf16>
    %c0_32 = arith.constant 0 : index
    %c0_33 = arith.constant 0 : index
    %27 = vector.load %arg8[%c0_32, %c0_33] : memref<256x16xf32, #tpu.memory_space<vmem>>, vector<256x16xf32>
    %c2 = arith.constant 2 : index
    %c0_34 = arith.constant 0 : index
    %c0_35 = arith.constant 0 : index
    %28 = vector.load %arg4[%c2, %c0_34, %c0_35] : memref<9x3x16xbf16, #tpu.memory_space<vmem>>, vector<1x3x16xbf16>
    %29 = vector.shape_cast %28 : vector<1x3x16xbf16> to vector<3x16xbf16>
    %cst_36 = arith.constant dense<0.000000e+00> : vector<256x16xf32>
    %30 = tpu.matmul %26, %29, %cst_36 {dimension_numbers = #tpu.dot_dimension_numbers<[1], [0], [0], [1], [0, 0, 1, 1], [], []>} : vector<256x3xbf16>, vector<3x16xbf16>, vector<256x16xf32> -> vector<256x16xf32>
    %31 = arith.addf %27, %30 : vector<256x16xf32>
    %c0_37 = arith.constant 0 : index
    %c0_38 = arith.constant 0 : index
    %32 = vector.load %arg8[%c0_37, %c0_38] : memref<256x16xf32, #tpu.memory_space<vmem>>, vector<256x16xf32>
    tpu.vector_store %arg8[%c0_37, %c0_38], %31 {strides = array<i32>} : memref<256x16xf32, #tpu.memory_space<vmem>>, vector<256x16xf32>,
    %c1_39 = arith.constant 1 : index
    %c0_40 = arith.constant 0 : index
    %c0_41 = arith.constant 0 : index
    %33 = vector.load %arg7[%c1_39, %c0_40, %c0_41] : memref<6x66x3xbf16, #tpu.memory_space<vmem>>, vector<4x66x3xbf16>
    %34 = vector.extract_strided_slice %33 {offsets = [0, 0, 0], sizes = [4, 64, 3], strides = [1, 1, 1]} : vector<4x66x3xbf16> to vector<4x64x3xbf16>
    %35 = vector.shape_cast %34 : vector<4x64x3xbf16> to vector<256x3xbf16>
    %c0_42 = arith.constant 0 : index
    %c0_43 = arith.constant 0 : index
    %36 = vector.load %arg8[%c0_42, %c0_43] : memref<256x16xf32, #tpu.memory_space<vmem>>, vector<256x16xf32>
    %c3 = arith.constant 3 : index
    %c0_44 = arith.constant 0 : index
    %c0_45 = arith.constant 0 : index
    %37 = vector.load %arg4[%c3, %c0_44, %c0_45] : memref<9x3x16xbf16, #tpu.memory_space<vmem>>, vector<1x3x16xbf16>
    %38 = vector.shape_cast %37 : vector<1x3x16xbf16> to vector<3x16xbf16>
    %cst_46 = arith.constant dense<0.000000e+00> : vector<256x16xf32>
    %39 = tpu.matmul %35, %38, %cst_46 {dimension_numbers = #tpu.dot_dimension_numbers<[1], [0], [0], [1], [0, 0, 1, 1], [], []>} : vector<256x3xbf16>, vector<3x16xbf16>, vector<256x16xf32> -> vector<256x16xf32>
    %40 = arith.addf %36, %39 : vector<256x16xf32>
    %c0_47 = arith.constant 0 : index
    %c0_48 = arith.constant 0 : index
    %41 = vector.load %arg8[%c0_47, %c0_48] : memref<256x16xf32, #tpu.memory_space<vmem>>, vector<256x16xf32>
    tpu.vector_store %arg8[%c0_47, %c0_48], %40 {strides = array<i32>} : memref<256x16xf32, #tpu.memory_space<vmem>>, vector<256x16xf32>,
    %42 = vector.extract_strided_slice %33 {offsets = [0, 1, 0], sizes = [4, 64, 3], strides = [1, 1, 1]} : vector<4x66x3xbf16> to vector<4x64x3xbf16>
    %43 = vector.shape_cast %42 : vector<4x64x3xbf16> to vector<256x3xbf16>
    %c0_49 = arith.constant 0 : index
    %c0_50 = arith.constant 0 : index
    %44 = vector.load %arg8[%c0_49, %c0_50] : memref<256x16xf32, #tpu.memory_space<vmem>>, vector<256x16xf32>
    %c4_51 = arith.constant 4 : index
    %c0_52 = arith.constant 0 : index
    %c0_53 = arith.constant 0 : index
    %45 = vector.load %arg4[%c4_51, %c0_52, %c0_53] : memref<9x3x16xbf16, #tpu.memory_space<vmem>>, vector<1x3x16xbf16>
    %46 = vector.shape_cast %45 : vector<1x3x16xbf16> to vector<3x16xbf16>
    %cst_54 = arith.constant dense<0.000000e+00> : vector<256x16xf32>
    %47 = tpu.matmul %43, %46, %cst_54 {dimension_numbers = #tpu.dot_dimension_numbers<[1], [0], [0], [1], [0, 0, 1, 1], [], []>} : vector<256x3xbf16>, vector<3x16xbf16>, vector<256x16xf32> -> vector<256x16xf32>
    %48 = arith.addf %44, %47 : vector<256x16xf32>
    %c0_55 = arith.constant 0 : index
    %c0_56 = arith.constant 0 : index
    %49 = vector.load %arg8[%c0_55, %c0_56] : memref<256x16xf32, #tpu.memory_space<vmem>>, vector<256x16xf32>
    tpu.vector_store %arg8[%c0_55, %c0_56], %48 {strides = array<i32>} : memref<256x16xf32, #tpu.memory_space<vmem>>, vector<256x16xf32>,
    %50 = vector.extract_strided_slice %33 {offsets = [0, 2, 0], sizes = [4, 64, 3], strides = [1, 1, 1]} : vector<4x66x3xbf16> to vector<4x64x3xbf16>
    %51 = vector.shape_cast %50 : vector<4x64x3xbf16> to vector<256x3xbf16>
    %c0_57 = arith.constant 0 : index
    %c0_58 = arith.constant 0 : index
    %52 = vector.load %arg8[%c0_57, %c0_58] : memref<256x16xf32, #tpu.memory_space<vmem>>, vector<256x16xf32>
    %c5 = arith.constant 5 : index
    %c0_59 = arith.constant 0 : index
    %c0_60 = arith.constant 0 : index
    %53 = vector.load %arg4[%c5, %c0_59, %c0_60] : memref<9x3x16xbf16, #tpu.memory_space<vmem>>, vector<1x3x16xbf16>
    %54 = vector.shape_cast %53 : vector<1x3x16xbf16> to vector<3x16xbf16>
    %cst_61 = arith.constant dense<0.000000e+00> : vector<256x16xf32>
    %55 = tpu.matmul %51, %54, %cst_61 {dimension_numbers = #tpu.dot_dimension_numbers<[1], [0], [0], [1], [0, 0, 1, 1], [], []>} : vector<256x3xbf16>, vector<3x16xbf16>, vector<256x16xf32> -> vector<256x16xf32>
    %56 = arith.addf %52, %55 : vector<256x16xf32>
    %c0_62 = arith.constant 0 : index
    %c0_63 = arith.constant 0 : index
    %57 = vector.load %arg8[%c0_62, %c0_63] : memref<256x16xf32, #tpu.memory_space<vmem>>, vector<256x16xf32>
    tpu.vector_store %arg8[%c0_62, %c0_63], %56 {strides = array<i32>} : memref<256x16xf32, #tpu.memory_space<vmem>>, vector<256x16xf32>,
    %c2_64 = arith.constant 2 : index
    %c0_65 = arith.constant 0 : index
    %c0_66 = arith.constant 0 : index
    %58 = vector.load %arg7[%c2_64, %c0_65, %c0_66] : memref<6x66x3xbf16, #tpu.memory_space<vmem>>, vector<4x66x3xbf16>
    %59 = vector.extract_strided_slice %58 {offsets = [0, 0, 0], sizes = [4, 64, 3], strides = [1, 1, 1]} : vector<4x66x3xbf16> to vector<4x64x3xbf16>
    %60 = vector.shape_cast %59 : vector<4x64x3xbf16> to vector<256x3xbf16>
    %c0_67 = arith.constant 0 : index
    %c0_68 = arith.constant 0 : index
    %61 = vector.load %arg8[%c0_67, %c0_68] : memref<256x16xf32, #tpu.memory_space<vmem>>, vector<256x16xf32>
    %c6 = arith.constant 6 : index
    %c0_69 = arith.constant 0 : index
    %c0_70 = arith.constant 0 : index
    %62 = vector.load %arg4[%c6, %c0_69, %c0_70] : memref<9x3x16xbf16, #tpu.memory_space<vmem>>, vector<1x3x16xbf16>
    %63 = vector.shape_cast %62 : vector<1x3x16xbf16> to vector<3x16xbf16>
    %cst_71 = arith.constant dense<0.000000e+00> : vector<256x16xf32>
    %64 = tpu.matmul %60, %63, %cst_71 {dimension_numbers = #tpu.dot_dimension_numbers<[1], [0], [0], [1], [0, 0, 1, 1], [], []>} : vector<256x3xbf16>, vector<3x16xbf16>, vector<256x16xf32> -> vector<256x16xf32>
    %65 = arith.addf %61, %64 : vector<256x16xf32>
    %c0_72 = arith.constant 0 : index
    %c0_73 = arith.constant 0 : index
    %66 = vector.load %arg8[%c0_72, %c0_73] : memref<256x16xf32, #tpu.memory_space<vmem>>, vector<256x16xf32>
    tpu.vector_store %arg8[%c0_72, %c0_73], %65 {strides = array<i32>} : memref<256x16xf32, #tpu.memory_space<vmem>>, vector<256x16xf32>,
    %67 = vector.extract_strided_slice %58 {offsets = [0, 1, 0], sizes = [4, 64, 3], strides = [1, 1, 1]} : vector<4x66x3xbf16> to vector<4x64x3xbf16>
    %68 = vector.shape_cast %67 : vector<4x64x3xbf16> to vector<256x3xbf16>
    %c0_74 = arith.constant 0 : index
    %c0_75 = arith.constant 0 : index
    %69 = vector.load %arg8[%c0_74, %c0_75] : memref<256x16xf32, #tpu.memory_space<vmem>>, vector<256x16xf32>
    %c7 = arith.constant 7 : index
    %c0_76 = arith.constant 0 : index
    %c0_77 = arith.constant 0 : index
    %70 = vector.load %arg4[%c7, %c0_76, %c0_77] : memref<9x3x16xbf16, #tpu.memory_space<vmem>>, vector<1x3x16xbf16>
    %71 = vector.shape_cast %70 : vector<1x3x16xbf16> to vector<3x16xbf16>
    %cst_78 = arith.constant dense<0.000000e+00> : vector<256x16xf32>
    %72 = tpu.matmul %68, %71, %cst_78 {dimension_numbers = #tpu.dot_dimension_numbers<[1], [0], [0], [1], [0, 0, 1, 1], [], []>} : vector<256x3xbf16>, vector<3x16xbf16>, vector<256x16xf32> -> vector<256x16xf32>
    %73 = arith.addf %69, %72 : vector<256x16xf32>
    %c0_79 = arith.constant 0 : index
    %c0_80 = arith.constant 0 : index
    %74 = vector.load %arg8[%c0_79, %c0_80] : memref<256x16xf32, #tpu.memory_space<vmem>>, vector<256x16xf32>
    tpu.vector_store %arg8[%c0_79, %c0_80], %73 {strides = array<i32>} : memref<256x16xf32, #tpu.memory_space<vmem>>, vector<256x16xf32>,
    %75 = vector.extract_strided_slice %58 {offsets = [0, 2, 0], sizes = [4, 64, 3], strides = [1, 1, 1]} : vector<4x66x3xbf16> to vector<4x64x3xbf16>
    %76 = vector.shape_cast %75 : vector<4x64x3xbf16> to vector<256x3xbf16>
    %c0_81 = arith.constant 0 : index
    %c0_82 = arith.constant 0 : index
    %77 = vector.load %arg8[%c0_81, %c0_82] : memref<256x16xf32, #tpu.memory_space<vmem>>, vector<256x16xf32>
    %c8 = arith.constant 8 : index
    %c0_83 = arith.constant 0 : index
    %c0_84 = arith.constant 0 : index
    %78 = vector.load %arg4[%c8, %c0_83, %c0_84] : memref<9x3x16xbf16, #tpu.memory_space<vmem>>, vector<1x3x16xbf16>
    %79 = vector.shape_cast %78 : vector<1x3x16xbf16> to vector<3x16xbf16>
    %cst_85 = arith.constant dense<0.000000e+00> : vector<256x16xf32>
    %80 = tpu.matmul %76, %79, %cst_85 {dimension_numbers = #tpu.dot_dimension_numbers<[1], [0], [0], [1], [0, 0, 1, 1], [], []>} : vector<256x3xbf16>, vector<3x16xbf16>, vector<256x16xf32> -> vector<256x16xf32>
    %81 = arith.addf %77, %80 : vector<256x16xf32>
    %c0_86 = arith.constant 0 : index
    %c0_87 = arith.constant 0 : index
    %82 = vector.load %arg8[%c0_86, %c0_87] : memref<256x16xf32, #tpu.memory_space<vmem>>, vector<256x16xf32>
    tpu.vector_store %arg8[%c0_86, %c0_87], %81 {strides = array<i32>} : memref<256x16xf32, #tpu.memory_space<vmem>>, vector<256x16xf32>,
    %c0_88 = arith.constant 0 : index
    %c0_89 = arith.constant 0 : index
    %83 = vector.load %arg8[%c0_88, %c0_89] : memref<256x16xf32, #tpu.memory_space<vmem>>, vector<256x16xf32>
    %c0_90 = arith.constant 0 : index
    %c0_91 = arith.constant 0 : index
    %84 = vector.load %arg5[%c0_90, %c0_91] : memref<1x16xf32, #tpu.memory_space<vmem>>, vector<1x16xf32>
    %85 = vector.broadcast %84 : vector<1x16xf32> to vector<256x16xf32>
    %86 = arith.addf %83, %85 : vector<256x16xf32>
    %cst_92 = arith.constant 0.000000e+00 : f32
    %87 = vector.broadcast %cst_92 : f32 to vector<256x16xf32>
    %88 = arith.maximumf %86, %87 : vector<256x16xf32>
    %89 = vector.shape_cast %88 : vector<256x16xf32> to vector<4x64x16xf32>
    %90 = arith.truncf %89 : vector<4x64x16xf32> to vector<4x64x16xbf16>
    %c0_93 = arith.constant 0 : index
    %c0_94 = arith.constant 0 : index
    %c0_95 = arith.constant 0 : index
    %c0_96 = arith.constant 0 : index
    %91 = vector.load %arg6[%c0_93, %c0_94, %c0_95, %c0_96] : memref<1x4x64x16xbf16, #tpu.memory_space<vmem>>, vector<1x4x64x16xbf16>
    %92 = vector.shape_cast %91 : vector<1x4x64x16xbf16> to vector<4x64x16xbf16>
    %93 = vector.shape_cast %90 : vector<4x64x16xbf16> to vector<1x4x64x16xbf16>
    tpu.vector_store %arg6[%c0_93, %c0_94, %c0_95, %c0_96], %93 {strides = array<i32>} : memref<1x4x64x16xbf16, #tpu.memory_space<vmem>>, vector<1x4x64x16xbf16>,
    return
  }
  func.func @transform_0(%arg0: i32, %arg1: i32) -> (i32, i32, i32, i32) {
    %c0_i32 = arith.constant 0 : i32
    %c0_i32_0 = arith.constant 0 : i32
    %c0_i32_1 = arith.constant 0 : i32
    return %arg0, %arg1, %c0_i32, %c0_i32_0 : i32, i32, i32, i32
  }
  func.func @transform_1(%arg0: i32, %arg1: i32) -> (i32, i32, i32, i32) {
    %c1_i32 = arith.constant 1 : i32
    %0 = arith.addi %arg1, %c1_i32 : i32
    %c2_i32 = arith.constant 2 : i32
    %1 = arith.muli %0, %c2_i32 : i32
    %c0_i32 = arith.constant 0 : i32
    %c0_i32_0 = arith.constant 0 : i32
    %c0_i32_1 = arith.constant 0 : i32
    return %arg0, %1, %c0_i32, %c0_i32_0 : i32, i32, i32, i32
  }
  func.func @transform_2(%arg0: i32, %arg1: i32) -> (i32, i32, i32) {
    %c0_i32 = arith.constant 0 : i32
    %c0_i32_0 = arith.constant 0 : i32
    %c0_i32_1 = arith.constant 0 : i32
    %c0_i32_2 = arith.constant 0 : i32
    return %c0_i32, %c0_i32_0, %c0_i32_1 : i32, i32, i32
  }
  func.func @transform_3(%arg0: i32, %arg1: i32) -> (i32, i32) {
    %c0_i32 = arith.constant 0 : i32
    %c0_i32_0 = arith.constant 0 : i32
    %c0_i32_1 = arith.constant 0 : i32
    return %c0_i32, %c0_i32_0 : i32, i32
  }
  func.func @transform_4(%arg0: i32, %arg1: i32) -> (i32, i32, i32, i32) {
    %c0_i32 = arith.constant 0 : i32
    %c0_i32_0 = arith.constant 0 : i32
    %c0_i32_1 = arith.constant 0 : i32
    return %arg0, %arg1, %c0_i32, %c0_i32_0 : i32, i32, i32, i32
  }
}

</mosaic_0001>

<llo_original>
// kernel: tpu_custom_call.1
$region0: #{tpu_custom_call.1}
  #allocation0 [shape = 'u32[]', space=smem, size = 0x4, offset = 0x4, fixed_abs, tag = 'smem constant byte address 0x4 - core index']
  #allocation1 [shape = 'u32[144,128]{1,0:T(1,128)}', space=vmem, size = 0x12000, scoped, tag = 'internal scratch']
  #allocation2 [shape = 'bf16[6,66,3]{2,1,0:T(8,128)(2,1)}', space=vmem, size = 0x1b000, scoped, tag = 'scratch operand']
  #allocation3 [shape = 'f32[256,16]{1,0:T(8,128)}', space=vmem, size = 0x20000, scoped, tag = 'scratch operand']
  %s0 = inlined_call_operand.vmem [shape: bf16[2,66,66,3], index: 0, kind: input, shape index: {}]
  %s1 = inlined_call_operand.vmem [shape: bf16[2,66,66,3], index: 1, kind: input, shape index: {}]
  %s2 = inlined_call_operand.vmem [shape: bf16[9,3,16], index: 2, kind: input, shape index: {}]
  %s3 = inlined_call_operand.vmem [shape: f32[1,16], index: 3, kind: input, shape index: {}]
  %s4 = inlined_call_operand.vmem [shape: bf16[2,64,64,16], index: 4, kind: output, shape index: {}]
  %s5 = sld [smem:[#allocation0]]
  $region49: #{tpu_custom_call.1} parent=0
    _
  %s7 = ssub.s32 1, %s5
  %s8 = scalar_select 0, %s7, %s5
  loop: start=0, step=1, limit=34
  $region2: #{tpu_custom_call.1} parent=0 // loop_pre_header
    _
  $region3: #{tpu_custom_call.1} parent=0 // loop_header
    %s10 = sphi 0, %s14
    %p11 = scmp.ge.s32.totalorder %s10, 34
    %s17 = sphi 0, %s29
    %s18 = sphi 0, %s25
    %s19 = sphi 0, %s17
    %s20 = sphi 0, %s18
    %s21 = sphi 0, %s19
    %s22 = sphi 0, %s20
    %s34 = sphi 0, %s36
    %s37 = sphi 0, %s34
    %s38 = sphi 0, %s37
    %s54 = sphi 0, %s38
    %s66 = sphi 0, %s68
    %s69 = sphi 0, %s66
    %s70 = sphi 0, %s69
    %s86 = sphi 0, %s70
    %s90 = sphi 0, %s90
    %s92 = sphi 0, %s90
    %s93 = sphi 0, %s92
    %s107 = sphi 0, %s93
    %s111 = sphi 0, %s111
    %s113 = sphi 0, %s111
    %s114 = sphi 0, %s113
    %s128 = sphi 0, %s114
    %s136 = sphi 0, %s138
    %s139 = sphi 0, %s136
    %s140 = sphi 0, %s139
    %s156 = sphi 0, %s140
  $region4: #{tpu_custom_call.1} parent=0 // loop_header_branch
    %13 = sbr.rel (%p11) target = $region8
  $region5: #{tpu_custom_call.1} parent=0 // loop_body
    %s15 = ssub.s32 %s10, 1
    %s16 = ssub.s32 %s10, 2
    %s23 = sadd.s32 1, %s18
    %p24 = scmp.ge.s32.totalorder %s23, 16
    %s25 = scalar_select %p24, 0, %s23
    %s26 = sadd.s32 1, %s17
    %s27 = scalar_select %p24, %s26, %s17
    %p28 = scmp.ge.s32.totalorder %s27, 2
    %s29 = scalar_select %p28, 0, %s27
    %s30 = ssub.s32 %s17, %s29
    %s31 = ssub.s32 %s18, %s25
    %s32 = sor.u32 %s30, %s31
    %p33 = scmp.eq.s32.totalorder %s32, 0
    %s35 = sadd.s32 %s34, 1
    %s36 = scalar_select %p33, %s34, %s35
    %p39 = pneg %p33
    %p40 = scmp.eq.s32.totalorder %s10, 31
    %p41 = por %p39, %p40
    %p42 = scmp.ne.s32.totalorder %s34, %s37
    %p43 = scmp.eq.s32.totalorder %s10, 0
    %p44 = por %p42, %p43
    %p45 = scmp.ne.s32.totalorder %s34, %s37
    %p46 = scmp.eq.s32.totalorder %s15, 31
    %p47 = por %p45, %p46
    %p48 = scmp.ne.s32.totalorder %s37, %s38
    %p49 = scmp.eq.s32.totalorder %s15, 0
    %p50 = por %p48, %p49
    %p51 = scmp.ne.s32.totalorder %s37, %s38
    %p52 = scmp.eq.s32.totalorder %s16, 31
    %p53 = por %p51, %p52
    %p55 = scmp.ne.s32.totalorder %s38, %s54
    %p56 = scmp.eq.s32.totalorder %s16, 0
    %p57 = por %p55, %p56
    %s58 = sadd.s32 %s18, 1
    %s59 = smul.u32 %s58, 2
    %s60 = sadd.s32 %s25, 1
    %s61 = smul.u32 %s60, 2
    %s62 = ssub.s32 %s17, %s29
    %s63 = ssub.s32 %s59, %s61
    %s64 = sor.u32 %s62, %s63
    %p65 = scmp.eq.s32.totalorder %s64, 0
    %s67 = sadd.s32 %s66, 1
    %s68 = scalar_select %p65, %s66, %s67
    %p71 = pneg %p65
    %p72 = scmp.eq.s32.totalorder %s10, 31
    %p73 = por %p71, %p72
    %p74 = scmp.ne.s32.totalorder %s66, %s69
    %p75 = scmp.eq.s32.totalorder %s10, 0
    %p76 = por %p74, %p75
    %p77 = scmp.ne.s32.totalorder %s66, %s69
    %p78 = scmp.eq.s32.totalorder %s15, 31
    %p79 = por %p77, %p78
    %p80 = scmp.ne.s32.totalorder %s69, %s70
    %p81 = scmp.eq.s32.totalorder %s15, 0
    %p82 = por %p80, %p81
    %p83 = scmp.ne.s32.totalorder %s69, %s70
    %p84 = scmp.eq.s32.totalorder %s16, 31
    %p85 = por %p83, %p84
    %p87 = scmp.ne.s32.totalorder %s70, %s86
    %p88 = scmp.eq.s32.totalorder %s16, 0
    %p89 = por %p87, %p88
    %s91 = sadd.s32 %s90, 1
    %p94 = scmp.eq.s32.totalorder %s10, 31
    %p95 = scmp.ne.s32.totalorder %s90, %s92
    %p96 = scmp.eq.s32.totalorder %s10, 0
    %p97 = por %p95, %p96
    %p98 = scmp.ne.s32.totalorder %s90, %s92
    %p99 = scmp.eq.s32.totalorder %s15, 31
    %p100 = por %p98, %p99
    %p101 = scmp.ne.s32.totalorder %s92, %s93
    %p102 = scmp.eq.s32.totalorder %s15, 0
    %p103 = por %p101, %p102
    %p104 = scmp.ne.s32.totalorder %s92, %s93
    %p105 = scmp.eq.s32.totalorder %s16, 31
    %p106 = por %p104, %p105
    %p108 = scmp.ne.s32.totalorder %s93, %s107
    %p109 = scmp.eq.s32.totalorder %s16, 0
    %p110 = por %p108, %p109
    %s112 = sadd.s32 %s111, 1
    %p115 = scmp.eq.s32.totalorder %s10, 31
    %p116 = scmp.ne.s32.totalorder %s111, %s113
    %p117 = scmp.eq.s32.totalorder %s10, 0
    %p118 = por %p116, %p117
    %p119 = scmp.ne.s32.totalorder %s111, %s113
    %p120 = scmp.eq.s32.totalorder %s15, 31
    %p121 = por %p119, %p120
    %p122 = scmp.ne.s32.totalorder %s113, %s114
    %p123 = scmp.eq.s32.totalorder %s15, 0
    %p124 = por %p122, %p123
    %p125 = scmp.ne.s32.totalorder %s113, %s114
    %p126 = scmp.eq.s32.totalorder %s16, 31
    %p127 = por %p125, %p126
    %p129 = scmp.ne.s32.totalorder %s114, %s128
    %p130 = scmp.eq.s32.totalorder %s16, 0
    %p131 = por %p129, %p130
    %s132 = ssub.s32 %s17, %s29
    %s133 = ssub.s32 %s18, %s25
    %s134 = sor.u32 %s132, %s133
    %p135 = scmp.eq.s32.totalorder %s134, 0
    %s137 = sadd.s32 %s136, 1
    %s138 = scalar_select %p135, %s136, %s137
    %p141 = pneg %p135
    %p142 = scmp.eq.s32.totalorder %s10, 31
    %p143 = por %p141, %p142
    %p144 = scmp.ne.s32.totalorder %s136, %s139
    %p145 = scmp.eq.s32.totalorder %s10, 0
    %p146 = por %p144, %p145
    %p147 = scmp.ne.s32.totalorder %s136, %s139
    %p148 = scmp.eq.s32.totalorder %s15, 31
    %p149 = por %p147, %p148
    %p150 = scmp.ne.s32.totalorder %s139, %s140
    %p151 = scmp.eq.s32.totalorder %s15, 0
    %p152 = por %p150, %p151
    %p153 = scmp.ne.s32.totalorder %s139, %s140
    %p154 = scmp.eq.s32.totalorder %s16, 31
    %p155 = por %p153, %p154
    %p157 = scmp.ne.s32.totalorder %s140, %s156
    %p158 = scmp.eq.s32.totalorder %s16, 0
    %p159 = por %p157, %p158
    %p160 = scmp.le.s32.totalorder 1, %s10
    %p161 = scmp.lt.s32.totalorder %s10, 33
    %p162 = pnand %p160, %p161
    %p163 = pneg %p162
    // Predicated region
    $region9: #{tpu_custom_call.1} parent=5 // pred_check
      _
    $region10: #{tpu_custom_call.1} parent=5 // pred_check_branch
      %165 = sbr.rel (%p162) target = $region12
    $region11: #{tpu_custom_call.1} parent=5 // pred_region
      %s166 = ssub.s32 %s10, 1
      // Predicated region
      $region13: #{tpu_custom_call.1} parent=11 // pred_check
        %p167 = pneg %p103
      $region14: #{tpu_custom_call.1} parent=11 // pred_check_branch
        %169 = sbr.rel (%p167) target = $region16
      $region15: #{tpu_custom_call.1} parent=11 // pred_region
        _
      $region16: #{tpu_custom_call.1} parent=11 // pred_fallthru
        _
      // Predicated region
      $region17: #{tpu_custom_call.1} parent=11 // pred_check
        %p170 = pneg %p124
      $region18: #{tpu_custom_call.1} parent=11 // pred_check_branch
        %172 = sbr.rel (%p170) target = $region20
      $region19: #{tpu_custom_call.1} parent=11 // pred_region
        _
      $region20: #{tpu_custom_call.1} parent=11 // pred_fallthru
        _
    $region12: #{tpu_custom_call.1} parent=5 // pred_fallthru
      _
    %p173 = scmp.lt.s32.totalorder %s10, 32
    // Predicated region
    $region21: #{tpu_custom_call.1} parent=5 // pred_check
      %p174 = pneg %p173
    $region22: #{tpu_custom_call.1} parent=5 // pred_check_branch
      %176 = sbr.rel (%p174) target = $region24
    $region23: #{tpu_custom_call.1} parent=5 // pred_region
      // Predicated region
      $region25: #{tpu_custom_call.1} parent=23 // pred_check
        %p177 = pneg %p44
      $region26: #{tpu_custom_call.1} parent=23 // pred_check_branch
        %179 = sbr.rel (%p177) target = $region28
      $region27: #{tpu_custom_call.1} parent=23 // pred_region
        %s180 = smul.u32 4, %s18
        %s181 = ssub.s32 66, %s180
        %p182 = scmp.lt.s32.totalorder %s181, 4
        %s183 = scalar_select %p182, %s181, 4
        %s184 = smul.u32 64, %s183
        %s185 = smul.u32 %s184, 9
        %p186 = scmp.lt.s32.totalorder %s17, 1
        %s187 = scalar_select %p186, %s17, 1
        %p188 = scmp.lt.s32.totalorder %s180, 65
        %s189 = scalar_select %p188, %s180, 65
        %s190 = smul.addr %s189, 9
        %s191 = smul.addr %s187, 594
        %s192 = sadd.s32 %s190, %s191
        %s193 = smul.addr %s192, 4
        %s194 = scalar_lea.vmem %s0, %s193
        %s195 = smul.u32 4, %s18
        %s196 = ssub.s32 66, %s195
        %p197 = scmp.lt.s32.totalorder %s196, 4
        %s198 = scalar_select %p197, %s196, 4
        %s199 = smul.u32 64, %s198
        %s200 = smul.u32 %s199, 9
      $region28: #{tpu_custom_call.1} parent=23 // pred_fallthru
        _
      // Predicated region
      $region29: #{tpu_custom_call.1} parent=23 // pred_check
        %p201 = pneg %p76
      $region30: #{tpu_custom_call.1} parent=23 // pred_check_branch
        %203 = sbr.rel (%p201) target = $region32
      $region31: #{tpu_custom_call.1} parent=23 // pred_region
        %s204 = sadd.s32 %s18, 1
        %s205 = smul.u32 %s204, 2
        %s206 = smul.u32 2, %s205
        %p207 = scmp.lt.s32.totalorder %s17, 1
        %s208 = scalar_select %p207, %s17, 1
        %p209 = scmp.lt.s32.totalorder %s206, 65
        %s210 = scalar_select %p209, %s206, 65
        %s211 = smul.addr %s210, 9
        %s212 = smul.addr %s208, 594
        %s213 = sadd.s32 %s211, %s212
        %s214 = smul.addr %s213, 4
        %s215 = scalar_lea.vmem %s1, %s214
        %s216 = sadd.s32 %s18, 1
        %s217 = smul.u32 %s216, 2
        %s218 = smul.u32 2, %s217
      $region32: #{tpu_custom_call.1} parent=23 // pred_fallthru
        _
    $region24: #{tpu_custom_call.1} parent=5 // pred_fallthru
      _
    %p219 = scmp.le.s32.totalorder 1, %s10
    %p220 = scmp.lt.s32.totalorder %s10, 33
    %p221 = pnand %p219, %p220
    %p222 = pneg %p221
    // Predicated region
    $region33: #{tpu_custom_call.1} parent=5 // pred_check
      _
    $region34: #{tpu_custom_call.1} parent=5 // pred_check_branch
      %224 = sbr.rel (%p221) target = $region36
    $region35: #{tpu_custom_call.1} parent=5 // pred_region
      %s225 = ssub.s32 %s10, 1
      %s226 = smul.u32 4, %s20
      %s227 = ssub.s32 66, %s226
      %p228 = scmp.lt.s32.totalorder %s227, 4
      %s229 = scalar_select %p228, %s227, 4
      %s230 = smul.u32 64, %s229
      %s231 = smul.u32 %s230, 9
      %p232 = scmp.lt.s32.totalorder %s19, 1
      %s233 = scalar_select %p232, %s19, 1
      %p234 = scmp.lt.s32.totalorder %s226, 65
      %s235 = scalar_select %p234, %s226, 65
      %s236 = smul.addr %s235, 9
      %s237 = smul.addr %s233, 594
      %s238 = sadd.s32 %s236, %s237
      %s239 = smul.addr %s238, 4
      %s240 = scalar_lea.vmem %s0, %s239
      %p241 = pneg %p50
      %p242 = pneg %p47
      %s243 = sadd.s32 %s20, 1
      %s244 = smul.u32 %s243, 2
      %s245 = smul.u32 2, %s244
      %p246 = scmp.lt.s32.totalorder %s19, 1
      %s247 = scalar_select %p246, %s19, 1
      %p248 = scmp.lt.s32.totalorder %s245, 65
      %s249 = scalar_select %p248, %s245, 65
      %s250 = smul.addr %s249, 9
      %s251 = smul.addr %s247, 594
      %s252 = sadd.s32 %s250, %s251
      %s253 = smul.addr %s252, 4
      %s254 = scalar_lea.vmem %s1, %s253
      %p255 = pneg %p82
      %p256 = pneg %p79
      %p257 = pneg %p103
      %p258 = pneg %p100
      %p259 = pneg %p124
      %p260 = pneg %p121
      %p261 = pneg %p152
      %p262 = pneg %p149
      %s263 = smul.u32 4, %s20
      %p264 = scmp.lt.s32.totalorder %s19, 1
      %s265 = scalar_select %p264, %s19, 1
      %p266 = scmp.lt.s32.totalorder %s263, 63
      %s267 = scalar_select %p266, %s263, 63
      %s268 = smul.addr %s267, 8
      %s269 = smul.addr %s265, 512
      %s270 = sadd.s32 %s268, %s269
      %s271 = smul.addr %s270, 4
      %s272 = scalar_lea.vmem %s4, %s271
      %s273 = smul.u32 4, %s20
      %s274 = ssub.s32 66, %s273
      %p275 = scmp.lt.s32.totalorder %s274, 4
      %s276 = scalar_select %p275, %s274, 4
      %s277 = smul.u32 64, %s276
      %s278 = smul.u32 %s277, 9
      %p279 = scmp.lt.s32.totalorder %s19, 1
      %s280 = scalar_select %p279, %s19, 1
      %p281 = scmp.lt.s32.totalorder %s273, 65
      %s282 = scalar_select %p281, %s273, 65
      %s283 = smul.addr %s282, 9
      %s284 = smul.addr %s280, 594
      %s285 = sadd.s32 %s283, %s284
      %s286 = smul.addr %s285, 4
      %s287 = scalar_lea.vmem %s0, %s286
      %s288 = smul.u32 4, %s20
      %s289 = ssub.s32 66, %s288
      %p290 = scmp.lt.s32.totalorder %s289, 4
      %s291 = scalar_select %p290, %s289, 4
      %s292 = smul.u32 64, %s291
      %s293 = smul.u32 %s292, 9
      %s294 = sadd.s32 %s20, 1
      %s295 = smul.u32 %s294, 2
      %s296 = smul.u32 2, %s295
      %p297 = scmp.lt.s32.totalorder %s19, 1
      %s298 = scalar_select %p297, %s19, 1
      %p299 = scmp.lt.s32.totalorder %s296, 65
      %s300 = scalar_select %p299, %s296, 65
      %s301 = smul.addr %s300, 9
      %s302 = smul.addr %s298, 594
      %s303 = sadd.s32 %s301, %s302
      %s304 = smul.addr %s303, 4
      %s305 = scalar_lea.vmem %s1, %s304
      %s306 = sadd.s32 %s20, 1
      %s307 = smul.u32 %s306, 2
      %s308 = smul.u32 2, %s307
      %s309 = smul.u32 4, %s20
      %p310 = scmp.lt.s32.totalorder %s19, 1
      %s311 = scalar_select %p310, %s19, 1
      %p312 = scmp.lt.s32.totalorder %s309, 63
      %s313 = scalar_select %p312, %s309, 63
      %s314 = smul.addr %s313, 8
      %s315 = smul.addr %s311, 512
      %s316 = sadd.s32 %s314, %s315
      %s317 = smul.addr %s316, 4
      %s318 = scalar_lea.vmem %s4, %s317
      %s319 = smul.u32 4, %s20
      %v321 = vld [vmem:[%s287] sm:$0xf]
      %v322 = vld [vmem:[%s287 + $0x4] sm:$0xf]
      %v323 = vld [vmem:[%s287 + $0x8] sm:$0xf]
      %v324 = vld [vmem:[%s287 + $0xc] sm:$0xf]
      %v325 = vld [vmem:[%s287 + $0x10] sm:$0xf]
      %v326 = vld [vmem:[%s287 + $0x14] sm:$0xf]
      %v327 = vld [vmem:[%s287 + $0x18] sm:$0xf]
      %v328 = vld [vmem:[%s287 + $0x1c] sm:$0xf]
      %v329 = vld [vmem:[%s287 + $0x20] sm:$0x1]
      %v330 = vld [vmem:[%s287 + $0x24] sm:$0xf]
      %v331 = vld [vmem:[%s287 + $0x28] sm:$0xf]
      %v332 = vld [vmem:[%s287 + $0x2c] sm:$0xf]
      %v333 = vld [vmem:[%s287 + $0x30] sm:$0xf]
      %v334 = vld [vmem:[%s287 + $0x34] sm:$0xf]
      %v335 = vld [vmem:[%s287 + $0x38] sm:$0xf]
      %v336 = vld [vmem:[%s287 + $0x3c] sm:$0xf]
      %v337 = vld [vmem:[%s287 + $0x40] sm:$0xf]
      %v338 = vld [vmem:[%s287 + $0x44] sm:$0x1]
      %v339 = vld [vmem:[%s287 + $0x48] sm:$0xf]
      %v340 = vld [vmem:[%s287 + $0x4c] sm:$0xf]
      %v341 = vld [vmem:[%s287 + $0x50] sm:$0xf]
      %v342 = vld [vmem:[%s287 + $0x54] sm:$0xf]
      %v343 = vld [vmem:[%s287 + $0x58] sm:$0xf]
      %v344 = vld [vmem:[%s287 + $0x5c] sm:$0xf]
      %v345 = vld [vmem:[%s287 + $0x60] sm:$0xf]
      %v346 = vld [vmem:[%s287 + $0x64] sm:$0xf]
      %v347 = vld [vmem:[%s287 + $0x68] sm:$0x1]
      %v348 = vld [vmem:[%s287 + $0x6c] sm:$0xf]
      %v349 = vld [vmem:[%s287 + $0x70] sm:$0xf]
      %v350 = vld [vmem:[%s287 + $0x74] sm:$0xf]
      %v351 = vld [vmem:[%s287 + $0x78] sm:$0xf]
      %v352 = vld [vmem:[%s287 + $0x7c] sm:$0xf]
      %v353 = vld [vmem:[%s287 + $0x80] sm:$0xf]
      %v354 = vld [vmem:[%s287 + $0x84] sm:$0xf]
      %v355 = vld [vmem:[%s287 + $0x88] sm:$0xf]
      %v356 = vld [vmem:[%s287 + $0x8c] sm:$0x1]
      %vm357 = vcmask 19456
      %358 = vst.msk [vmem:[#allocation2] sm:$0xf] %vm357, %v321
      %359 = vst.msk [vmem:[#allocation2 + $0x4] sm:$0xf] %vm357, %v322
      %360 = vst.msk [vmem:[#allocation2 + $0x8] sm:$0xf] %vm357, %v323
      %361 = vst.msk [vmem:[#allocation2 + $0xc] sm:$0xf] %vm357, %v324
      %362 = vst.msk [vmem:[#allocation2 + $0x10] sm:$0xf] %vm357, %v325
      %363 = vst.msk [vmem:[#allocation2 + $0x14] sm:$0xf] %vm357, %v326
      %364 = vst.msk [vmem:[#allocation2 + $0x18] sm:$0xf] %vm357, %v327
      %365 = vst.msk [vmem:[#allocation2 + $0x1c] sm:$0xf] %vm357, %v328
      %vm366 = vcmask 16384
      %367 = vst.msk [vmem:[#allocation2 + $0x20] sm:$0x1] %vm366, %v329
      %368 = vst.msk [vmem:[#allocation2 + $0x24] sm:$0xf] %vm357, %v330
      %369 = vst.msk [vmem:[#allocation2 + $0x28] sm:$0xf] %vm357, %v331
      %370 = vst.msk [vmem:[#allocation2 + $0x2c] sm:$0xf] %vm357, %v332
      %371 = vst.msk [vmem:[#allocation2 + $0x30] sm:$0xf] %vm357, %v333
      %372 = vst.msk [vmem:[#allocation2 + $0x34] sm:$0xf] %vm357, %v334
      %373 = vst.msk [vmem:[#allocation2 + $0x38] sm:$0xf] %vm357, %v335
      %374 = vst.msk [vmem:[#allocation2 + $0x3c] sm:$0xf] %vm357, %v336
      %375 = vst.msk [vmem:[#allocation2 + $0x40] sm:$0xf] %vm357, %v337
      %376 = vst.msk [vmem:[#allocation2 + $0x44] sm:$0x1] %vm366, %v338
      %377 = vst.msk [vmem:[#allocation2 + $0x48] sm:$0xf] %vm357, %v339
      %378 = vst.msk [vmem:[#allocation2 + $0x4c] sm:$0xf] %vm357, %v340
      %379 = vst.msk [vmem:[#allocation2 + $0x50] sm:$0xf] %vm357, %v341
      %380 = vst.msk [vmem:[#allocation2 + $0x54] sm:$0xf] %vm357, %v342
      %381 = vst.msk [vmem:[#allocation2 + $0x58] sm:$0xf] %vm357, %v343
      %382 = vst.msk [vmem:[#allocation2 + $0x5c] sm:$0xf] %vm357, %v344
      %383 = vst.msk [vmem:[#allocation2 + $0x60] sm:$0xf] %vm357, %v345
      %384 = vst.msk [vmem:[#allocation2 + $0x64] sm:$0xf] %vm357, %v346
      %385 = vst.msk [vmem:[#allocation2 + $0x68] sm:$0x1] %vm366, %v347
      %386 = vst.msk [vmem:[#allocation2 + $0x6c] sm:$0xf] %vm357, %v348
      %387 = vst.msk [vmem:[#allocation2 + $0x70] sm:$0xf] %vm357, %v349
      %388 = vst.msk [vmem:[#allocation2 + $0x74] sm:$0xf] %vm357, %v350
      %389 = vst.msk [vmem:[#allocation2 + $0x78] sm:$0xf] %vm357, %v351
      %390 = vst.msk [vmem:[#allocation2 + $0x7c] sm:$0xf] %vm357, %v352
      %391 = vst.msk [vmem:[#allocation2 + $0x80] sm:$0xf] %vm357, %v353
      %392 = vst.msk [vmem:[#allocation2 + $0x84] sm:$0xf] %vm357, %v354
      %393 = vst.msk [vmem:[#allocation2 + $0x88] sm:$0xf] %vm357, %v355
      %394 = vst.msk [vmem:[#allocation2 + $0x8c] sm:$0x1] %vm366, %v356
      %v395 = vld [vmem:[%s305] sm:$0xf]
      %v396 = vld [vmem:[%s305 + $0x4] sm:$0xf]
      %v397 = vld [vmem:[%s305 + $0x8] sm:$0xf]
      %v398 = vld [vmem:[%s305 + $0xc] sm:$0xf]
      %v399 = vld [vmem:[%s305 + $0x10] sm:$0xf]
      %v400 = vld [vmem:[%s305 + $0x14] sm:$0xf]
      %v401 = vld [vmem:[%s305 + $0x18] sm:$0xf]
      %v402 = vld [vmem:[%s305 + $0x1c] sm:$0xf]
      %v403 = vld [vmem:[%s305 + $0x20] sm:$0x1]
      %v404 = vld [vmem:[%s305 + $0x24] sm:$0xf]
      %v405 = vld [vmem:[%s305 + $0x28] sm:$0xf]
      %v406 = vld [vmem:[%s305 + $0x2c] sm:$0xf]
      %v407 = vld [vmem:[%s305 + $0x30] sm:$0xf]
      %v408 = vld [vmem:[%s305 + $0x34] sm:$0xf]
      %v409 = vld [vmem:[%s305 + $0x38] sm:$0xf]
      %v410 = vld [vmem:[%s305 + $0x3c] sm:$0xf]
      %v411 = vld [vmem:[%s305 + $0x40] sm:$0xf]
      %v412 = vld [vmem:[%s305 + $0x44] sm:$0x1]
      %s413 = scalar_lea.vmem [#allocation2], 144
      %414 = vst.msk [vmem:[%s413] sm:$0xf] %vm357, %v395
      %415 = vst.msk [vmem:[%s413 + $0x4] sm:$0xf] %vm357, %v396
      %416 = vst.msk [vmem:[%s413 + $0x8] sm:$0xf] %vm357, %v397
      %417 = vst.msk [vmem:[%s413 + $0xc] sm:$0xf] %vm357, %v398
      %418 = vst.msk [vmem:[%s413 + $0x10] sm:$0xf] %vm357, %v399
      %419 = vst.msk [vmem:[%s413 + $0x14] sm:$0xf] %vm357, %v400
      %420 = vst.msk [vmem:[%s413 + $0x18] sm:$0xf] %vm357, %v401
      %421 = vst.msk [vmem:[%s413 + $0x1c] sm:$0xf] %vm357, %v402
      %422 = vst.msk [vmem:[%s413 + $0x20] sm:$0x1] %vm366, %v403
      %423 = vst.msk [vmem:[%s413 + $0x24] sm:$0xf] %vm357, %v404
      %424 = vst.msk [vmem:[%s413 + $0x28] sm:$0xf] %vm357, %v405
      %425 = vst.msk [vmem:[%s413 + $0x2c] sm:$0xf] %vm357, %v406
      %426 = vst.msk [vmem:[%s413 + $0x30] sm:$0xf] %vm357, %v407
      %427 = vst.msk [vmem:[%s413 + $0x34] sm:$0xf] %vm357, %v408
      %428 = vst.msk [vmem:[%s413 + $0x38] sm:$0xf] %vm357, %v409
      %429 = vst.msk [vmem:[%s413 + $0x3c] sm:$0xf] %vm357, %v410
      %430 = vst.msk [vmem:[%s413 + $0x40] sm:$0xf] %vm357, %v411
      %431 = vst.msk [vmem:[%s413 + $0x44] sm:$0x1] %vm366, %v412
      %vm432 = vcmask 130048
      %433 = vst.msk [vmem:[#allocation3] sm:$0xff] %vm432, 0.0
      %434 = vst.msk [vmem:[#allocation3 + $0x8] sm:$0xff] %vm432, 0.0
      %435 = vst.msk [vmem:[#allocation3 + $0x10] sm:$0xff] %vm432, 0.0
      %436 = vst.msk [vmem:[#allocation3 + $0x18] sm:$0xff] %vm432, 0.0
      %437 = vst.msk [vmem:[#allocation3 + $0x20] sm:$0xff] %vm432, 0.0
      %438 = vst.msk [vmem:[#allocation3 + $0x28] sm:$0xff] %vm432, 0.0
      %439 = vst.msk [vmem:[#allocation3 + $0x30] sm:$0xff] %vm432, 0.0
      %440 = vst.msk [vmem:[#allocation3 + $0x38] sm:$0xff] %vm432, 0.0
      %441 = vst.msk [vmem:[#allocation3 + $0x40] sm:$0xff] %vm432, 0.0
      %442 = vst.msk [vmem:[#allocation3 + $0x48] sm:$0xff] %vm432, 0.0
      %443 = vst.msk [vmem:[#allocation3 + $0x50] sm:$0xff] %vm432, 0.0
      %444 = vst.msk [vmem:[#allocation3 + $0x58] sm:$0xff] %vm432, 0.0
      %445 = vst.msk [vmem:[#allocation3 + $0x60] sm:$0xff] %vm432, 0.0
      %446 = vst.msk [vmem:[#allocation3 + $0x68] sm:$0xff] %vm432, 0.0
      %447 = vst.msk [vmem:[#allocation3 + $0x70] sm:$0xff] %vm432, 0.0
      %448 = vst.msk [vmem:[#allocation3 + $0x78] sm:$0xff] %vm432, 0.0
      %449 = vst.msk [vmem:[#allocation3 + $0x80] sm:$0xff] %vm432, 0.0
      %450 = vst.msk [vmem:[#allocation3 + $0x88] sm:$0xff] %vm432, 0.0
      %451 = vst.msk [vmem:[#allocation3 + $0x90] sm:$0xff] %vm432, 0.0
      %452 = vst.msk [vmem:[#allocation3 + $0x98] sm:$0xff] %vm432, 0.0
      %453 = vst.msk [vmem:[#allocation3 + $0xa0] sm:$0xff] %vm432, 0.0
      %454 = vst.msk [vmem:[#allocation3 + $0xa8] sm:$0xff] %vm432, 0.0
      %455 = vst.msk [vmem:[#allocation3 + $0xb0] sm:$0xff] %vm432, 0.0
      %456 = vst.msk [vmem:[#allocation3 + $0xb8] sm:$0xff] %vm432, 0.0
      %457 = vst.msk [vmem:[#allocation3 + $0xc0] sm:$0xff] %vm432, 0.0
      %458 = vst.msk [vmem:[#allocation3 + $0xc8] sm:$0xff] %vm432, 0.0
      %459 = vst.msk [vmem:[#allocation3 + $0xd0] sm:$0xff] %vm432, 0.0
      %460 = vst.msk [vmem:[#allocation3 + $0xd8] sm:$0xff] %vm432, 0.0
      %461 = vst.msk [vmem:[#allocation3 + $0xe0] sm:$0xff] %vm432, 0.0
      %462 = vst.msk [vmem:[#allocation3 + $0xe8] sm:$0xff] %vm432, 0.0
      %463 = vst.msk [vmem:[#allocation3 + $0xf0] sm:$0xff] %vm432, 0.0
      %464 = vst.msk [vmem:[#allocation3 + $0xf8] sm:$0xff] %vm432, 0.0
      %v465 = vld [vmem:[#allocation2] sm:$0xf]
      %v466 = vld [vmem:[#allocation2 + $0x4] sm:$0xf]
      %v467 = vld [vmem:[#allocation2 + $0x8] sm:$0xf]
      %v468 = vld [vmem:[#allocation2 + $0xc] sm:$0xf]
      %v469 = vld [vmem:[#allocation2 + $0x10] sm:$0xf]
      %v470 = vld [vmem:[#allocation2 + $0x14] sm:$0xf]
      %v471 = vld [vmem:[#allocation2 + $0x18] sm:$0xf]
      %v472 = vld [vmem:[#allocation2 + $0x1c] sm:$0xf]
      %v473 = vld [vmem:[#allocation2 + $0x20] sm:$0x1]
      %v474 = vld [vmem:[#allocation2 + $0x24] sm:$0xf]
      %v475 = vld [vmem:[#allocation2 + $0x28] sm:$0xf]
      %v476 = vld [vmem:[#allocation2 + $0x2c] sm:$0xf]
      %v477 = vld [vmem:[#allocation2 + $0x30] sm:$0xf]
      %v478 = vld [vmem:[#allocation2 + $0x34] sm:$0xf]
      %v479 = vld [vmem:[#allocation2 + $0x38] sm:$0xf]
      %v480 = vld [vmem:[#allocation2 + $0x3c] sm:$0xf]
      %v481 = vld [vmem:[#allocation2 + $0x40] sm:$0xf]
      %v482 = vld [vmem:[#allocation2 + $0x44] sm:$0x1]
      %v483 = vld [vmem:[#allocation2 + $0x48] sm:$0xf]
      %v484 = vld [vmem:[#allocation2 + $0x4c] sm:$0xf]
      %v485 = vld [vmem:[#allocation2 + $0x50] sm:$0xf]
      %v486 = vld [vmem:[#allocation2 + $0x54] sm:$0xf]
      %v487 = vld [vmem:[#allocation2 + $0x58] sm:$0xf]
      %v488 = vld [vmem:[#allocation2 + $0x5c] sm:$0xf]
      %v489 = vld [vmem:[#allocation2 + $0x60] sm:$0xf]
      %v490 = vld [vmem:[#allocation2 + $0x64] sm:$0xf]
      %v491 = vld [vmem:[#allocation2 + $0x68] sm:$0x1]
      %v492 = vld [vmem:[#allocation2 + $0x6c] sm:$0xf]
      %v493 = vld [vmem:[#allocation2 + $0x70] sm:$0xf]
      %v494 = vld [vmem:[#allocation2 + $0x74] sm:$0xf]
      %v495 = vld [vmem:[#allocation2 + $0x78] sm:$0xf]
      %v496 = vld [vmem:[#allocation2 + $0x7c] sm:$0xf]
      %v497 = vld [vmem:[#allocation2 + $0x80] sm:$0xf]
      %v498 = vld [vmem:[#allocation2 + $0x84] sm:$0xf]
      %v499 = vld [vmem:[#allocation2 + $0x88] sm:$0xf]
      %v500 = vld [vmem:[#allocation2 + $0x8c] sm:$0x1]
      %v501 = vld [vmem:[#allocation3] sm:$0xff]
      %v502 = vld [vmem:[#allocation3 + $0x8] sm:$0xff]
      %v503 = vld [vmem:[#allocation3 + $0x10] sm:$0xff]
      %v504 = vld [vmem:[#allocation3 + $0x18] sm:$0xff]
      %v505 = vld [vmem:[#allocation3 + $0x20] sm:$0xff]
      %v506 = vld [vmem:[#allocation3 + $0x28] sm:$0xff]
      %v507 = vld [vmem:[#allocation3 + $0x30] sm:$0xff]
      %v508 = vld [vmem:[#allocation3 + $0x38] sm:$0xff]
      %v509 = vld [vmem:[#allocation3 + $0x40] sm:$0xff]
      %v510 = vld [vmem:[#allocation3 + $0x48] sm:$0xff]
      %v511 = vld [vmem:[#allocation3 + $0x50] sm:$0xff]
      %v512 = vld [vmem:[#allocation3 + $0x58] sm:$0xff]
      %v513 = vld [vmem:[#allocation3 + $0x60] sm:$0xff]
      %v514 = vld [vmem:[#allocation3 + $0x68] sm:$0xff]
      %v515 = vld [vmem:[#allocation3 + $0x70] sm:$0xff]
      %v516 = vld [vmem:[#allocation3 + $0x78] sm:$0xff]
      %v517 = vld [vmem:[#allocation3 + $0x80] sm:$0xff]
      %v518 = vld [vmem:[#allocation3 + $0x88] sm:$0xff]
      %v519 = vld [vmem:[#allocation3 + $0x90] sm:$0xff]
      %v520 = vld [vmem:[#allocation3 + $0x98] sm:$0xff]
      %v521 = vld [vmem:[#allocation3 + $0xa0] sm:$0xff]
      %v522 = vld [vmem:[#allocation3 + $0xa8] sm:$0xff]
      %v523 = vld [vmem:[#allocation3 + $0xb0] sm:$0xff]
      %v524 = vld [vmem:[#allocation3 + $0xb8] sm:$0xff]
      %v525 = vld [vmem:[#allocation3 + $0xc0] sm:$0xff]
      %v526 = vld [vmem:[#allocation3 + $0xc8] sm:$0xff]
      %v527 = vld [vmem:[#allocation3 + $0xd0] sm:$0xff]
      %v528 = vld [vmem:[#allocation3 + $0xd8] sm:$0xff]
      %v529 = vld [vmem:[#allocation3 + $0xe0] sm:$0xff]
      %v530 = vld [vmem:[#allocation3 + $0xe8] sm:$0xff]
      %v531 = vld [vmem:[#allocation3 + $0xf0] sm:$0xff]
      %v532 = vld [vmem:[#allocation3 + $0xf8] sm:$0xff]
      %v533 = vld [vmem:[%s2] sm:$0x3]
      %v566 = vunpack.c.l.b16 %v465
      %v567 = vunpack.c.l.b16 %v466
      %v568 = vunpack.c.l.b16 %v467
      %v569 = vunpack.c.l.b16 %v468
      %v570 = vunpack.c.l.b16 %v469
      %v571 = vunpack.c.l.b16 %v470
      %v572 = vunpack.c.l.b16 %v471
      %v573 = vunpack.c.l.b16 %v472
      %v574 = vunpack.c.l.b16 %v474
      %v575 = vunpack.c.l.b16 %v475
      %v576 = vunpack.c.l.b16 %v476
      %v577 = vunpack.c.l.b16 %v477
      %v578 = vunpack.c.l.b16 %v478
      %v579 = vunpack.c.l.b16 %v479
      %v580 = vunpack.c.l.b16 %v480
      %v581 = vunpack.c.l.b16 %v481
      %v582 = vunpack.c.l.b16 %v483
      %v583 = vunpack.c.l.b16 %v484
      %v584 = vunpack.c.l.b16 %v485
      %v585 = vunpack.c.l.b16 %v486
      %v586 = vunpack.c.l.b16 %v487
      %v587 = vunpack.c.l.b16 %v488
      %v588 = vunpack.c.l.b16 %v489
      %v589 = vunpack.c.l.b16 %v490
      %v590 = vunpack.c.l.b16 %v492
      %v591 = vunpack.c.l.b16 %v493
      %v592 = vunpack.c.l.b16 %v494
      %v593 = vunpack.c.l.b16 %v495
      %v594 = vunpack.c.l.b16 %v496
      %v595 = vunpack.c.l.b16 %v497
      %v596 = vunpack.c.l.b16 %v498
      %v597 = vunpack.c.l.b16 %v499
      %v598 = vpack.c.b16 %v567, %v566
      %v599 = vpack.c.b16 %v569, %v568
      %v600 = vpack.c.b16 %v571, %v570
      %v601 = vpack.c.b16 %v573, %v572
      %v602 = vpack.c.b16 %v575, %v574
      %v603 = vpack.c.b16 %v577, %v576
      %v604 = vpack.c.b16 %v579, %v578
      %v605 = vpack.c.b16 %v581, %v580
      %v606 = vpack.c.b16 %v583, %v582
      %v607 = vpack.c.b16 %v585, %v584
      %v608 = vpack.c.b16 %v587, %v586
      %v609 = vpack.c.b16 %v589, %v588
      %v610 = vpack.c.b16 %v591, %v590
      %v611 = vpack.c.b16 %v593, %v592
      %v612 = vpack.c.b16 %v595, %v594
      %v613 = vpack.c.b16 %v597, %v596
      %vm614 = vcmask 23552
      %v616 = vsel %vm614, %v598, 0
      %v619 = vsel %vm614, %v599, 0
      %v622 = vsel %vm614, %v600, 0
      %v625 = vsel %vm614, %v601, 0
      %v628 = vsel %vm614, %v602, 0
      %v631 = vsel %vm614, %v603, 0
      %v634 = vsel %vm614, %v604, 0
      %v637 = vsel %vm614, %v605, 0
      %v640 = vsel %vm614, %v606, 0
      %v643 = vsel %vm614, %v607, 0
      %v646 = vsel %vm614, %v608, 0
      %v649 = vsel %vm614, %v609, 0
      %v652 = vsel %vm614, %v610, 0
      %v655 = vsel %vm614, %v611, 0
      %v658 = vsel %vm614, %v612, 0
      %v661 = vsel %vm614, %v613, 0
      %vm663 = vcmask 1040384
      %vm664 = vcmask 1041408
      %v665 = vsel %vm663, 4294967295, 65535
      %v666 = vsel %vm664, %v665, 0
      %v668 = vand.u32 %v533, %v666
      %670 = vmatprep.subr.bf16.mxu0 0
      %671 = vmatpush1.bf16.msra.mxu0 %v668
      %672 = vmatprep.subr.bf16.mxu0 0
      %673 = vmatpush1.bf16.msra.mxu0 0
      %674 = vmatprep.subr.bf16.mxu0 0
      %675 = vmatpush1.bf16.msra.mxu0 0
      %676 = vmatprep.subr.bf16.mxu0 0
      %677 = vmatpush1.bf16.msra.mxu0 0
      %678 = vmatprep.subr.bf16.mxu0 0
      %679 = vmatpush1.bf16.msra.mxu0 0
      %680 = vmatprep.subr.bf16.mxu0 0
      %681 = vmatpush1.bf16.msra.mxu0 0
      %682 = vmatprep.subr.bf16.mxu0 0
      %683 = vmatpush1.bf16.msra.mxu0 0
      %684 = vmatprep.subr.bf16.mxu0 0
      %685 = vmatpush1.bf16.msra.mxu0 0
      %686 = vmatprep.subr.bf16.mxu0 0
      %687 = vmatpush1.bf16.msra.mxu0 0
      %688 = vmatprep.subr.bf16.mxu0 0
      %689 = vmatpush1.bf16.msra.mxu0 0
      %690 = vmatprep.subr.bf16.mxu0 0
      %691 = vmatpush1.bf16.msra.mxu0 0
      %692 = vmatprep.subr.bf16.mxu0 0
      %693 = vmatpush1.bf16.msra.mxu0 0
      %694 = vmatprep.subr.bf16.mxu0 0
      %695 = vmatpush1.bf16.msra.mxu0 0
      %696 = vmatprep.subr.bf16.mxu0 0
      %697 = vmatpush1.bf16.msra.mxu0 0
      %698 = vmatprep.subr.bf16.mxu0 0
      %699 = vmatpush1.bf16.msra.mxu0 0
      %700 = vmatprep.subr.bf16.mxu0 0
      %701 = vmatpush1.bf16.msra.mxu0 0
      %702 = vmatprep.mubr.bf16.mxu0 0
      %703 = vmatmul.mubr.bf16.gmra.mrb[0].mxu0 %v616
      %v704 = vpop.f32.mrb[0].mxu0
      %v705 = vadd.f32 0.0, %v704
      %v706 = vpop.f32.mrb[0].mxu0
      %v707 = vpop.f32.mrb[0].mxu0
      %v708 = vadd.f32 0.0, %v707
      %v709 = vpop.f32.mrb[0].mxu0
      %710 = vmatprep.mubr.bf16.mxu0 0
      %711 = vmatmul.mubr.bf16.gmra.mrb[0].mxu0 %v619
      %v712 = vpop.f32.mrb[0].mxu0
      %v713 = vadd.f32 0.0, %v712
      %v714 = vpop.f32.mrb[0].mxu0
      %v715 = vpop.f32.mrb[0].mxu0
      %v716 = vadd.f32 0.0, %v715
      %v717 = vpop.f32.mrb[0].mxu0
      %718 = vmatprep.mubr.bf16.mxu0 0
      %719 = vmatmul.mubr.bf16.gmra.mrb[0].mxu0 %v622
      %v720 = vpop.f32.mrb[0].mxu0
      %v721 = vadd.f32 0.0, %v720
      %v722 = vpop.f32.mrb[0].mxu0
      %v723 = vpop.f32.mrb[0].mxu0
      %v724 = vadd.f32 0.0, %v723
      %v725 = vpop.f32.mrb[0].mxu0
      %726 = vmatprep.mubr.bf16.mxu0 0
      %727 = vmatmul.mubr.bf16.gmra.mrb[0].mxu0 %v625
      %v728 = vpop.f32.mrb[0].mxu0
      %v729 = vadd.f32 0.0, %v728
      %v730 = vpop.f32.mrb[0].mxu0
      %v731 = vpop.f32.mrb[0].mxu0
      %v732 = vadd.f32 0.0, %v731
      %v733 = vpop.f32.mrb[0].mxu0
      %734 = vmatprep.mubr.bf16.mxu0 0
      %735 = vmatmul.mubr.bf16.gmra.mrb[0].mxu0 %v628
      %v736 = vpop.f32.mrb[0].mxu0
      %v737 = vadd.f32 0.0, %v736
      %v738 = vpop.f32.mrb[0].mxu0
      %v739 = vpop.f32.mrb[0].mxu0
      %v740 = vadd.f32 0.0, %v739
      %v741 = vpop.f32.mrb[0].mxu0
      %742 = vmatprep.mubr.bf16.mxu0 0
      %743 = vmatmul.mubr.bf16.gmra.mrb[0].mxu0 %v631
      %v744 = vpop.f32.mrb[0].mxu0
      %v745 = vadd.f32 0.0, %v744
      %v746 = vpop.f32.mrb[0].mxu0
      %v747 = vpop.f32.mrb[0].mxu0
      %v748 = vadd.f32 0.0, %v747
      %v749 = vpop.f32.mrb[0].mxu0
      %750 = vmatprep.mubr.bf16.mxu0 0
      %751 = vmatmul.mubr.bf16.gmra.mrb[0].mxu0 %v634
      %v752 = vpop.f32.mrb[0].mxu0
      %v753 = vadd.f32 0.0, %v752
      %v754 = vpop.f32.mrb[0].mxu0
      %v755 = vpop.f32.mrb[0].mxu0
      %v756 = vadd.f32 0.0, %v755
      %v757 = vpop.f32.mrb[0].mxu0
      %758 = vmatprep.mubr.bf16.mxu0 0
      %759 = vmatmul.mubr.bf16.gmra.mrb[0].mxu0 %v637
      %v760 = vpop.f32.mrb[0].mxu0
      %v761 = vadd.f32 0.0, %v760
      %v762 = vpop.f32.mrb[0].mxu0
      %v763 = vpop.f32.mrb[0].mxu0
      %v764 = vadd.f32 0.0, %v763
      %v765 = vpop.f32.mrb[0].mxu0
      %766 = vmatprep.mubr.bf16.mxu0 0
      %767 = vmatmul.mubr.bf16.gmra.mrb[0].mxu0 %v640
      %v768 = vpop.f32.mrb[0].mxu0
      %v769 = vadd.f32 0.0, %v768
      %v770 = vpop.f32.mrb[0].mxu0
      %v771 = vpop.f32.mrb[0].mxu0
      %v772 = vadd.f32 0.0, %v771
      %v773 = vpop.f32.mrb[0].mxu0
      %774 = vmatprep.mubr.bf16.mxu0 0
      %775 = vmatmul.mubr.bf16.gmra.mrb[0].mxu0 %v643
      %v776 = vpop.f32.mrb[0].mxu0
      %v777 = vadd.f32 0.0, %v776
      %v778 = vpop.f32.mrb[0].mxu0
      %v779 = vpop.f32.mrb[0].mxu0
      %v780 = vadd.f32 0.0, %v779
      %v781 = vpop.f32.mrb[0].mxu0
      %782 = vmatprep.mubr.bf16.mxu0 0
      %783 = vmatmul.mubr.bf16.gmra.mrb[0].mxu0 %v646
      %v784 = vpop.f32.mrb[0].mxu0
      %v785 = vadd.f32 0.0, %v784
      %v786 = vpop.f32.mrb[0].mxu0
      %v787 = vpop.f32.mrb[0].mxu0
      %v788 = vadd.f32 0.0, %v787
      %v789 = vpop.f32.mrb[0].mxu0
      %790 = vmatprep.mubr.bf16.mxu0 0
      %791 = vmatmul.mubr.bf16.gmra.mrb[0].mxu0 %v649
      %v792 = vpop.f32.mrb[0].mxu0
      %v793 = vadd.f32 0.0, %v792
      %v794 = vpop.f32.mrb[0].mxu0
      %v795 = vpop.f32.mrb[0].mxu0
      %v796 = vadd.f32 0.0, %v795
      %v797 = vpop.f32.mrb[0].mxu0
      %798 = vmatprep.mubr.bf16.mxu0 0
      %799 = vmatmul.mubr.bf16.gmra.mrb[0].mxu0 %v652
      %v800 = vpop.f32.mrb[0].mxu0
      %v801 = vadd.f32 0.0, %v800
      %v802 = vpop.f32.mrb[0].mxu0
      %v803 = vpop.f32.mrb[0].mxu0
      %v804 = vadd.f32 0.0, %v803
      %v805 = vpop.f32.mrb[0].mxu0
      %806 = vmatprep.mubr.bf16.mxu0 0
      %807 = vmatmul.mubr.bf16.gmra.mrb[0].mxu0 %v655
      %v808 = vpop.f32.mrb[0].mxu0
      %v809 = vadd.f32 0.0, %v808
      %v810 = vpop.f32.mrb[0].mxu0
      %v811 = vpop.f32.mrb[0].mxu0
      %v812 = vadd.f32 0.0, %v811
      %v813 = vpop.f32.mrb[0].mxu0
      %814 = vmatprep.mubr.bf16.mxu0 0
      %815 = vmatmul.mubr.bf16.gmra.mrb[0].mxu0 %v658
      %v816 = vpop.f32.mrb[0].mxu0
      %v817 = vadd.f32 0.0, %v816
      %v818 = vpop.f32.mrb[0].mxu0
      %v819 = vpop.f32.mrb[0].mxu0
      %v820 = vadd.f32 0.0, %v819
      %v821 = vpop.f32.mrb[0].mxu0
      %822 = vmatprep.mubr.bf16.mxu0 0
      %823 = vmatmul.mubr.bf16.gmra.mrb[0].mxu0 %v661
      %v824 = vpop.f32.mrb[0].mxu0
      %v825 = vadd.f32 0.0, %v824
      %v826 = vpop.f32.mrb[0].mxu0
      %v827 = vpop.f32.mrb[0].mxu0
      %v828 = vadd.f32 0.0, %v827
      %v829 = vpop.f32.mrb[0].mxu0
      %830 = vdwg.mxu0
      %v831 = vadd.f32 %v501, %v705
      %v832 = vadd.f32 %v502, %v708
      %v833 = vadd.f32 %v503, %v713
      %v834 = vadd.f32 %v504, %v716
      %v835 = vadd.f32 %v505, %v721
      %v836 = vadd.f32 %v506, %v724
      %v837 = vadd.f32 %v507, %v729
      %v838 = vadd.f32 %v508, %v732
      %v839 = vadd.f32 %v509, %v737
      %v840 = vadd.f32 %v510, %v740
      %v841 = vadd.f32 %v511, %v745
      %v842 = vadd.f32 %v512, %v748
      %v843 = vadd.f32 %v513, %v753
      %v844 = vadd.f32 %v514, %v756
      %v845 = vadd.f32 %v515, %v761
      %v846 = vadd.f32 %v516, %v764
      %v847 = vadd.f32 %v517, %v769
      %v848 = vadd.f32 %v518, %v772
      %v849 = vadd.f32 %v519, %v777
      %v850 = vadd.f32 %v520, %v780
      %v851 = vadd.f32 %v521, %v785
      %v852 = vadd.f32 %v522, %v788
      %v853 = vadd.f32 %v523, %v793
      %v854 = vadd.f32 %v524, %v796
      %v855 = vadd.f32 %v525, %v801
      %v856 = vadd.f32 %v526, %v804
      %v857 = vadd.f32 %v527, %v809
      %v858 = vadd.f32 %v528, %v812
      %v859 = vadd.f32 %v529, %v817
      %v860 = vadd.f32 %v530, %v820
      %v861 = vadd.f32 %v531, %v825
      %v862 = vadd.f32 %v532, %v828
      %863 = vst.msk [vmem:[#allocation3] sm:$0xff] %vm432, %v831
      %864 = vst.msk [vmem:[#allocation3 + $0x8] sm:$0xff] %vm432, %v832
      %865 = vst.msk [vmem:[#allocation3 + $0x10] sm:$0xff] %vm432, %v833
      %866 = vst.msk [vmem:[#allocation3 + $0x18] sm:$0xff] %vm432, %v834
      %867 = vst.msk [vmem:[#allocation3 + $0x20] sm:$0xff] %vm432, %v835
      %868 = vst.msk [vmem:[#allocation3 + $0x28] sm:$0xff] %vm432, %v836
      %869 = vst.msk [vmem:[#allocation3 + $0x30] sm:$0xff] %vm432, %v837
      %870 = vst.msk [vmem:[#allocation3 + $0x38] sm:$0xff] %vm432, %v838
      %871 = vst.msk [vmem:[#allocation3 + $0x40] sm:$0xff] %vm432, %v839
      %872 = vst.msk [vmem:[#allocation3 + $0x48] sm:$0xff] %vm432, %v840
      %873 = vst.msk [vmem:[#allocation3 + $0x50] sm:$0xff] %vm432, %v841
      %874 = vst.msk [vmem:[#allocation3 + $0x58] sm:$0xff] %vm432, %v842
      %875 = vst.msk [vmem:[#allocation3 + $0x60] sm:$0xff] %vm432, %v843
      %876 = vst.msk [vmem:[#allocation3 + $0x68] sm:$0xff] %vm432, %v844
      %877 = vst.msk [vmem:[#allocation3 + $0x70] sm:$0xff] %vm432, %v845
      %878 = vst.msk [vmem:[#allocation3 + $0x78] sm:$0xff] %vm432, %v846
      %879 = vst.msk [vmem:[#allocation3 + $0x80] sm:$0xff] %vm432, %v847
      %880 = vst.msk [vmem:[#allocation3 + $0x88] sm:$0xff] %vm432, %v848
      %881 = vst.msk [vmem:[#allocation3 + $0x90] sm:$0xff] %vm432, %v849
      %882 = vst.msk [vmem:[#allocation3 + $0x98] sm:$0xff] %vm432, %v850
      %883 = vst.msk [vmem:[#allocation3 + $0xa0] sm:$0xff] %vm432, %v851
      %884 = vst.msk [vmem:[#allocation3 + $0xa8] sm:$0xff] %vm432, %v852
      %885 = vst.msk [vmem:[#allocation3 + $0xb0] sm:$0xff] %vm432, %v853
      %886 = vst.msk [vmem:[#allocation3 + $0xb8] sm:$0xff] %vm432, %v854
      %887 = vst.msk [vmem:[#allocation3 + $0xc0] sm:$0xff] %vm432, %v855
      %888 = vst.msk [vmem:[#allocation3 + $0xc8] sm:$0xff] %vm432, %v856
      %889 = vst.msk [vmem:[#allocation3 + $0xd0] sm:$0xff] %vm432, %v857
      %890 = vst.msk [vmem:[#allocation3 + $0xd8] sm:$0xff] %vm432, %v858
      %891 = vst.msk [vmem:[#allocation3 + $0xe0] sm:$0xff] %vm432, %v859
      %892 = vst.msk [vmem:[#allocation3 + $0xe8] sm:$0xff] %vm432, %v860
      %893 = vst.msk [vmem:[#allocation3 + $0xf0] sm:$0xff] %vm432, %v861
      %894 = vst.msk [vmem:[#allocation3 + $0xf8] sm:$0xff] %vm432, %v862
      %vm895 = vsmask.f32 3328
      %vm896 = vsmask.f32 7440
      %vm897 = vmor %vm895, %vm896
      %v899 = vshrl.u32 %v465, 16
      %v901 = vrot.slane %v899, 4
      %v902 = vshll.u32 %v465, 16
      %v904 = vrot.slane %v902, 5
      %v905 = vor.u32 %v901, %v904
      %v906 = vrot.slane %v905, 4
      %v908 = vshll.u32 %v466, 16
      %v910 = vrot.slane %v908, 5
      %v911 = vsel %vm897, %v906, %v910
      %v912 = vshrl.u32 %v466, 16
      %v914 = vrot.slane %v912, 4
      %v915 = vor.u32 %v914, %v910
      %v916 = vrot.slane %v915, 4
      %v918 = vshll.u32 %v467, 16
      %v920 = vrot.slane %v918, 5
      %v921 = vsel %vm897, %v916, %v920
      %v922 = vshrl.u32 %v467, 16
      %v924 = vrot.slane %v922, 4
      %v925 = vor.u32 %v924, %v920
      %v926 = vrot.slane %v925, 4
      %v928 = vshll.u32 %v468, 16
      %v930 = vrot.slane %v928, 5
      %v931 = vsel %vm897, %v926, %v930
      %v932 = vshrl.u32 %v468, 16
      %v934 = vrot.slane %v932, 4
      %v935 = vor.u32 %v934, %v930
      %v936 = vrot.slane %v935, 4
      %v938 = vshll.u32 %v469, 16
      %v940 = vrot.slane %v938, 5
      %v941 = vsel %vm897, %v936, %v940
      %v942 = vshrl.u32 %v469, 16
      %v944 = vrot.slane %v942, 4
      %v945 = vor.u32 %v944, %v940
      %v946 = vrot.slane %v945, 4
      %v948 = vshll.u32 %v470, 16
      %v950 = vrot.slane %v948, 5
      %v951 = vsel %vm897, %v946, %v950
      %v952 = vshrl.u32 %v470, 16
      %v954 = vrot.slane %v952, 4
      %v955 = vor.u32 %v954, %v950
      %v956 = vrot.slane %v955, 4
      %v958 = vshll.u32 %v471, 16
      %v960 = vrot.slane %v958, 5
      %v961 = vsel %vm897, %v956, %v960
      %v962 = vshrl.u32 %v471, 16
      %v964 = vrot.slane %v962, 4
      %v965 = vor.u32 %v964, %v960
      %v966 = vrot.slane %v965, 4
      %v968 = vshll.u32 %v472, 16
      %v970 = vrot.slane %v968, 5
      %v971 = vsel %vm897, %v966, %v970
      %v972 = vshrl.u32 %v472, 16
      %v974 = vrot.slane %v972, 4
      %v975 = vor.u32 %v974, %v970
      %v976 = vrot.slane %v975, 4
      %v978 = vshll.u32 %v473, 16
      %v980 = vrot.slane %v978, 5
      %v981 = vsel %vm897, %v976, %v980
      %v983 = vshrl.u32 %v474, 16
      %v985 = vrot.slane %v983, 4
      %v986 = vshll.u32 %v474, 16
      %v988 = vrot.slane %v986, 5
      %v989 = vor.u32 %v985, %v988
      %v990 = vrot.slane %v989, 4
      %v992 = vshll.u32 %v475, 16
      %v994 = vrot.slane %v992, 5
      %v995 = vsel %vm897, %v990, %v994
      %v996 = vshrl.u32 %v475, 16
      %v998 = vrot.slane %v996, 4
      %v999 = vor.u32 %v998, %v994
      %v1000 = vrot.slane %v999, 4
      %v1002 = vshll.u32 %v476, 16
      %v1004 = vrot.slane %v1002, 5
      %v1005 = vsel %vm897, %v1000, %v1004
      %v1006 = vshrl.u32 %v476, 16
      %v1008 = vrot.slane %v1006, 4
      %v1009 = vor.u32 %v1008, %v1004
      %v1010 = vrot.slane %v1009, 4
      %v1012 = vshll.u32 %v477, 16
      %v1014 = vrot.slane %v1012, 5
      %v1015 = vsel %vm897, %v1010, %v1014
      %v1016 = vshrl.u32 %v477, 16
      %v1018 = vrot.slane %v1016, 4
      %v1019 = vor.u32 %v1018, %v1014
      %v1020 = vrot.slane %v1019, 4
      %v1022 = vshll.u32 %v478, 16
      %v1024 = vrot.slane %v1022, 5
      %v1025 = vsel %vm897, %v1020, %v1024
      %v1026 = vshrl.u32 %v478, 16
      %v1028 = vrot.slane %v1026, 4
      %v1029 = vor.u32 %v1028, %v1024
      %v1030 = vrot.slane %v1029, 4
      %v1032 = vshll.u32 %v479, 16
      %v1034 = vrot.slane %v1032, 5
      %v1035 = vsel %vm897, %v1030, %v1034
      %v1036 = vshrl.u32 %v479, 16
      %v1038 = vrot.slane %v1036, 4
      %v1039 = vor.u32 %v1038, %v1034
      %v1040 = vrot.slane %v1039, 4
      %v1042 = vshll.u32 %v480, 16
      %v1044 = vrot.slane %v1042, 5
      %v1045 = vsel %vm897, %v1040, %v1044
      %v1046 = vshrl.u32 %v480, 16
      %v1048 = vrot.slane %v1046, 4
      %v1049 = vor.u32 %v1048, %v1044
      %v1050 = vrot.slane %v1049, 4
      %v1052 = vshll.u32 %v481, 16
      %v1054 = vrot.slane %v1052, 5
      %v1055 = vsel %vm897, %v1050, %v1054
      %v1056 = vshrl.u32 %v481, 16
      %v1058 = vrot.slane %v1056, 4
      %v1059 = vor.u32 %v1058, %v1054
      %v1060 = vrot.slane %v1059, 4
      %v1062 = vshll.u32 %v482, 16
      %v1064 = vrot.slane %v1062, 5
      %v1065 = vsel %vm897, %v1060, %v1064
      %v1067 = vshrl.u32 %v483, 16
      %v1069 = vrot.slane %v1067, 4
      %v1070 = vshll.u32 %v483, 16
      %v1072 = vrot.slane %v1070, 5
      %v1073 = vor.u32 %v1069, %v1072
      %v1074 = vrot.slane %v1073, 4
      %v1076 = vshll.u32 %v484, 16
      %v1078 = vrot.slane %v1076, 5
      %v1079 = vsel %vm897, %v1074, %v1078
      %v1080 = vshrl.u32 %v484, 16
      %v1082 = vrot.slane %v1080, 4
      %v1083 = vor.u32 %v1082, %v1078
      %v1084 = vrot.slane %v1083, 4
      %v1086 = vshll.u32 %v485, 16
      %v1088 = vrot.slane %v1086, 5
      %v1089 = vsel %vm897, %v1084, %v1088
      %v1090 = vshrl.u32 %v485, 16
      %v1092 = vrot.slane %v1090, 4
      %v1093 = vor.u32 %v1092, %v1088
      %v1094 = vrot.slane %v1093, 4
      %v1096 = vshll.u32 %v486, 16
      %v1098 = vrot.slane %v1096, 5
      %v1099 = vsel %vm897, %v1094, %v1098
      %v1100 = vshrl.u32 %v486, 16
      %v1102 = vrot.slane %v1100, 4
      %v1103 = vor.u32 %v1102, %v1098
      %v1104 = vrot.slane %v1103, 4
      %v1106 = vshll.u32 %v487, 16
      %v1108 = vrot.slane %v1106, 5
      %v1109 = vsel %vm897, %v1104, %v1108
      %v1110 = vshrl.u32 %v487, 16
      %v1112 = vrot.slane %v1110, 4
      %v1113 = vor.u32 %v1112, %v1108
      %v1114 = vrot.slane %v1113, 4
      %v1116 = vshll.u32 %v488, 16
      %v1118 = vrot.slane %v1116, 5
      %v1119 = vsel %vm897, %v1114, %v1118
      %v1120 = vshrl.u32 %v488, 16
      %v1122 = vrot.slane %v1120, 4
      %v1123 = vor.u32 %v1122, %v1118
      %v1124 = vrot.slane %v1123, 4
      %v1126 = vshll.u32 %v489, 16
      %v1128 = vrot.slane %v1126, 5
      %v1129 = vsel %vm897, %v1124, %v1128
      %v1130 = vshrl.u32 %v489, 16
      %v1132 = vrot.slane %v1130, 4
      %v1133 = vor.u32 %v1132, %v1128
      %v1134 = vrot.slane %v1133, 4
      %v1136 = vshll.u32 %v490, 16
      %v1138 = vrot.slane %v1136, 5
      %v1139 = vsel %vm897, %v1134, %v1138
      %v1140 = vshrl.u32 %v490, 16
      %v1142 = vrot.slane %v1140, 4
      %v1143 = vor.u32 %v1142, %v1138
      %v1144 = vrot.slane %v1143, 4
      %v1146 = vshll.u32 %v491, 16
      %v1148 = vrot.slane %v1146, 5
      %v1149 = vsel %vm897, %v1144, %v1148
      %v1151 = vshrl.u32 %v492, 16
      %v1153 = vrot.slane %v1151, 4
      %v1154 = vshll.u32 %v492, 16
      %v1156 = vrot.slane %v1154, 5
      %v1157 = vor.u32 %v1153, %v1156
      %v1158 = vrot.slane %v1157, 4
      %v1160 = vshll.u32 %v493, 16
      %v1162 = vrot.slane %v1160, 5
      %v1163 = vsel %vm897, %v1158, %v1162
      %v1164 = vshrl.u32 %v493, 16
      %v1166 = vrot.slane %v1164, 4
      %v1167 = vor.u32 %v1166, %v1162
      %v1168 = vrot.slane %v1167, 4
      %v1170 = vshll.u32 %v494, 16
      %v1172 = vrot.slane %v1170, 5
      %v1173 = vsel %vm897, %v1168, %v1172
      %v1174 = vshrl.u32 %v494, 16
      %v1176 = vrot.slane %v1174, 4
      %v1177 = vor.u32 %v1176, %v1172
      %v1178 = vrot.slane %v1177, 4
      %v1180 = vshll.u32 %v495, 16
      %v1182 = vrot.slane %v1180, 5
      %v1183 = vsel %vm897, %v1178, %v1182
      %v1184 = vshrl.u32 %v495, 16
      %v1186 = vrot.slane %v1184, 4
      %v1187 = vor.u32 %v1186, %v1182
      %v1188 = vrot.slane %v1187, 4
      %v1190 = vshll.u32 %v496, 16
      %v1192 = vrot.slane %v1190, 5
      %v1193 = vsel %vm897, %v1188, %v1192
      %v1194 = vshrl.u32 %v496, 16
      %v1196 = vrot.slane %v1194, 4
      %v1197 = vor.u32 %v1196, %v1192
      %v1198 = vrot.slane %v1197, 4
      %v1200 = vshll.u32 %v497, 16
      %v1202 = vrot.slane %v1200, 5
      %v1203 = vsel %vm897, %v1198, %v1202
      %v1204 = vshrl.u32 %v497, 16
      %v1206 = vrot.slane %v1204, 4
      %v1207 = vor.u32 %v1206, %v1202
      %v1208 = vrot.slane %v1207, 4
      %v1210 = vshll.u32 %v498, 16
      %v1212 = vrot.slane %v1210, 5
      %v1213 = vsel %vm897, %v1208, %v1212
      %v1214 = vshrl.u32 %v498, 16
      %v1216 = vrot.slane %v1214, 4
      %v1217 = vor.u32 %v1216, %v1212
      %v1218 = vrot.slane %v1217, 4
      %v1220 = vshll.u32 %v499, 16
      %v1222 = vrot.slane %v1220, 5
      %v1223 = vsel %vm897, %v1218, %v1222
      %v1224 = vshrl.u32 %v499, 16
      %v1226 = vrot.slane %v1224, 4
      %v1227 = vor.u32 %v1226, %v1222
      %v1228 = vrot.slane %v1227, 4
      %v1230 = vshll.u32 %v500, 16
      %v1232 = vrot.slane %v1230, 5
      %v1233 = vsel %vm897, %v1228, %v1232
      %v1234 = vld [vmem:[#allocation3] sm:$0xff]
      %v1235 = vld [vmem:[#allocation3 + $0x8] sm:$0xff]
      %v1236 = vld [vmem:[#allocation3 + $0x10] sm:$0xff]
      %v1237 = vld [vmem:[#allocation3 + $0x18] sm:$0xff]
      %v1238 = vld [vmem:[#allocation3 + $0x20] sm:$0xff]
      %v1239 = vld [vmem:[#allocation3 + $0x28] sm:$0xff]
      %v1240 = vld [vmem:[#allocation3 + $0x30] sm:$0xff]
      %v1241 = vld [vmem:[#allocation3 + $0x38] sm:$0xff]
      %v1242 = vld [vmem:[#allocation3 + $0x40] sm:$0xff]
      %v1243 = vld [vmem:[#allocation3 + $0x48] sm:$0xff]
      %v1244 = vld [vmem:[#allocation3 + $0x50] sm:$0xff]
      %v1245 = vld [vmem:[#allocation3 + $0x58] sm:$0xff]
      %v1246 = vld [vmem:[#allocation3 + $0x60] sm:$0xff]
      %v1247 = vld [vmem:[#allocation3 + $0x68] sm:$0xff]
      %v1248 = vld [vmem:[#allocation3 + $0x70] sm:$0xff]
      %v1249 = vld [vmem:[#allocation3 + $0x78] sm:$0xff]
      %v1250 = vld [vmem:[#allocation3 + $0x80] sm:$0xff]
      %v1251 = vld [vmem:[#allocation3 + $0x88] sm:$0xff]
      %v1252 = vld [vmem:[#allocation3 + $0x90] sm:$0xff]
      %v1253 = vld [vmem:[#allocation3 + $0x98] sm:$0xff]
      %v1254 = vld [vmem:[#allocation3 + $0xa0] sm:$0xff]
      %v1255 = vld [vmem:[#allocation3 + $0xa8] sm:$0xff]
      %v1256 = vld [vmem:[#allocation3 + $0xb0] sm:$0xff]
      %v1257 = vld [vmem:[#allocation3 + $0xb8] sm:$0xff]
      %v1258 = vld [vmem:[#allocation3 + $0xc0] sm:$0xff]
      %v1259 = vld [vmem:[#allocation3 + $0xc8] sm:$0xff]
      %v1260 = vld [vmem:[#allocation3 + $0xd0] sm:$0xff]
      %v1261 = vld [vmem:[#allocation3 + $0xd8] sm:$0xff]
      %v1262 = vld [vmem:[#allocation3 + $0xe0] sm:$0xff]
      %v1263 = vld [vmem:[#allocation3 + $0xe8] sm:$0xff]
      %v1264 = vld [vmem:[#allocation3 + $0xf0] sm:$0xff]
      %v1265 = vld [vmem:[#allocation3 + $0xf8] sm:$0xff]
      %s1266 = scalar_lea.vmem %s2, 2
      %v1267 = vld [vmem:[%s1266] sm:$0x3]
      %v1268 = vunpack.c.l.b16 %v911
      %v1269 = vunpack.c.l.b16 %v921
      %v1270 = vunpack.c.l.b16 %v931
      %v1271 = vunpack.c.l.b16 %v941
      %v1272 = vunpack.c.l.b16 %v951
      %v1273 = vunpack.c.l.b16 %v961
      %v1274 = vunpack.c.l.b16 %v971
      %v1275 = vunpack.c.l.b16 %v981
      %v1276 = vunpack.c.l.b16 %v995
      %v1277 = vunpack.c.l.b16 %v1005
      %v1278 = vunpack.c.l.b16 %v1015
      %v1279 = vunpack.c.l.b16 %v1025
      %v1280 = vunpack.c.l.b16 %v1035
      %v1281 = vunpack.c.l.b16 %v1045
      %v1282 = vunpack.c.l.b16 %v1055
      %v1283 = vunpack.c.l.b16 %v1065
      %v1284 = vunpack.c.l.b16 %v1079
      %v1285 = vunpack.c.l.b16 %v1089
      %v1286 = vunpack.c.l.b16 %v1099
      %v1287 = vunpack.c.l.b16 %v1109
      %v1288 = vunpack.c.l.b16 %v1119
      %v1289 = vunpack.c.l.b16 %v1129
      %v1290 = vunpack.c.l.b16 %v1139
      %v1291 = vunpack.c.l.b16 %v1149
      %v1292 = vunpack.c.l.b16 %v1163
      %v1293 = vunpack.c.l.b16 %v1173
      %v1294 = vunpack.c.l.b16 %v1183
      %v1295 = vunpack.c.l.b16 %v1193
      %v1296 = vunpack.c.l.b16 %v1203
      %v1297 = vunpack.c.l.b16 %v1213
      %v1298 = vunpack.c.l.b16 %v1223
      %v1299 = vunpack.c.l.b16 %v1233
      %v1300 = vpack.c.b16 %v1269, %v1268
      %v1301 = vpack.c.b16 %v1271, %v1270
      %v1302 = vpack.c.b16 %v1273, %v1272
      %v1303 = vpack.c.b16 %v1275, %v1274
      %v1304 = vpack.c.b16 %v1277, %v1276
      %v1305 = vpack.c.b16 %v1279, %v1278
      %v1306 = vpack.c.b16 %v1281, %v1280
      %v1307 = vpack.c.b16 %v1283, %v1282
      %v1308 = vpack.c.b16 %v1285, %v1284
      %v1309 = vpack.c.b16 %v1287, %v1286
      %v1310 = vpack.c.b16 %v1289, %v1288
      %v1311 = vpack.c.b16 %v1291, %v1290
      %v1312 = vpack.c.b16 %v1293, %v1292
      %v1313 = vpack.c.b16 %v1295, %v1294
      %v1314 = vpack.c.b16 %v1297, %v1296
      %v1315 = vpack.c.b16 %v1299, %v1298
      %v1317 = vsel %vm614, %v1300, 0
      %v1320 = vsel %vm614, %v1301, 0
      %v1323 = vsel %vm614, %v1302, 0
      %v1326 = vsel %vm614, %v1303, 0
      %v1329 = vsel %vm614, %v1304, 0
      %v1332 = vsel %vm614, %v1305, 0
      %v1335 = vsel %vm614, %v1306, 0
      %v1338 = vsel %vm614, %v1307, 0
      %v1341 = vsel %vm614, %v1308, 0
      %v1344 = vsel %vm614, %v1309, 0
      %v1347 = vsel %vm614, %v1310, 0
      %v1350 = vsel %vm614, %v1311, 0
      %v1353 = vsel %vm614, %v1312, 0
      %v1356 = vsel %vm614, %v1313, 0
      %v1359 = vsel %vm614, %v1314, 0
      %v1362 = vsel %vm614, %v1315, 0
      %v1365 = vand.u32 %v1267, %v666
      %1367 = vmatprep.subr.bf16.mxu0 0
      %1368 = vmatpush1.bf16.msra.mxu0 %v1365
      %1369 = vmatprep.subr.bf16.mxu0 0
      %1370 = vmatpush1.bf16.msra.mxu0 0
      %1371 = vmatprep.subr.bf16.mxu0 0
      %1372 = vmatpush1.bf16.msra.mxu0 0
      %1373 = vmatprep.subr.bf16.mxu0 0
      %1374 = vmatpush1.bf16.msra.mxu0 0
      %1375 = vmatprep.subr.bf16.mxu0 0
      %1376 = vmatpush1.bf16.msra.mxu0 0
      %1377 = vmatprep.subr.bf16.mxu0 0
      %1378 = vmatpush1.bf16.msra.mxu0 0
      %1379 = vmatprep.subr.bf16.mxu0 0
      %1380 = vmatpush1.bf16.msra.mxu0 0
      %1381 = vmatprep.subr.bf16.mxu0 0
      %1382 = vmatpush1.bf16.msra.mxu0 0
      %1383 = vmatprep.subr.bf16.mxu0 0
      %1384 = vmatpush1.bf16.msra.mxu0 0
      %1385 = vmatprep.subr.bf16.mxu0 0
      %1386 = vmatpush1.bf16.msra.mxu0 0
      %1387 = vmatprep.subr.bf16.mxu0 0
      %1388 = vmatpush1.bf16.msra.mxu0 0
      %1389 = vmatprep.subr.bf16.mxu0 0
      %1390 = vmatpush1.bf16.msra.mxu0 0
      %1391 = vmatprep.subr.bf16.mxu0 0
      %1392 = vmatpush1.bf16.msra.mxu0 0
      %1393 = vmatprep.subr.bf16.mxu0 0
      %1394 = vmatpush1.bf16.msra.mxu0 0
      %1395 = vmatprep.subr.bf16.mxu0 0
      %1396 = vmatpush1.bf16.msra.mxu0 0
      %1397 = vmatprep.subr.bf16.mxu0 0
      %1398 = vmatpush1.bf16.msra.mxu0 0
      %1399 = vmatprep.mubr.bf16.mxu0 0
      %1400 = vmatmul.mubr.bf16.gmra.mrb[0].mxu0 %v1317
      %v1401 = vpop.f32.mrb[0].mxu0
      %v1402 = vadd.f32 0.0, %v1401
      %v1403 = vpop.f32.mrb[0].mxu0
      %v1404 = vpop.f32.mrb[0].mxu0
      %v1405 = vadd.f32 0.0, %v1404
      %v1406 = vpop.f32.mrb[0].mxu0
      %1407 = vmatprep.mubr.bf16.mxu0 0
      %1408 = vmatmul.mubr.bf16.gmra.mrb[0].mxu0 %v1320
      %v1409 = vpop.f32.mrb[0].mxu0
      %v1410 = vadd.f32 0.0, %v1409
      %v1411 = vpop.f32.mrb[0].mxu0
      %v1412 = vpop.f32.mrb[0].mxu0
      %v1413 = vadd.f32 0.0, %v1412
      %v1414 = vpop.f32.mrb[0].mxu0
      %1415 = vmatprep.mubr.bf16.mxu0 0
      %1416 = vmatmul.mubr.bf16.gmra.mrb[0].mxu0 %v1323
      %v1417 = vpop.f32.mrb[0].mxu0
      %v1418 = vadd.f32 0.0, %v1417
      %v1419 = vpop.f32.mrb[0].mxu0
      %v1420 = vpop.f32.mrb[0].mxu0
      %v1421 = vadd.f32 0.0, %v1420
      %v1422 = vpop.f32.mrb[0].mxu0
      %1423 = vmatprep.mubr.bf16.mxu0 0
      %1424 = vmatmul.mubr.bf16.gmra.mrb[0].mxu0 %v1326
      %v1425 = vpop.f32.mrb[0].mxu0
      %v1426 = vadd.f32 0.0, %v1425
      %v1427 = vpop.f32.mrb[0].mxu0
      %v1428 = vpop.f32.mrb[0].mxu0
      %v1429 = vadd.f32 0.0, %v1428
      %v1430 = vpop.f32.mrb[0].mxu0
      %1431 = vmatprep.mubr.bf16.mxu0 0
      %1432 = vmatmul.mubr.bf16.gmra.mrb[0].mxu0 %v1329
      %v1433 = vpop.f32.mrb[0].mxu0
      %v1434 = vadd.f32 0.0, %v1433
      %v1435 = vpop.f32.mrb[0].mxu0
      %v1436 = vpop.f32.mrb[0].mxu0
      %v1437 = vadd.f32 0.0, %v1436
      %v1438 = vpop.f32.mrb[0].mxu0
      %1439 = vmatprep.mubr.bf16.mxu0 0
      %1440 = vmatmul.mubr.bf16.gmra.mrb[0].mxu0 %v1332
      %v1441 = vpop.f32.mrb[0].mxu0
      %v1442 = vadd.f32 0.0, %v1441
      %v1443 = vpop.f32.mrb[0].mxu0
      %v1444 = vpop.f32.mrb[0].mxu0
      %v1445 = vadd.f32 0.0, %v1444
      %v1446 = vpop.f32.mrb[0].mxu0
      %1447 = vmatprep.mubr.bf16.mxu0 0
      %1448 = vmatmul.mubr.bf16.gmra.mrb[0].mxu0 %v1335
      %v1449 = vpop.f32.mrb[0].mxu0
      %v1450 = vadd.f32 0.0, %v1449
      %v1451 = vpop.f32.mrb[0].mxu0
      %v1452 = vpop.f32.mrb[0].mxu0
      %v1453 = vadd.f32 0.0, %v1452
      %v1454 = vpop.f32.mrb[0].mxu0
      %1455 = vmatprep.mubr.bf16.mxu0 0
      %1456 = vmatmul.mubr.bf16.gmra.mrb[0].mxu0 %v1338
      %v1457 = vpop.f32.mrb[0].mxu0
      %v1458 = vadd.f32 0.0, %v1457
      %v1459 = vpop.f32.mrb[0].mxu0
      %v1460 = vpop.f32.mrb[0].mxu0
      %v1461 = vadd.f32 0.0, %v1460
      %v1462 = vpop.f32.mrb[0].mxu0
      %1463 = vmatprep.mubr.bf16.mxu0 0
      %1464 = vmatmul.mubr.bf16.gmra.mrb[0].mxu0 %v1341
      %v1465 = vpop.f32.mrb[0].mxu0
      %v1466 = vadd.f32 0.0, %v1465
      %v1467 = vpop.f32.mrb[0].mxu0
      %v1468 = vpop.f32.mrb[0].mxu0
      %v1469 = vadd.f32 0.0, %v1468
      %v1470 = vpop.f32.mrb[0].mxu0
      %1471 = vmatprep.mubr.bf16.mxu0 0
      %1472 = vmatmul.mubr.bf16.gmra.mrb[0].mxu0 %v1344
      %v1473 = vpop.f32.mrb[0].mxu0
      %v1474 = vadd.f32 0.0, %v1473
      %v1475 = vpop.f32.mrb[0].mxu0
      %v1476 = vpop.f32.mrb[0].mxu0
      %v1477 = vadd.f32 0.0, %v1476
      %v1478 = vpop.f32.mrb[0].mxu0
      %1479 = vmatprep.mubr.bf16.mxu0 0
      %1480 = vmatmul.mubr.bf16.gmra.mrb[0].mxu0 %v1347
      %v1481 = vpop.f32.mrb[0].mxu0
      %v1482 = vadd.f32 0.0, %v1481
      %v1483 = vpop.f32.mrb[0].mxu0
      %v1484 = vpop.f32.mrb[0].mxu0
      %v1485 = vadd.f32 0.0, %v1484
      %v1486 = vpop.f32.mrb[0].mxu0
      %1487 = vmatprep.mubr.bf16.mxu0 0
      %1488 = vmatmul.mubr.bf16.gmra.mrb[0].mxu0 %v1350
      %v1489 = vpop.f32.mrb[0].mxu0
      %v1490 = vadd.f32 0.0, %v1489
      %v1491 = vpop.f32.mrb[0].mxu0
      %v1492 = vpop.f32.mrb[0].mxu0
      %v1493 = vadd.f32 0.0, %v1492
      %v1494 = vpop.f32.mrb[0].mxu0
      %1495 = vmatprep.mubr.bf16.mxu0 0
      %1496 = vmatmul.mubr.bf16.gmra.mrb[0].mxu0 %v1353
      %v1497 = vpop.f32.mrb[0].mxu0
      %v1498 = vadd.f32 0.0, %v1497
      %v1499 = vpop.f32.mrb[0].mxu0
      %v1500 = vpop.f32.mrb[0].mxu0
      %v1501 = vadd.f32 0.0, %v1500
      %v1502 = vpop.f32.mrb[0].mxu0
      %1503 = vmatprep.mubr.bf16.mxu0 0
      %1504 = vmatmul.mubr.bf16.gmra.mrb[0].mxu0 %v1356
      %v1505 = vpop.f32.mrb[0].mxu0
      %v1506 = vadd.f32 0.0, %v1505
      %v1507 = vpop.f32.mrb[0].mxu0
      %v1508 = vpop.f32.mrb[0].mxu0
      %v1509 = vadd.f32 0.0, %v1508
      %v1510 = vpop.f32.mrb[0].mxu0
      %1511 = vmatprep.mubr.bf16.mxu0 0
      %1512 = vmatmul.mubr.bf16.gmra.mrb[0].mxu0 %v1359
      %v1513 = vpop.f32.mrb[0].mxu0
      %v1514 = vadd.f32 0.0, %v1513
      %v1515 = vpop.f32.mrb[0].mxu0
      %v1516 = vpop.f32.mrb[0].mxu0
      %v1517 = vadd.f32 0.0, %v1516
      %v1518 = vpop.f32.mrb[0].mxu0
      %1519 = vmatprep.mubr.bf16.mxu0 0
      %1520 = vmatmul.mubr.bf16.gmra.mrb[0].mxu0 %v1362
      %v1521 = vpop.f32.mrb[0].mxu0
      %v1522 = vadd.f32 0.0, %v1521
      %v1523 = vpop.f32.mrb[0].mxu0
      %v1524 = vpop.f32.mrb[0].mxu0
      %v1525 = vadd.f32 0.0, %v1524
      %v1526 = vpop.f32.mrb[0].mxu0
      %1527 = vdwg.mxu0
      %v1528 = vadd.f32 %v1234, %v1402
      %v1529 = vadd.f32 %v1235, %v1405
      %v1530 = vadd.f32 %v1236, %v1410
      %v1531 = vadd.f32 %v1237, %v1413
      %v1532 = vadd.f32 %v1238, %v1418
      %v1533 = vadd.f32 %v1239, %v1421
      %v1534 = vadd.f32 %v1240, %v1426
      %v1535 = vadd.f32 %v1241, %v1429
      %v1536 = vadd.f32 %v1242, %v1434
      %v1537 = vadd.f32 %v1243, %v1437
      %v1538 = vadd.f32 %v1244, %v1442
      %v1539 = vadd.f32 %v1245, %v1445
      %v1540 = vadd.f32 %v1246, %v1450
      %v1541 = vadd.f32 %v1247, %v1453
      %v1542 = vadd.f32 %v1248, %v1458
      %v1543 = vadd.f32 %v1249, %v1461
      %v1544 = vadd.f32 %v1250, %v1466
      %v1545 = vadd.f32 %v1251, %v1469
      %v1546 = vadd.f32 %v1252, %v1474
      %v1547 = vadd.f32 %v1253, %v1477
      %v1548 = vadd.f32 %v1254, %v1482
      %v1549 = vadd.f32 %v1255, %v1485
      %v1550 = vadd.f32 %v1256, %v1490
      %v1551 = vadd.f32 %v1257, %v1493
      %v1552 = vadd.f32 %v1258, %v1498
      %v1553 = vadd.f32 %v1259, %v1501
      %v1554 = vadd.f32 %v1260, %v1506
      %v1555 = vadd.f32 %v1261, %v1509
      %v1556 = vadd.f32 %v1262, %v1514
      %v1557 = vadd.f32 %v1263, %v1517
      %v1558 = vadd.f32 %v1264, %v1522
      %v1559 = vadd.f32 %v1265, %v1525
      %1560 = vst.msk [vmem:[#allocation3] sm:$0xff] %vm432, %v1528
      %1561 = vst.msk [vmem:[#allocation3 + $0x8] sm:$0xff] %vm432, %v1529
      %1562 = vst.msk [vmem:[#allocation3 + $0x10] sm:$0xff] %vm432, %v1530
      %1563 = vst.msk [vmem:[#allocation3 + $0x18] sm:$0xff] %vm432, %v1531
      %1564 = vst.msk [vmem:[#allocation3 + $0x20] sm:$0xff] %vm432, %v1532
      %1565 = vst.msk [vmem:[#allocation3 + $0x28] sm:$0xff] %vm432, %v1533
      %1566 = vst.msk [vmem:[#allocation3 + $0x30] sm:$0xff] %vm432, %v1534
      %1567 = vst.msk [vmem:[#allocation3 + $0x38] sm:$0xff] %vm432, %v1535
      %1568 = vst.msk [vmem:[#allocation3 + $0x40] sm:$0xff] %vm432, %v1536
      %1569 = vst.msk [vmem:[#allocation3 + $0x48] sm:$0xff] %vm432, %v1537
      %1570 = vst.msk [vmem:[#allocation3 + $0x50] sm:$0xff] %vm432, %v1538
      %1571 = vst.msk [vmem:[#allocation3 + $0x58] sm:$0xff] %vm432, %v1539
      %1572 = vst.msk [vmem:[#allocation3 + $0x60] sm:$0xff] %vm432, %v1540
      %1573 = vst.msk [vmem:[#allocation3 + $0x68] sm:$0xff] %vm432, %v1541
      %1574 = vst.msk [vmem:[#allocation3 + $0x70] sm:$0xff] %vm432, %v1542
      %1575 = vst.msk [vmem:[#allocation3 + $0x78] sm:$0xff] %vm432, %v1543
      %1576 = vst.msk [vmem:[#allocation3 + $0x80] sm:$0xff] %vm432, %v1544
      %1577 = vst.msk [vmem:[#allocation3 + $0x88] sm:$0xff] %vm432, %v1545
      %1578 = vst.msk [vmem:[#allocation3 + $0x90] sm:$0xff] %vm432, %v1546
      %1579 = vst.msk [vmem:[#allocation3 + $0x98] sm:$0xff] %vm432, %v1547
      %1580 = vst.msk [vmem:[#allocation3 + $0xa0] sm:$0xff] %vm432, %v1548
      %1581 = vst.msk [vmem:[#allocation3 + $0xa8] sm:$0xff] %vm432, %v1549
      %1582 = vst.msk [vmem:[#allocation3 + $0xb0] sm:$0xff] %vm432, %v1550
      %1583 = vst.msk [vmem:[#allocation3 + $0xb8] sm:$0xff] %vm432, %v1551
      %1584 = vst.msk [vmem:[#allocation3 + $0xc0] sm:$0xff] %vm432, %v1552
      %1585 = vst.msk [vmem:[#allocation3 + $0xc8] sm:$0xff] %vm432, %v1553
      %1586 = vst.msk [vmem:[#allocation3 + $0xd0] sm:$0xff] %vm432, %v1554
      %1587 = vst.msk [vmem:[#allocation3 + $0xd8] sm:$0xff] %vm432, %v1555
      %1588 = vst.msk [vmem:[#allocation3 + $0xe0] sm:$0xff] %vm432, %v1556
      %1589 = vst.msk [vmem:[#allocation3 + $0xe8] sm:$0xff] %vm432, %v1557
      %1590 = vst.msk [vmem:[#allocation3 + $0xf0] sm:$0xff] %vm432, %v1558
      %1591 = vst.msk [vmem:[#allocation3 + $0xf8] sm:$0xff] %vm432, %v1559
      %vm1596 = vcmask 1042432
      %vm1597 = vcmask 1046532
      %vm1598 = vmor %vm1596, %vm1597
      %v1599 = vrot.slane %v465, 5
      %v1600 = vrot.slane %v1599, 4
      %v1601 = vrot.slane %v466, 5
      %v1602 = vsel %vm1598, %v1600, %v1601
      %v1603 = vrot.slane %v1601, 4
      %v1604 = vrot.slane %v467, 5
      %v1605 = vsel %vm1598, %v1603, %v1604
      %v1606 = vrot.slane %v1604, 4
      %v1607 = vrot.slane %v468, 5
      %v1608 = vsel %vm1598, %v1606, %v1607
      %v1609 = vrot.slane %v1607, 4
      %v1610 = vrot.slane %v469, 5
      %v1611 = vsel %vm1598, %v1609, %v1610
      %v1612 = vrot.slane %v1610, 4
      %v1613 = vrot.slane %v470, 5
      %v1614 = vsel %vm1598, %v1612, %v1613
      %v1615 = vrot.slane %v1613, 4
      %v1616 = vrot.slane %v471, 5
      %v1617 = vsel %vm1598, %v1615, %v1616
      %v1618 = vrot.slane %v1616, 4
      %v1619 = vrot.slane %v472, 5
      %v1620 = vsel %vm1598, %v1618, %v1619
      %v1621 = vrot.slane %v1619, 4
      %v1622 = vrot.slane %v473, 5
      %v1623 = vsel %vm1598, %v1621, %v1622
      %v1624 = vrot.slane %v474, 5
      %v1625 = vrot.slane %v1624, 4
      %v1626 = vrot.slane %v475, 5
      %v1627 = vsel %vm1598, %v1625, %v1626
      %v1628 = vrot.slane %v1626, 4
      %v1629 = vrot.slane %v476, 5
      %v1630 = vsel %vm1598, %v1628, %v1629
      %v1631 = vrot.slane %v1629, 4
      %v1632 = vrot.slane %v477, 5
      %v1633 = vsel %vm1598, %v1631, %v1632
      %v1634 = vrot.slane %v1632, 4
      %v1635 = vrot.slane %v478, 5
      %v1636 = vsel %vm1598, %v1634, %v1635
      %v1637 = vrot.slane %v1635, 4
      %v1638 = vrot.slane %v479, 5
      %v1639 = vsel %vm1598, %v1637, %v1638
      %v1640 = vrot.slane %v1638, 4
      %v1641 = vrot.slane %v480, 5
      %v1642 = vsel %vm1598, %v1640, %v1641
      %v1643 = vrot.slane %v1641, 4
      %v1644 = vrot.slane %v481, 5
      %v1645 = vsel %vm1598, %v1643, %v1644
      %v1646 = vrot.slane %v1644, 4
      %v1647 = vrot.slane %v482, 5
      %v1648 = vsel %vm1598, %v1646, %v1647
      %v1649 = vrot.slane %v483, 5
      %v1650 = vrot.slane %v1649, 4
      %v1651 = vrot.slane %v484, 5
      %v1652 = vsel %vm1598, %v1650, %v1651
      %v1653 = vrot.slane %v1651, 4
      %v1654 = vrot.slane %v485, 5
      %v1655 = vsel %vm1598, %v1653, %v1654
      %v1656 = vrot.slane %v1654, 4
      %v1657 = vrot.slane %v486, 5
      %v1658 = vsel %vm1598, %v1656, %v1657
      %v1659 = vrot.slane %v1657, 4
      %v1660 = vrot.slane %v487, 5
      %v1661 = vsel %vm1598, %v1659, %v1660
      %v1662 = vrot.slane %v1660, 4
      %v1663 = vrot.slane %v488, 5
      %v1664 = vsel %vm1598, %v1662, %v1663
      %v1665 = vrot.slane %v1663, 4
      %v1666 = vrot.slane %v489, 5
      %v1667 = vsel %vm1598, %v1665, %v1666
      %v1668 = vrot.slane %v1666, 4
      %v1669 = vrot.slane %v490, 5
      %v1670 = vsel %vm1598, %v1668, %v1669
      %v1671 = vrot.slane %v1669, 4
      %v1672 = vrot.slane %v491, 5
      %v1673 = vsel %vm1598, %v1671, %v1672
      %v1674 = vrot.slane %v492, 5
      %v1675 = vrot.slane %v1674, 4
      %v1676 = vrot.slane %v493, 5
      %v1677 = vsel %vm1598, %v1675, %v1676
      %v1678 = vrot.slane %v1676, 4
      %v1679 = vrot.slane %v494, 5
      %v1680 = vsel %vm1598, %v1678, %v1679
      %v1681 = vrot.slane %v1679, 4
      %v1682 = vrot.slane %v495, 5
      %v1683 = vsel %vm1598, %v1681, %v1682
      %v1684 = vrot.slane %v1682, 4
      %v1685 = vrot.slane %v496, 5
      %v1686 = vsel %vm1598, %v1684, %v1685
      %v1687 = vrot.slane %v1685, 4
      %v1688 = vrot.slane %v497, 5
      %v1689 = vsel %vm1598, %v1687, %v1688
      %v1690 = vrot.slane %v1688, 4
      %v1691 = vrot.slane %v498, 5
      %v1692 = vsel %vm1598, %v1690, %v1691
      %v1693 = vrot.slane %v1691, 4
      %v1694 = vrot.slane %v499, 5
      %v1695 = vsel %vm1598, %v1693, %v1694
      %v1696 = vrot.slane %v1694, 4
      %v1697 = vrot.slane %v500, 5
      %v1698 = vsel %vm1598, %v1696, %v1697
      %v1699 = vld [vmem:[#allocation3] sm:$0xff]
      %v1700 = vld [vmem:[#allocation3 + $0x8] sm:$0xff]
      %v1701 = vld [vmem:[#allocation3 + $0x10] sm:$0xff]
      %v1702 = vld [vmem:[#allocation3 + $0x18] sm:$0xff]
      %v1703 = vld [vmem:[#allocation3 + $0x20] sm:$0xff]
      %v1704 = vld [vmem:[#allocation3 + $0x28] sm:$0xff]
      %v1705 = vld [vmem:[#allocation3 + $0x30] sm:$0xff]
      %v1706 = vld [vmem:[#allocation3 + $0x38] sm:$0xff]
      %v1707 = vld [vmem:[#allocation3 + $0x40] sm:$0xff]
      %v1708 = vld [vmem:[#allocation3 + $0x48] sm:$0xff]
      %v1709 = vld [vmem:[#allocation3 + $0x50] sm:$0xff]
      %v1710 = vld [vmem:[#allocation3 + $0x58] sm:$0xff]
      %v1711 = vld [vmem:[#allocation3 + $0x60] sm:$0xff]
      %v1712 = vld [vmem:[#allocation3 + $0x68] sm:$0xff]
      %v1713 = vld [vmem:[#allocation3 + $0x70] sm:$0xff]
      %v1714 = vld [vmem:[#allocation3 + $0x78] sm:$0xff]
      %v1715 = vld [vmem:[#allocation3 + $0x80] sm:$0xff]
      %v1716 = vld [vmem:[#allocation3 + $0x88] sm:$0xff]
      %v1717 = vld [vmem:[#allocation3 + $0x90] sm:$0xff]
      %v1718 = vld [vmem:[#allocation3 + $0x98] sm:$0xff]
      %v1719 = vld [vmem:[#allocation3 + $0xa0] sm:$0xff]
      %v1720 = vld [vmem:[#allocation3 + $0xa8] sm:$0xff]
      %v1721 = vld [vmem:[#allocation3 + $0xb0] sm:$0xff]
      %v1722 = vld [vmem:[#allocation3 + $0xb8] sm:$0xff]
      %v1723 = vld [vmem:[#allocation3 + $0xc0] sm:$0xff]
      %v1724 = vld [vmem:[#allocation3 + $0xc8] sm:$0xff]
      %v1725 = vld [vmem:[#allocation3 + $0xd0] sm:$0xff]
      %v1726 = vld [vmem:[#allocation3 + $0xd8] sm:$0xff]
      %v1727 = vld [vmem:[#allocation3 + $0xe0] sm:$0xff]
      %v1728 = vld [vmem:[#allocation3 + $0xe8] sm:$0xff]
      %v1729 = vld [vmem:[#allocation3 + $0xf0] sm:$0xff]
      %v1730 = vld [vmem:[#allocation3 + $0xf8] sm:$0xff]
      %s1731 = scalar_lea.vmem %s2, 4
      %v1732 = vld [vmem:[%s1731] sm:$0x3]
      %v1733 = vunpack.c.l.b16 %v1602
      %v1734 = vunpack.c.l.b16 %v1605
      %v1735 = vunpack.c.l.b16 %v1608
      %v1736 = vunpack.c.l.b16 %v1611
      %v1737 = vunpack.c.l.b16 %v1614
      %v1738 = vunpack.c.l.b16 %v1617
      %v1739 = vunpack.c.l.b16 %v1620
      %v1740 = vunpack.c.l.b16 %v1623
      %v1741 = vunpack.c.l.b16 %v1627
      %v1742 = vunpack.c.l.b16 %v1630
      %v1743 = vunpack.c.l.b16 %v1633
      %v1744 = vunpack.c.l.b16 %v1636
      %v1745 = vunpack.c.l.b16 %v1639
      %v1746 = vunpack.c.l.b16 %v1642
      %v1747 = vunpack.c.l.b16 %v1645
      %v1748 = vunpack.c.l.b16 %v1648
      %v1749 = vunpack.c.l.b16 %v1652
      %v1750 = vunpack.c.l.b16 %v1655
      %v1751 = vunpack.c.l.b16 %v1658
      %v1752 = vunpack.c.l.b16 %v1661
      %v1753 = vunpack.c.l.b16 %v1664
      %v1754 = vunpack.c.l.b16 %v1667
      %v1755 = vunpack.c.l.b16 %v1670
      %v1756 = vunpack.c.l.b16 %v1673
      %v1757 = vunpack.c.l.b16 %v1677
      %v1758 = vunpack.c.l.b16 %v1680
      %v1759 = vunpack.c.l.b16 %v1683
      %v1760 = vunpack.c.l.b16 %v1686
      %v1761 = vunpack.c.l.b16 %v1689
      %v1762 = vunpack.c.l.b16 %v1692
      %v1763 = vunpack.c.l.b16 %v1695
      %v1764 = vunpack.c.l.b16 %v1698
      %v1765 = vpack.c.b16 %v1734, %v1733
      %v1766 = vpack.c.b16 %v1736, %v1735
      %v1767 = vpack.c.b16 %v1738, %v1737
      %v1768 = vpack.c.b16 %v1740, %v1739
      %v1769 = vpack.c.b16 %v1742, %v1741
      %v1770 = vpack.c.b16 %v1744, %v1743
      %v1771 = vpack.c.b16 %v1746, %v1745
      %v1772 = vpack.c.b16 %v1748, %v1747
      %v1773 = vpack.c.b16 %v1750, %v1749
      %v1774 = vpack.c.b16 %v1752, %v1751
      %v1775 = vpack.c.b16 %v1754, %v1753
      %v1776 = vpack.c.b16 %v1756, %v1755
      %v1777 = vpack.c.b16 %v1758, %v1757
      %v1778 = vpack.c.b16 %v1760, %v1759
      %v1779 = vpack.c.b16 %v1762, %v1761
      %v1780 = vpack.c.b16 %v1764, %v1763
      %v1782 = vsel %vm614, %v1765, 0
      %v1785 = vsel %vm614, %v1766, 0
      %v1788 = vsel %vm614, %v1767, 0
      %v1791 = vsel %vm614, %v1768, 0
      %v1794 = vsel %vm614, %v1769, 0
      %v1797 = vsel %vm614, %v1770, 0
      %v1800 = vsel %vm614, %v1771, 0
      %v1803 = vsel %vm614, %v1772, 0
      %v1806 = vsel %vm614, %v1773, 0
      %v1809 = vsel %vm614, %v1774, 0
      %v1812 = vsel %vm614, %v1775, 0
      %v1815 = vsel %vm614, %v1776, 0
      %v1818 = vsel %vm614, %v1777, 0
      %v1821 = vsel %vm614, %v1778, 0
      %v1824 = vsel %vm614, %v1779, 0
      %v1827 = vsel %vm614, %v1780, 0
      %v1830 = vand.u32 %v1732, %v666
      %1832 = vmatprep.subr.bf16.mxu0 0
      %1833 = vmatpush1.bf16.msra.mxu0 %v1830
      %1834 = vmatprep.subr.bf16.mxu0 0
      %1835 = vmatpush1.bf16.msra.mxu0 0
      %1836 = vmatprep.subr.bf16.mxu0 0
      %1837 = vmatpush1.bf16.msra.mxu0 0
      %1838 = vmatprep.subr.bf16.mxu0 0
      %1839 = vmatpush1.bf16.msra.mxu0 0
      %1840 = vmatprep.subr.bf16.mxu0 0
      %1841 = vmatpush1.bf16.msra.mxu0 0
      %1842 = vmatprep.subr.bf16.mxu0 0
      %1843 = vmatpush1.bf16.msra.mxu0 0
      %1844 = vmatprep.subr.bf16.mxu0 0
      %1845 = vmatpush1.bf16.msra.mxu0 0
      %1846 = vmatprep.subr.bf16.mxu0 0
      %1847 = vmatpush1.bf16.msra.mxu0 0
      %1848 = vmatprep.subr.bf16.mxu0 0
      %1849 = vmatpush1.bf16.msra.mxu0 0
      %1850 = vmatprep.subr.bf16.mxu0 0
      %1851 = vmatpush1.bf16.msra.mxu0 0
      %1852 = vmatprep.subr.bf16.mxu0 0
      %1853 = vmatpush1.bf16.msra.mxu0 0
      %1854 = vmatprep.subr.bf16.mxu0 0
      %1855 = vmatpush1.bf16.msra.mxu0 0
      %1856 = vmatprep.subr.bf16.mxu0 0
      %1857 = vmatpush1.bf16.msra.mxu0 0
      %1858 = vmatprep.subr.bf16.mxu0 0
      %1859 = vmatpush1.bf16.msra.mxu0 0
      %1860 = vmatprep.subr.bf16.mxu0 0
      %1861 = vmatpush1.bf16.msra.mxu0 0
      %1862 = vmatprep.subr.bf16.mxu0 0
      %1863 = vmatpush1.bf16.msra.mxu0 0
      %1864 = vmatprep.mubr.bf16.mxu0 0
      %1865 = vmatmul.mubr.bf16.gmra.mrb[0].mxu0 %v1782
      %v1866 = vpop.f32.mrb[0].mxu0
      %v1867 = vadd.f32 0.0, %v1866
      %v1868 = vpop.f32.mrb[0].mxu0
      %v1869 = vpop.f32.mrb[0].mxu0
      %v1870 = vadd.f32 0.0, %v1869
      %v1871 = vpop.f32.mrb[0].mxu0
      %1872 = vmatprep.mubr.bf16.mxu0 0
      %1873 = vmatmul.mubr.bf16.gmra.mrb[0].mxu0 %v1785
      %v1874 = vpop.f32.mrb[0].mxu0
      %v1875 = vadd.f32 0.0, %v1874
      %v1876 = vpop.f32.mrb[0].mxu0
      %v1877 = vpop.f32.mrb[0].mxu0
      %v1878 = vadd.f32 0.0, %v1877
      %v1879 = vpop.f32.mrb[0].mxu0
      %1880 = vmatprep.mubr.bf16.mxu0 0
      %1881 = vmatmul.mubr.bf16.gmra.mrb[0].mxu0 %v1788
      %v1882 = vpop.f32.mrb[0].mxu0
      %v1883 = vadd.f32 0.0, %v1882
      %v1884 = vpop.f32.mrb[0].mxu0
      %v1885 = vpop.f32.mrb[0].mxu0
      %v1886 = vadd.f32 0.0, %v1885
      %v1887 = vpop.f32.mrb[0].mxu0
      %1888 = vmatprep.mubr.bf16.mxu0 0
      %1889 = vmatmul.mubr.bf16.gmra.mrb[0].mxu0 %v1791
      %v1890 = vpop.f32.mrb[0].mxu0
      %v1891 = vadd.f32 0.0, %v1890
      %v1892 = vpop.f32.mrb[0].mxu0
      %v1893 = vpop.f32.mrb[0].mxu0
      %v1894 = vadd.f32 0.0, %v1893
      %v1895 = vpop.f32.mrb[0].mxu0
      %1896 = vmatprep.mubr.bf16.mxu0 0
      %1897 = vmatmul.mubr.bf16.gmra.mrb[0].mxu0 %v1794
      %v1898 = vpop.f32.mrb[0].mxu0
      %v1899 = vadd.f32 0.0, %v1898
      %v1900 = vpop.f32.mrb[0].mxu0
      %v1901 = vpop.f32.mrb[0].mxu0
      %v1902 = vadd.f32 0.0, %v1901
      %v1903 = vpop.f32.mrb[0].mxu0
      %1904 = vmatprep.mubr.bf16.mxu0 0
      %1905 = vmatmul.mubr.bf16.gmra.mrb[0].mxu0 %v1797
      %v1906 = vpop.f32.mrb[0].mxu0
      %v1907 = vadd.f32 0.0, %v1906
      %v1908 = vpop.f32.mrb[0].mxu0
      %v1909 = vpop.f32.mrb[0].mxu0
      %v1910 = vadd.f32 0.0, %v1909
      %v1911 = vpop.f32.mrb[0].mxu0
      %1912 = vmatprep.mubr.bf16.mxu0 0
      %1913 = vmatmul.mubr.bf16.gmra.mrb[0].mxu0 %v1800
      %v1914 = vpop.f32.mrb[0].mxu0
      %v1915 = vadd.f32 0.0, %v1914
      %v1916 = vpop.f32.mrb[0].mxu0
      %v1917 = vpop.f32.mrb[0].mxu0
      %v1918 = vadd.f32 0.0, %v1917
      %v1919 = vpop.f32.mrb[0].mxu0
      %1920 = vmatprep.mubr.bf16.mxu0 0
      %1921 = vmatmul.mubr.bf16.gmra.mrb[0].mxu0 %v1803
      %v1922 = vpop.f32.mrb[0].mxu0
      %v1923 = vadd.f32 0.0, %v1922
      %v1924 = vpop.f32.mrb[0].mxu0
      %v1925 = vpop.f32.mrb[0].mxu0
      %v1926 = vadd.f32 0.0, %v1925
      %v1927 = vpop.f32.mrb[0].mxu0
      %1928 = vmatprep.mubr.bf16.mxu0 0
      %1929 = vmatmul.mubr.bf16.gmra.mrb[0].mxu0 %v1806
      %v1930 = vpop.f32.mrb[0].mxu0
      %v1931 = vadd.f32 0.0, %v1930
      %v1932 = vpop.f32.mrb[0].mxu0
      %v1933 = vpop.f32.mrb[0].mxu0
      %v1934 = vadd.f32 0.0, %v1933
      %v1935 = vpop.f32.mrb[0].mxu0
      %1936 = vmatprep.mubr.bf16.mxu0 0
      %1937 = vmatmul.mubr.bf16.gmra.mrb[0].mxu0 %v1809
      %v1938 = vpop.f32.mrb[0].mxu0
      %v1939 = vadd.f32 0.0, %v1938
      %v1940 = vpop.f32.mrb[0].mxu0
      %v1941 = vpop.f32.mrb[0].mxu0
      %v1942 = vadd.f32 0.0, %v1941
      %v1943 = vpop.f32.mrb[0].mxu0
      %1944 = vmatprep.mubr.bf16.mxu0 0
      %1945 = vmatmul.mubr.bf16.gmra.mrb[0].mxu0 %v1812
      %v1946 = vpop.f32.mrb[0].mxu0
      %v1947 = vadd.f32 0.0, %v1946
      %v1948 = vpop.f32.mrb[0].mxu0
      %v1949 = vpop.f32.mrb[0].mxu0
      %v1950 = vadd.f32 0.0, %v1949
      %v1951 = vpop.f32.mrb[0].mxu0
      %1952 = vmatprep.mubr.bf16.mxu0 0
      %1953 = vmatmul.mubr.bf16.gmra.mrb[0].mxu0 %v1815
      %v1954 = vpop.f32.mrb[0].mxu0
      %v1955 = vadd.f32 0.0, %v1954
      %v1956 = vpop.f32.mrb[0].mxu0
      %v1957 = vpop.f32.mrb[0].mxu0
      %v1958 = vadd.f32 0.0, %v1957
      %v1959 = vpop.f32.mrb[0].mxu0
      %1960 = vmatprep.mubr.bf16.mxu0 0
      %1961 = vmatmul.mubr.bf16.gmra.mrb[0].mxu0 %v1818
      %v1962 = vpop.f32.mrb[0].mxu0
      %v1963 = vadd.f32 0.0, %v1962
      %v1964 = vpop.f32.mrb[0].mxu0
      %v1965 = vpop.f32.mrb[0].mxu0
      %v1966 = vadd.f32 0.0, %v1965
      %v1967 = vpop.f32.mrb[0].mxu0
      %1968 = vmatprep.mubr.bf16.mxu0 0
      %1969 = vmatmul.mubr.bf16.gmra.mrb[0].mxu0 %v1821
      %v1970 = vpop.f32.mrb[0].mxu0
      %v1971 = vadd.f32 0.0, %v1970
      %v1972 = vpop.f32.mrb[0].mxu0
      %v1973 = vpop.f32.mrb[0].mxu0
      %v1974 = vadd.f32 0.0, %v1973
      %v1975 = vpop.f32.mrb[0].mxu0
      %1976 = vmatprep.mubr.bf16.mxu0 0
      %1977 = vmatmul.mubr.bf16.gmra.mrb[0].mxu0 %v1824
      %v1978 = vpop.f32.mrb[0].mxu0
      %v1979 = vadd.f32 0.0, %v1978
      %v1980 = vpop.f32.mrb[0].mxu0
      %v1981 = vpop.f32.mrb[0].mxu0
      %v1982 = vadd.f32 0.0, %v1981
      %v1983 = vpop.f32.mrb[0].mxu0
      %1984 = vmatprep.mubr.bf16.mxu0 0
      %1985 = vmatmul.mubr.bf16.gmra.mrb[0].mxu0 %v1827
      %v1986 = vpop.f32.mrb[0].mxu0
      %v1987 = vadd.f32 0.0, %v1986
      %v1988 = vpop.f32.mrb[0].mxu0
      %v1989 = vpop.f32.mrb[0].mxu0
      %v1990 = vadd.f32 0.0, %v1989
      %v1991 = vpop.f32.mrb[0].mxu0
      %1992 = vdwg.mxu0
      %v1993 = vadd.f32 %v1699, %v1867
      %v1994 = vadd.f32 %v1700, %v1870
      %v1995 = vadd.f32 %v1701, %v1875
      %v1996 = vadd.f32 %v1702, %v1878
      %v1997 = vadd.f32 %v1703, %v1883
      %v1998 = vadd.f32 %v1704, %v1886
      %v1999 = vadd.f32 %v1705, %v1891
      %v2000 = vadd.f32 %v1706, %v1894
      %v2001 = vadd.f32 %v1707, %v1899
      %v2002 = vadd.f32 %v1708, %v1902
      %v2003 = vadd.f32 %v1709, %v1907
      %v2004 = vadd.f32 %v1710, %v1910
      %v2005 = vadd.f32 %v1711, %v1915
      %v2006 = vadd.f32 %v1712, %v1918
      %v2007 = vadd.f32 %v1713, %v1923
      %v2008 = vadd.f32 %v1714, %v1926
      %v2009 = vadd.f32 %v1715, %v1931
      %v2010 = vadd.f32 %v1716, %v1934
      %v2011 = vadd.f32 %v1717, %v1939
      %v2012 = vadd.f32 %v1718, %v1942
      %v2013 = vadd.f32 %v1719, %v1947
      %v2014 = vadd.f32 %v1720, %v1950
      %v2015 = vadd.f32 %v1721, %v1955
      %v2016 = vadd.f32 %v1722, %v1958
      %v2017 = vadd.f32 %v1723, %v1963
      %v2018 = vadd.f32 %v1724, %v1966
      %v2019 = vadd.f32 %v1725, %v1971
      %v2020 = vadd.f32 %v1726, %v1974
      %v2021 = vadd.f32 %v1727, %v1979
      %v2022 = vadd.f32 %v1728, %v1982
      %v2023 = vadd.f32 %v1729, %v1987
      %v2024 = vadd.f32 %v1730, %v1990
      %2025 = vst.msk [vmem:[#allocation3] sm:$0xff] %vm432, %v1993
      %2026 = vst.msk [vmem:[#allocation3 + $0x8] sm:$0xff] %vm432, %v1994
      %2027 = vst.msk [vmem:[#allocation3 + $0x10] sm:$0xff] %vm432, %v1995
      %2028 = vst.msk [vmem:[#allocation3 + $0x18] sm:$0xff] %vm432, %v1996
      %2029 = vst.msk [vmem:[#allocation3 + $0x20] sm:$0xff] %vm432, %v1997
      %2030 = vst.msk [vmem:[#allocation3 + $0x28] sm:$0xff] %vm432, %v1998
      %2031 = vst.msk [vmem:[#allocation3 + $0x30] sm:$0xff] %vm432, %v1999
      %2032 = vst.msk [vmem:[#allocation3 + $0x38] sm:$0xff] %vm432, %v2000
      %2033 = vst.msk [vmem:[#allocation3 + $0x40] sm:$0xff] %vm432, %v2001
      %2034 = vst.msk [vmem:[#allocation3 + $0x48] sm:$0xff] %vm432, %v2002
      %2035 = vst.msk [vmem:[#allocation3 + $0x50] sm:$0xff] %vm432, %v2003
      %2036 = vst.msk [vmem:[#allocation3 + $0x58] sm:$0xff] %vm432, %v2004
      %2037 = vst.msk [vmem:[#allocation3 + $0x60] sm:$0xff] %vm432, %v2005
      %2038 = vst.msk [vmem:[#allocation3 + $0x68] sm:$0xff] %vm432, %v2006
      %2039 = vst.msk [vmem:[#allocation3 + $0x70] sm:$0xff] %vm432, %v2007
      %2040 = vst.msk [vmem:[#allocation3 + $0x78] sm:$0xff] %vm432, %v2008
      %2041 = vst.msk [vmem:[#allocation3 + $0x80] sm:$0xff] %vm432, %v2009
      %2042 = vst.msk [vmem:[#allocation3 + $0x88] sm:$0xff] %vm432, %v2010
      %2043 = vst.msk [vmem:[#allocation3 + $0x90] sm:$0xff] %vm432, %v2011
      %2044 = vst.msk [vmem:[#allocation3 + $0x98] sm:$0xff] %vm432, %v2012
      %2045 = vst.msk [vmem:[#allocation3 + $0xa0] sm:$0xff] %vm432, %v2013
      %2046 = vst.msk [vmem:[#allocation3 + $0xa8] sm:$0xff] %vm432, %v2014
      %2047 = vst.msk [vmem:[#allocation3 + $0xb0] sm:$0xff] %vm432, %v2015
      %2048 = vst.msk [vmem:[#allocation3 + $0xb8] sm:$0xff] %vm432, %v2016
      %2049 = vst.msk [vmem:[#allocation3 + $0xc0] sm:$0xff] %vm432, %v2017
      %2050 = vst.msk [vmem:[#allocation3 + $0xc8] sm:$0xff] %vm432, %v2018
      %2051 = vst.msk [vmem:[#allocation3 + $0xd0] sm:$0xff] %vm432, %v2019
      %2052 = vst.msk [vmem:[#allocation3 + $0xd8] sm:$0xff] %vm432, %v2020
      %2053 = vst.msk [vmem:[#allocation3 + $0xe0] sm:$0xff] %vm432, %v2021
      %2054 = vst.msk [vmem:[#allocation3 + $0xe8] sm:$0xff] %vm432, %v2022
      %2055 = vst.msk [vmem:[#allocation3 + $0xf0] sm:$0xff] %vm432, %v2023
      %2056 = vst.msk [vmem:[#allocation3 + $0xf8] sm:$0xff] %vm432, %v2024
      %s2057 = scalar_lea.vmem [#allocation2], 36
      %v2058 = vld [vmem:[%s2057] sm:$0xf]
      %v2059 = vld [vmem:[%s2057 + $0x4] sm:$0xf]
      %v2060 = vld [vmem:[%s2057 + $0x8] sm:$0xf]
      %v2061 = vld [vmem:[%s2057 + $0xc] sm:$0xf]
      %v2062 = vld [vmem:[%s2057 + $0x10] sm:$0xf]
      %v2063 = vld [vmem:[%s2057 + $0x14] sm:$0xf]
      %v2064 = vld [vmem:[%s2057 + $0x18] sm:$0xf]
      %v2065 = vld [vmem:[%s2057 + $0x1c] sm:$0xf]
      %v2066 = vld [vmem:[%s2057 + $0x20] sm:$0x1]
      %v2067 = vld [vmem:[%s2057 + $0x24] sm:$0xf]
      %v2068 = vld [vmem:[%s2057 + $0x28] sm:$0xf]
      %v2069 = vld [vmem:[%s2057 + $0x2c] sm:$0xf]
      %v2070 = vld [vmem:[%s2057 + $0x30] sm:$0xf]
      %v2071 = vld [vmem:[%s2057 + $0x34] sm:$0xf]
      %v2072 = vld [vmem:[%s2057 + $0x38] sm:$0xf]
      %v2073 = vld [vmem:[%s2057 + $0x3c] sm:$0xf]
      %v2074 = vld [vmem:[%s2057 + $0x40] sm:$0xf]
      %v2075 = vld [vmem:[%s2057 + $0x44] sm:$0x1]
      %v2076 = vld [vmem:[%s2057 + $0x48] sm:$0xf]
      %v2077 = vld [vmem:[%s2057 + $0x4c] sm:$0xf]
      %v2078 = vld [vmem:[%s2057 + $0x50] sm:$0xf]
      %v2079 = vld [vmem:[%s2057 + $0x54] sm:$0xf]
      %v2080 = vld [vmem:[%s2057 + $0x58] sm:$0xf]
      %v2081 = vld [vmem:[%s2057 + $0x5c] sm:$0xf]
      %v2082 = vld [vmem:[%s2057 + $0x60] sm:$0xf]
      %v2083 = vld [vmem:[%s2057 + $0x64] sm:$0xf]
      %v2084 = vld [vmem:[%s2057 + $0x68] sm:$0x1]
      %v2085 = vld [vmem:[%s2057 + $0x6c] sm:$0xf]
      %v2086 = vld [vmem:[%s2057 + $0x70] sm:$0xf]
      %v2087 = vld [vmem:[%s2057 + $0x74] sm:$0xf]
      %v2088 = vld [vmem:[%s2057 + $0x78] sm:$0xf]
      %v2089 = vld [vmem:[%s2057 + $0x7c] sm:$0xf]
      %v2090 = vld [vmem:[%s2057 + $0x80] sm:$0xf]
      %v2091 = vld [vmem:[%s2057 + $0x84] sm:$0xf]
      %v2092 = vld [vmem:[%s2057 + $0x88] sm:$0xf]
      %v2093 = vld [vmem:[%s2057 + $0x8c] sm:$0x1]
      %v2094 = vld [vmem:[#allocation3] sm:$0xff]
      %v2095 = vld [vmem:[#allocation3 + $0x8] sm:$0xff]
      %v2096 = vld [vmem:[#allocation3 + $0x10] sm:$0xff]
      %v2097 = vld [vmem:[#allocation3 + $0x18] sm:$0xff]
      %v2098 = vld [vmem:[#allocation3 + $0x20] sm:$0xff]
      %v2099 = vld [vmem:[#allocation3 + $0x28] sm:$0xff]
      %v2100 = vld [vmem:[#allocation3 + $0x30] sm:$0xff]
      %v2101 = vld [vmem:[#allocation3 + $0x38] sm:$0xff]
      %v2102 = vld [vmem:[#allocation3 + $0x40] sm:$0xff]
      %v2103 = vld [vmem:[#allocation3 + $0x48] sm:$0xff]
      %v2104 = vld [vmem:[#allocation3 + $0x50] sm:$0xff]
      %v2105 = vld [vmem:[#allocation3 + $0x58] sm:$0xff]
      %v2106 = vld [vmem:[#allocation3 + $0x60] sm:$0xff]
      %v2107 = vld [vmem:[#allocation3 + $0x68] sm:$0xff]
      %v2108 = vld [vmem:[#allocation3 + $0x70] sm:$0xff]
      %v2109 = vld [vmem:[#allocation3 + $0x78] sm:$0xff]
      %v2110 = vld [vmem:[#allocation3 + $0x80] sm:$0xff]
      %v2111 = vld [vmem:[#allocation3 + $0x88] sm:$0xff]
      %v2112 = vld [vmem:[#allocation3 + $0x90] sm:$0xff]
      %v2113 = vld [vmem:[#allocation3 + $0x98] sm:$0xff]
      %v2114 = vld [vmem:[#allocation3 + $0xa0] sm:$0xff]
      %v2115 = vld [vmem:[#allocation3 + $0xa8] sm:$0xff]
      %v2116 = vld [vmem:[#allocation3 + $0xb0] sm:$0xff]
      %v2117 = vld [vmem:[#allocation3 + $0xb8] sm:$0xff]
      %v2118 = vld [vmem:[#allocation3 + $0xc0] sm:$0xff]
      %v2119 = vld [vmem:[#allocation3 + $0xc8] sm:$0xff]
      %v2120 = vld [vmem:[#allocation3 + $0xd0] sm:$0xff]
      %v2121 = vld [vmem:[#allocation3 + $0xd8] sm:$0xff]
      %v2122 = vld [vmem:[#allocation3 + $0xe0] sm:$0xff]
      %v2123 = vld [vmem:[#allocation3 + $0xe8] sm:$0xff]
      %v2124 = vld [vmem:[#allocation3 + $0xf0] sm:$0xff]
      %v2125 = vld [vmem:[#allocation3 + $0xf8] sm:$0xff]
      %s2126 = scalar_lea.vmem %s2, 6
      %v2127 = vld [vmem:[%s2126] sm:$0x3]
      %v2160 = vunpack.c.l.b16 %v2058
      %v2161 = vunpack.c.l.b16 %v2059
      %v2162 = vunpack.c.l.b16 %v2060
      %v2163 = vunpack.c.l.b16 %v2061
      %v2164 = vunpack.c.l.b16 %v2062
      %v2165 = vunpack.c.l.b16 %v2063
      %v2166 = vunpack.c.l.b16 %v2064
      %v2167 = vunpack.c.l.b16 %v2065
      %v2168 = vunpack.c.l.b16 %v2067
      %v2169 = vunpack.c.l.b16 %v2068
      %v2170 = vunpack.c.l.b16 %v2069
      %v2171 = vunpack.c.l.b16 %v2070
      %v2172 = vunpack.c.l.b16 %v2071
      %v2173 = vunpack.c.l.b16 %v2072
      %v2174 = vunpack.c.l.b16 %v2073
      %v2175 = vunpack.c.l.b16 %v2074
      %v2176 = vunpack.c.l.b16 %v2076
      %v2177 = vunpack.c.l.b16 %v2077
      %v2178 = vunpack.c.l.b16 %v2078
      %v2179 = vunpack.c.l.b16 %v2079
      %v2180 = vunpack.c.l.b16 %v2080
      %v2181 = vunpack.c.l.b16 %v2081
      %v2182 = vunpack.c.l.b16 %v2082
      %v2183 = vunpack.c.l.b16 %v2083
      %v2184 = vunpack.c.l.b16 %v2085
      %v2185 = vunpack.c.l.b16 %v2086
      %v2186 = vunpack.c.l.b16 %v2087
      %v2187 = vunpack.c.l.b16 %v2088
      %v2188 = vunpack.c.l.b16 %v2089
      %v2189 = vunpack.c.l.b16 %v2090
      %v2190 = vunpack.c.l.b16 %v2091
      %v2191 = vunpack.c.l.b16 %v2092
      %v2192 = vpack.c.b16 %v2161, %v2160
      %v2193 = vpack.c.b16 %v2163, %v2162
      %v2194 = vpack.c.b16 %v2165, %v2164
      %v2195 = vpack.c.b16 %v2167, %v2166
      %v2196 = vpack.c.b16 %v2169, %v2168
      %v2197 = vpack.c.b16 %v2171, %v2170
      %v2198 = vpack.c.b16 %v2173, %v2172
      %v2199 = vpack.c.b16 %v2175, %v2174
      %v2200 = vpack.c.b16 %v2177, %v2176
      %v2201 = vpack.c.b16 %v2179, %v2178
      %v2202 = vpack.c.b16 %v2181, %v2180
      %v2203 = vpack.c.b16 %v2183, %v2182
      %v2204 = vpack.c.b16 %v2185, %v2184
      %v2205 = vpack.c.b16 %v2187, %v2186
      %v2206 = vpack.c.b16 %v2189, %v2188
      %v2207 = vpack.c.b16 %v2191, %v2190
      %v2209 = vsel %vm614, %v2192, 0
      %v2212 = vsel %vm614, %v2193, 0
      %v2215 = vsel %vm614, %v2194, 0
      %v2218 = vsel %vm614, %v2195, 0
      %v2221 = vsel %vm614, %v2196, 0
      %v2224 = vsel %vm614, %v2197, 0
      %v2227 = vsel %vm614, %v2198, 0
      %v2230 = vsel %vm614, %v2199, 0
      %v2233 = vsel %vm614, %v2200, 0
      %v2236 = vsel %vm614, %v2201, 0
      %v2239 = vsel %vm614, %v2202, 0
      %v2242 = vsel %vm614, %v2203, 0
      %v2245 = vsel %vm614, %v2204, 0
      %v2248 = vsel %vm614, %v2205, 0
      %v2251 = vsel %vm614, %v2206, 0
      %v2254 = vsel %vm614, %v2207, 0
      %v2257 = vand.u32 %v2127, %v666
      %2259 = vmatprep.subr.bf16.mxu0 0
      %2260 = vmatpush1.bf16.msra.mxu0 %v2257
      %2261 = vmatprep.subr.bf16.mxu0 0
      %2262 = vmatpush1.bf16.msra.mxu0 0
      %2263 = vmatprep.subr.bf16.mxu0 0
      %2264 = vmatpush1.bf16.msra.mxu0 0
      %2265 = vmatprep.subr.bf16.mxu0 0
      %2266 = vmatpush1.bf16.msra.mxu0 0
      %2267 = vmatprep.subr.bf16.mxu0 0
      %2268 = vmatpush1.bf16.msra.mxu0 0
      %2269 = vmatprep.subr.bf16.mxu0 0
      %2270 = vmatpush1.bf16.msra.mxu0 0
      %2271 = vmatprep.subr.bf16.mxu0 0
      %2272 = vmatpush1.bf16.msra.mxu0 0
      %2273 = vmatprep.subr.bf16.mxu0 0
      %2274 = vmatpush1.bf16.msra.mxu0 0
      %2275 = vmatprep.subr.bf16.mxu0 0
      %2276 = vmatpush1.bf16.msra.mxu0 0
      %2277 = vmatprep.subr.bf16.mxu0 0
      %2278 = vmatpush1.bf16.msra.mxu0 0
      %2279 = vmatprep.subr.bf16.mxu0 0
      %2280 = vmatpush1.bf16.msra.mxu0 0
      %2281 = vmatprep.subr.bf16.mxu0 0
      %2282 = vmatpush1.bf16.msra.mxu0 0
      %2283 = vmatprep.subr.bf16.mxu0 0
      %2284 = vmatpush1.bf16.msra.mxu0 0
      %2285 = vmatprep.subr.bf16.mxu0 0
      %2286 = vmatpush1.bf16.msra.mxu0 0
      %2287 = vmatprep.subr.bf16.mxu0 0
      %2288 = vmatpush1.bf16.msra.mxu0 0
      %2289 = vmatprep.subr.bf16.mxu0 0
      %2290 = vmatpush1.bf16.msra.mxu0 0
      %2291 = vmatprep.mubr.bf16.mxu0 0
      %2292 = vmatmul.mubr.bf16.gmra.mrb[0].mxu0 %v2209
      %v2293 = vpop.f32.mrb[0].mxu0
      %v2294 = vadd.f32 0.0, %v2293
      %v2295 = vpop.f32.mrb[0].mxu0
      %v2296 = vpop.f32.mrb[0].mxu0
      %v2297 = vadd.f32 0.0, %v2296
      %v2298 = vpop.f32.mrb[0].mxu0
      %2299 = vmatprep.mubr.bf16.mxu0 0
      %2300 = vmatmul.mubr.bf16.gmra.mrb[0].mxu0 %v2212
      %v2301 = vpop.f32.mrb[0].mxu0
      %v2302 = vadd.f32 0.0, %v2301
      %v2303 = vpop.f32.mrb[0].mxu0
      %v2304 = vpop.f32.mrb[0].mxu0
      %v2305 = vadd.f32 0.0, %v2304
      %v2306 = vpop.f32.mrb[0].mxu0
      %2307 = vmatprep.mubr.bf16.mxu0 0
      %2308 = vmatmul.mubr.bf16.gmra.mrb[0].mxu0 %v2215
      %v2309 = vpop.f32.mrb[0].mxu0
      %v2310 = vadd.f32 0.0, %v2309
      %v2311 = vpop.f32.mrb[0].mxu0
      %v2312 = vpop.f32.mrb[0].mxu0
      %v2313 = vadd.f32 0.0, %v2312
      %v2314 = vpop.f32.mrb[0].mxu0
      %2315 = vmatprep.mubr.bf16.mxu0 0
      %2316 = vmatmul.mubr.bf16.gmra.mrb[0].mxu0 %v2218
      %v2317 = vpop.f32.mrb[0].mxu0
      %v2318 = vadd.f32 0.0, %v2317
      %v2319 = vpop.f32.mrb[0].mxu0
      %v2320 = vpop.f32.mrb[0].mxu0
      %v2321 = vadd.f32 0.0, %v2320
      %v2322 = vpop.f32.mrb[0].mxu0
      %2323 = vmatprep.mubr.bf16.mxu0 0
      %2324 = vmatmul.mubr.bf16.gmra.mrb[0].mxu0 %v2221
      %v2325 = vpop.f32.mrb[0].mxu0
      %v2326 = vadd.f32 0.0, %v2325
      %v2327 = vpop.f32.mrb[0].mxu0
      %v2328 = vpop.f32.mrb[0].mxu0
      %v2329 = vadd.f32 0.0, %v2328
      %v2330 = vpop.f32.mrb[0].mxu0
      %2331 = vmatprep.mubr.bf16.mxu0 0
      %2332 = vmatmul.mubr.bf16.gmra.mrb[0].mxu0 %v2224
      %v2333 = vpop.f32.mrb[0].mxu0
      %v2334 = vadd.f32 0.0, %v2333
      %v2335 = vpop.f32.mrb[0].mxu0
      %v2336 = vpop.f32.mrb[0].mxu0
      %v2337 = vadd.f32 0.0, %v2336
      %v2338 = vpop.f32.mrb[0].mxu0
      %2339 = vmatprep.mubr.bf16.mxu0 0
      %2340 = vmatmul.mubr.bf16.gmra.mrb[0].mxu0 %v2227
      %v2341 = vpop.f32.mrb[0].mxu0
      %v2342 = vadd.f32 0.0, %v2341
      %v2343 = vpop.f32.mrb[0].mxu0
      %v2344 = vpop.f32.mrb[0].mxu0
      %v2345 = vadd.f32 0.0, %v2344
      %v2346 = vpop.f32.mrb[0].mxu0
      %2347 = vmatprep.mubr.bf16.mxu0 0
      %2348 = vmatmul.mubr.bf16.gmra.mrb[0].mxu0 %v2230
      %v2349 = vpop.f32.mrb[0].mxu0
      %v2350 = vadd.f32 0.0, %v2349
      %v2351 = vpop.f32.mrb[0].mxu0
      %v2352 = vpop.f32.mrb[0].mxu0
      %v2353 = vadd.f32 0.0, %v2352
      %v2354 = vpop.f32.mrb[0].mxu0
      %2355 = vmatprep.mubr.bf16.mxu0 0
      %2356 = vmatmul.mubr.bf16.gmra.mrb[0].mxu0 %v2233
      %v2357 = vpop.f32.mrb[0].mxu0
      %v2358 = vadd.f32 0.0, %v2357
      %v2359 = vpop.f32.mrb[0].mxu0
      %v2360 = vpop.f32.mrb[0].mxu0
      %v2361 = vadd.f32 0.0, %v2360
      %v2362 = vpop.f32.mrb[0].mxu0
      %2363 = vmatprep.mubr.bf16.mxu0 0
      %2364 = vmatmul.mubr.bf16.gmra.mrb[0].mxu0 %v2236
      %v2365 = vpop.f32.mrb[0].mxu0
      %v2366 = vadd.f32 0.0, %v2365
      %v2367 = vpop.f32.mrb[0].mxu0
      %v2368 = vpop.f32.mrb[0].mxu0
      %v2369 = vadd.f32 0.0, %v2368
      %v2370 = vpop.f32.mrb[0].mxu0
      %2371 = vmatprep.mubr.bf16.mxu0 0
      %2372 = vmatmul.mubr.bf16.gmra.mrb[0].mxu0 %v2239
      %v2373 = vpop.f32.mrb[0].mxu0
      %v2374 = vadd.f32 0.0, %v2373
      %v2375 = vpop.f32.mrb[0].mxu0
      %v2376 = vpop.f32.mrb[0].mxu0
      %v2377 = vadd.f32 0.0, %v2376
      %v2378 = vpop.f32.mrb[0].mxu0
      %2379 = vmatprep.mubr.bf16.mxu0 0
      %2380 = vmatmul.mubr.bf16.gmra.mrb[0].mxu0 %v2242
      %v2381 = vpop.f32.mrb[0].mxu0
      %v2382 = vadd.f32 0.0, %v2381
      %v2383 = vpop.f32.mrb[0].mxu0
      %v2384 = vpop.f32.mrb[0].mxu0
      %v2385 = vadd.f32 0.0, %v2384
      %v2386 = vpop.f32.mrb[0].mxu0
      %2387 = vmatprep.mubr.bf16.mxu0 0
      %2388 = vmatmul.mubr.bf16.gmra.mrb[0].mxu0 %v2245
      %v2389 = vpop.f32.mrb[0].mxu0
      %v2390 = vadd.f32 0.0, %v2389
      %v2391 = vpop.f32.mrb[0].mxu0
      %v2392 = vpop.f32.mrb[0].mxu0
      %v2393 = vadd.f32 0.0, %v2392
      %v2394 = vpop.f32.mrb[0].mxu0
      %2395 = vmatprep.mubr.bf16.mxu0 0
      %2396 = vmatmul.mubr.bf16.gmra.mrb[0].mxu0 %v2248
      %v2397 = vpop.f32.mrb[0].mxu0
      %v2398 = vadd.f32 0.0, %v2397
      %v2399 = vpop.f32.mrb[0].mxu0
      %v2400 = vpop.f32.mrb[0].mxu0
      %v2401 = vadd.f32 0.0, %v2400
      %v2402 = vpop.f32.mrb[0].mxu0
      %2403 = vmatprep.mubr.bf16.mxu0 0
      %2404 = vmatmul.mubr.bf16.gmra.mrb[0].mxu0 %v2251
      %v2405 = vpop.f32.mrb[0].mxu0
      %v2406 = vadd.f32 0.0, %v2405
      %v2407 = vpop.f32.mrb[0].mxu0
      %v2408 = vpop.f32.mrb[0].mxu0
      %v2409 = vadd.f32 0.0, %v2408
      %v2410 = vpop.f32.mrb[0].mxu0
      %2411 = vmatprep.mubr.bf16.mxu0 0
      %2412 = vmatmul.mubr.bf16.gmra.mrb[0].mxu0 %v2254
      %v2413 = vpop.f32.mrb[0].mxu0
      %v2414 = vadd.f32 0.0, %v2413
      %v2415 = vpop.f32.mrb[0].mxu0
      %v2416 = vpop.f32.mrb[0].mxu0
      %v2417 = vadd.f32 0.0, %v2416
      %v2418 = vpop.f32.mrb[0].mxu0
      %2419 = vdwg.mxu0
      %v2420 = vadd.f32 %v2094, %v2294
      %v2421 = vadd.f32 %v2095, %v2297
      %v2422 = vadd.f32 %v2096, %v2302
      %v2423 = vadd.f32 %v2097, %v2305
      %v2424 = vadd.f32 %v2098, %v2310
      %v2425 = vadd.f32 %v2099, %v2313
      %v2426 = vadd.f32 %v2100, %v2318
      %v2427 = vadd.f32 %v2101, %v2321
      %v2428 = vadd.f32 %v2102, %v2326
      %v2429 = vadd.f32 %v2103, %v2329
      %v2430 = vadd.f32 %v2104, %v2334
      %v2431 = vadd.f32 %v2105, %v2337
      %v2432 = vadd.f32 %v2106, %v2342
      %v2433 = vadd.f32 %v2107, %v2345
      %v2434 = vadd.f32 %v2108, %v2350
      %v2435 = vadd.f32 %v2109, %v2353
      %v2436 = vadd.f32 %v2110, %v2358
      %v2437 = vadd.f32 %v2111, %v2361
      %v2438 = vadd.f32 %v2112, %v2366
      %v2439 = vadd.f32 %v2113, %v2369
      %v2440 = vadd.f32 %v2114, %v2374
      %v2441 = vadd.f32 %v2115, %v2377
      %v2442 = vadd.f32 %v2116, %v2382
      %v2443 = vadd.f32 %v2117, %v2385
      %v2444 = vadd.f32 %v2118, %v2390
      %v2445 = vadd.f32 %v2119, %v2393
      %v2446 = vadd.f32 %v2120, %v2398
      %v2447 = vadd.f32 %v2121, %v2401
      %v2448 = vadd.f32 %v2122, %v2406
      %v2449 = vadd.f32 %v2123, %v2409
      %v2450 = vadd.f32 %v2124, %v2414
      %v2451 = vadd.f32 %v2125, %v2417
      %2452 = vst.msk [vmem:[#allocation3] sm:$0xff] %vm432, %v2420
      %2453 = vst.msk [vmem:[#allocation3 + $0x8] sm:$0xff] %vm432, %v2421
      %2454 = vst.msk [vmem:[#allocation3 + $0x10] sm:$0xff] %vm432, %v2422
      %2455 = vst.msk [vmem:[#allocation3 + $0x18] sm:$0xff] %vm432, %v2423
      %2456 = vst.msk [vmem:[#allocation3 + $0x20] sm:$0xff] %vm432, %v2424
      %2457 = vst.msk [vmem:[#allocation3 + $0x28] sm:$0xff] %vm432, %v2425
      %2458 = vst.msk [vmem:[#allocation3 + $0x30] sm:$0xff] %vm432, %v2426
      %2459 = vst.msk [vmem:[#allocation3 + $0x38] sm:$0xff] %vm432, %v2427
      %2460 = vst.msk [vmem:[#allocation3 + $0x40] sm:$0xff] %vm432, %v2428
      %2461 = vst.msk [vmem:[#allocation3 + $0x48] sm:$0xff] %vm432, %v2429
      %2462 = vst.msk [vmem:[#allocation3 + $0x50] sm:$0xff] %vm432, %v2430
      %2463 = vst.msk [vmem:[#allocation3 + $0x58] sm:$0xff] %vm432, %v2431
      %2464 = vst.msk [vmem:[#allocation3 + $0x60] sm:$0xff] %vm432, %v2432
      %2465 = vst.msk [vmem:[#allocation3 + $0x68] sm:$0xff] %vm432, %v2433
      %2466 = vst.msk [vmem:[#allocation3 + $0x70] sm:$0xff] %vm432, %v2434
      %2467 = vst.msk [vmem:[#allocation3 + $0x78] sm:$0xff] %vm432, %v2435
      %2468 = vst.msk [vmem:[#allocation3 + $0x80] sm:$0xff] %vm432, %v2436
      %2469 = vst.msk [vmem:[#allocation3 + $0x88] sm:$0xff] %vm432, %v2437
      %2470 = vst.msk [vmem:[#allocation3 + $0x90] sm:$0xff] %vm432, %v2438
      %2471 = vst.msk [vmem:[#allocation3 + $0x98] sm:$0xff] %vm432, %v2439
      %2472 = vst.msk [vmem:[#allocation3 + $0xa0] sm:$0xff] %vm432, %v2440
      %2473 = vst.msk [vmem:[#allocation3 + $0xa8] sm:$0xff] %vm432, %v2441
      %2474 = vst.msk [vmem:[#allocation3 + $0xb0] sm:$0xff] %vm432, %v2442
      %2475 = vst.msk [vmem:[#allocation3 + $0xb8] sm:$0xff] %vm432, %v2443
      %2476 = vst.msk [vmem:[#allocation3 + $0xc0] sm:$0xff] %vm432, %v2444
      %2477 = vst.msk [vmem:[#allocation3 + $0xc8] sm:$0xff] %vm432, %v2445
      %2478 = vst.msk [vmem:[#allocation3 + $0xd0] sm:$0xff] %vm432, %v2446
      %2479 = vst.msk [vmem:[#allocation3 + $0xd8] sm:$0xff] %vm432, %v2447
      %2480 = vst.msk [vmem:[#allocation3 + $0xe0] sm:$0xff] %vm432, %v2448
      %2481 = vst.msk [vmem:[#allocation3 + $0xe8] sm:$0xff] %vm432, %v2449
      %2482 = vst.msk [vmem:[#allocation3 + $0xf0] sm:$0xff] %vm432, %v2450
      %2483 = vst.msk [vmem:[#allocation3 + $0xf8] sm:$0xff] %vm432, %v2451
      %v2485 = vshrl.u32 %v2058, 16
      %v2487 = vrot.slane %v2485, 4
      %v2488 = vshll.u32 %v2058, 16
      %v2490 = vrot.slane %v2488, 5
      %v2491 = vor.u32 %v2487, %v2490
      %v2492 = vrot.slane %v2491, 4
      %v2494 = vshll.u32 %v2059, 16
      %v2496 = vrot.slane %v2494, 5
      %v2497 = vsel %vm897, %v2492, %v2496
      %v2498 = vshrl.u32 %v2059, 16
      %v2500 = vrot.slane %v2498, 4
      %v2501 = vor.u32 %v2500, %v2496
      %v2502 = vrot.slane %v2501, 4
      %v2504 = vshll.u32 %v2060, 16
      %v2506 = vrot.slane %v2504, 5
      %v2507 = vsel %vm897, %v2502, %v2506
      %v2508 = vshrl.u32 %v2060, 16
      %v2510 = vrot.slane %v2508, 4
      %v2511 = vor.u32 %v2510, %v2506
      %v2512 = vrot.slane %v2511, 4
      %v2514 = vshll.u32 %v2061, 16
      %v2516 = vrot.slane %v2514, 5
      %v2517 = vsel %vm897, %v2512, %v2516
      %v2518 = vshrl.u32 %v2061, 16
      %v2520 = vrot.slane %v2518, 4
      %v2521 = vor.u32 %v2520, %v2516
      %v2522 = vrot.slane %v2521, 4
      %v2524 = vshll.u32 %v2062, 16
      %v2526 = vrot.slane %v2524, 5
      %v2527 = vsel %vm897, %v2522, %v2526
      %v2528 = vshrl.u32 %v2062, 16
      %v2530 = vrot.slane %v2528, 4
      %v2531 = vor.u32 %v2530, %v2526
      %v2532 = vrot.slane %v2531, 4
      %v2534 = vshll.u32 %v2063, 16
      %v2536 = vrot.slane %v2534, 5
      %v2537 = vsel %vm897, %v2532, %v2536
      %v2538 = vshrl.u32 %v2063, 16
      %v2540 = vrot.slane %v2538, 4
      %v2541 = vor.u32 %v2540, %v2536
      %v2542 = vrot.slane %v2541, 4
      %v2544 = vshll.u32 %v2064, 16
      %v2546 = vrot.slane %v2544, 5
      %v2547 = vsel %vm897, %v2542, %v2546
      %v2548 = vshrl.u32 %v2064, 16
      %v2550 = vrot.slane %v2548, 4
      %v2551 = vor.u32 %v2550, %v2546
      %v2552 = vrot.slane %v2551, 4
      %v2554 = vshll.u32 %v2065, 16
      %v2556 = vrot.slane %v2554, 5
      %v2557 = vsel %vm897, %v2552, %v2556
      %v2558 = vshrl.u32 %v2065, 16
      %v2560 = vrot.slane %v2558, 4
      %v2561 = vor.u32 %v2560, %v2556
      %v2562 = vrot.slane %v2561, 4
      %v2564 = vshll.u32 %v2066, 16
      %v2566 = vrot.slane %v2564, 5
      %v2567 = vsel %vm897, %v2562, %v2566
      %v2569 = vshrl.u32 %v2067, 16
      %v2571 = vrot.slane %v2569, 4
      %v2572 = vshll.u32 %v2067, 16
      %v2574 = vrot.slane %v2572, 5
      %v2575 = vor.u32 %v2571, %v2574
      %v2576 = vrot.slane %v2575, 4
      %v2578 = vshll.u32 %v2068, 16
      %v2580 = vrot.slane %v2578, 5
      %v2581 = vsel %vm897, %v2576, %v2580
      %v2582 = vshrl.u32 %v2068, 16
      %v2584 = vrot.slane %v2582, 4
      %v2585 = vor.u32 %v2584, %v2580
      %v2586 = vrot.slane %v2585, 4
      %v2588 = vshll.u32 %v2069, 16
      %v2590 = vrot.slane %v2588, 5
      %v2591 = vsel %vm897, %v2586, %v2590
      %v2592 = vshrl.u32 %v2069, 16
      %v2594 = vrot.slane %v2592, 4
      %v2595 = vor.u32 %v2594, %v2590
      %v2596 = vrot.slane %v2595, 4
      %v2598 = vshll.u32 %v2070, 16
      %v2600 = vrot.slane %v2598, 5
      %v2601 = vsel %vm897, %v2596, %v2600
      %v2602 = vshrl.u32 %v2070, 16
      %v2604 = vrot.slane %v2602, 4
      %v2605 = vor.u32 %v2604, %v2600
      %v2606 = vrot.slane %v2605, 4
      %v2608 = vshll.u32 %v2071, 16
      %v2610 = vrot.slane %v2608, 5
      %v2611 = vsel %vm897, %v2606, %v2610
      %v2612 = vshrl.u32 %v2071, 16
      %v2614 = vrot.slane %v2612, 4
      %v2615 = vor.u32 %v2614, %v2610
      %v2616 = vrot.slane %v2615, 4
      %v2618 = vshll.u32 %v2072, 16
      %v2620 = vrot.slane %v2618, 5
      %v2621 = vsel %vm897, %v2616, %v2620
      %v2622 = vshrl.u32 %v2072, 16
      %v2624 = vrot.slane %v2622, 4
      %v2625 = vor.u32 %v2624, %v2620
      %v2626 = vrot.slane %v2625, 4
      %v2628 = vshll.u32 %v2073, 16
      %v2630 = vrot.slane %v2628, 5
      %v2631 = vsel %vm897, %v2626, %v2630
      %v2632 = vshrl.u32 %v2073, 16
      %v2634 = vrot.slane %v2632, 4
      %v2635 = vor.u32 %v2634, %v2630
      %v2636 = vrot.slane %v2635, 4
      %v2638 = vshll.u32 %v2074, 16
      %v2640 = vrot.slane %v2638, 5
      %v2641 = vsel %vm897, %v2636, %v2640
      %v2642 = vshrl.u32 %v2074, 16
      %v2644 = vrot.slane %v2642, 4
      %v2645 = vor.u32 %v2644, %v2640
      %v2646 = vrot.slane %v2645, 4
      %v2648 = vshll.u32 %v2075, 16
      %v2650 = vrot.slane %v2648, 5
      %v2651 = vsel %vm897, %v2646, %v2650
      %v2653 = vshrl.u32 %v2076, 16
      %v2655 = vrot.slane %v2653, 4
      %v2656 = vshll.u32 %v2076, 16
      %v2658 = vrot.slane %v2656, 5
      %v2659 = vor.u32 %v2655, %v2658
      %v2660 = vrot.slane %v2659, 4
      %v2662 = vshll.u32 %v2077, 16
      %v2664 = vrot.slane %v2662, 5
      %v2665 = vsel %vm897, %v2660, %v2664
      %v2666 = vshrl.u32 %v2077, 16
      %v2668 = vrot.slane %v2666, 4
      %v2669 = vor.u32 %v2668, %v2664
      %v2670 = vrot.slane %v2669, 4
      %v2672 = vshll.u32 %v2078, 16
      %v2674 = vrot.slane %v2672, 5
      %v2675 = vsel %vm897, %v2670, %v2674
      %v2676 = vshrl.u32 %v2078, 16
      %v2678 = vrot.slane %v2676, 4
      %v2679 = vor.u32 %v2678, %v2674
      %v2680 = vrot.slane %v2679, 4
      %v2682 = vshll.u32 %v2079, 16
      %v2684 = vrot.slane %v2682, 5
      %v2685 = vsel %vm897, %v2680, %v2684
      %v2686 = vshrl.u32 %v2079, 16
      %v2688 = vrot.slane %v2686, 4
      %v2689 = vor.u32 %v2688, %v2684
      %v2690 = vrot.slane %v2689, 4
      %v2692 = vshll.u32 %v2080, 16
      %v2694 = vrot.slane %v2692, 5
      %v2695 = vsel %vm897, %v2690, %v2694
      %v2696 = vshrl.u32 %v2080, 16
      %v2698 = vrot.slane %v2696, 4
      %v2699 = vor.u32 %v2698, %v2694
      %v2700 = vrot.slane %v2699, 4
      %v2702 = vshll.u32 %v2081, 16
      %v2704 = vrot.slane %v2702, 5
      %v2705 = vsel %vm897, %v2700, %v2704
      %v2706 = vshrl.u32 %v2081, 16
      %v2708 = vrot.slane %v2706, 4
      %v2709 = vor.u32 %v2708, %v2704
      %v2710 = vrot.slane %v2709, 4
      %v2712 = vshll.u32 %v2082, 16
      %v2714 = vrot.slane %v2712, 5
      %v2715 = vsel %vm897, %v2710, %v2714
      %v2716 = vshrl.u32 %v2082, 16
      %v2718 = vrot.slane %v2716, 4
      %v2719 = vor.u32 %v2718, %v2714
      %v2720 = vrot.slane %v2719, 4
      %v2722 = vshll.u32 %v2083, 16
      %v2724 = vrot.slane %v2722, 5
      %v2725 = vsel %vm897, %v2720, %v2724
      %v2726 = vshrl.u32 %v2083, 16
      %v2728 = vrot.slane %v2726, 4
      %v2729 = vor.u32 %v2728, %v2724
      %v2730 = vrot.slane %v2729, 4
      %v2732 = vshll.u32 %v2084, 16
      %v2734 = vrot.slane %v2732, 5
      %v2735 = vsel %vm897, %v2730, %v2734
      %v2737 = vshrl.u32 %v2085, 16
      %v2739 = vrot.slane %v2737, 4
      %v2740 = vshll.u32 %v2085, 16
      %v2742 = vrot.slane %v2740, 5
      %v2743 = vor.u32 %v2739, %v2742
      %v2744 = vrot.slane %v2743, 4
      %v2746 = vshll.u32 %v2086, 16
      %v2748 = vrot.slane %v2746, 5
      %v2749 = vsel %vm897, %v2744, %v2748
      %v2750 = vshrl.u32 %v2086, 16
      %v2752 = vrot.slane %v2750, 4
      %v2753 = vor.u32 %v2752, %v2748
      %v2754 = vrot.slane %v2753, 4
      %v2756 = vshll.u32 %v2087, 16
      %v2758 = vrot.slane %v2756, 5
      %v2759 = vsel %vm897, %v2754, %v2758
      %v2760 = vshrl.u32 %v2087, 16
      %v2762 = vrot.slane %v2760, 4
      %v2763 = vor.u32 %v2762, %v2758
      %v2764 = vrot.slane %v2763, 4
      %v2766 = vshll.u32 %v2088, 16
      %v2768 = vrot.slane %v2766, 5
      %v2769 = vsel %vm897, %v2764, %v2768
      %v2770 = vshrl.u32 %v2088, 16
      %v2772 = vrot.slane %v2770, 4
      %v2773 = vor.u32 %v2772, %v2768
      %v2774 = vrot.slane %v2773, 4
      %v2776 = vshll.u32 %v2089, 16
      %v2778 = vrot.slane %v2776, 5
      %v2779 = vsel %vm897, %v2774, %v2778
      %v2780 = vshrl.u32 %v2089, 16
      %v2782 = vrot.slane %v2780, 4
      %v2783 = vor.u32 %v2782, %v2778
      %v2784 = vrot.slane %v2783, 4
      %v2786 = vshll.u32 %v2090, 16
      %v2788 = vrot.slane %v2786, 5
      %v2789 = vsel %vm897, %v2784, %v2788
      %v2790 = vshrl.u32 %v2090, 16
      %v2792 = vrot.slane %v2790, 4
      %v2793 = vor.u32 %v2792, %v2788
      %v2794 = vrot.slane %v2793, 4
      %v2796 = vshll.u32 %v2091, 16
      %v2798 = vrot.slane %v2796, 5
      %v2799 = vsel %vm897, %v2794, %v2798
      %v2800 = vshrl.u32 %v2091, 16
      %v2802 = vrot.slane %v2800, 4
      %v2803 = vor.u32 %v2802, %v2798
      %v2804 = vrot.slane %v2803, 4
      %v2806 = vshll.u32 %v2092, 16
      %v2808 = vrot.slane %v2806, 5
      %v2809 = vsel %vm897, %v2804, %v2808
      %v2810 = vshrl.u32 %v2092, 16
      %v2812 = vrot.slane %v2810, 4
      %v2813 = vor.u32 %v2812, %v2808
      %v2814 = vrot.slane %v2813, 4
      %v2816 = vshll.u32 %v2093, 16
      %v2818 = vrot.slane %v2816, 5
      %v2819 = vsel %vm897, %v2814, %v2818
      %v2820 = vld [vmem:[#allocation3] sm:$0xff]
      %v2821 = vld [vmem:[#allocation3 + $0x8] sm:$0xff]
      %v2822 = vld [vmem:[#allocation3 + $0x10] sm:$0xff]
      %v2823 = vld [vmem:[#allocation3 + $0x18] sm:$0xff]
      %v2824 = vld [vmem:[#allocation3 + $0x20] sm:$0xff]
      %v2825 = vld [vmem:[#allocation3 + $0x28] sm:$0xff]
      %v2826 = vld [vmem:[#allocation3 + $0x30] sm:$0xff]
      %v2827 = vld [vmem:[#allocation3 + $0x38] sm:$0xff]
      %v2828 = vld [vmem:[#allocation3 + $0x40] sm:$0xff]
      %v2829 = vld [vmem:[#allocation3 + $0x48] sm:$0xff]
      %v2830 = vld [vmem:[#allocation3 + $0x50] sm:$0xff]
      %v2831 = vld [vmem:[#allocation3 + $0x58] sm:$0xff]
      %v2832 = vld [vmem:[#allocation3 + $0x60] sm:$0xff]
      %v2833 = vld [vmem:[#allocation3 + $0x68] sm:$0xff]
      %v2834 = vld [vmem:[#allocation3 + $0x70] sm:$0xff]
      %v2835 = vld [vmem:[#allocation3 + $0x78] sm:$0xff]
      %v2836 = vld [vmem:[#allocation3 + $0x80] sm:$0xff]
      %v2837 = vld [vmem:[#allocation3 + $0x88] sm:$0xff]
      %v2838 = vld [vmem:[#allocation3 + $0x90] sm:$0xff]
      %v2839 = vld [vmem:[#allocation3 + $0x98] sm:$0xff]
      %v2840 = vld [vmem:[#allocation3 + $0xa0] sm:$0xff]
      %v2841 = vld [vmem:[#allocation3 + $0xa8] sm:$0xff]
      %v2842 = vld [vmem:[#allocation3 + $0xb0] sm:$0xff]
      %v2843 = vld [vmem:[#allocation3 + $0xb8] sm:$0xff]
      %v2844 = vld [vmem:[#allocation3 + $0xc0] sm:$0xff]
      %v2845 = vld [vmem:[#allocation3 + $0xc8] sm:$0xff]
      %v2846 = vld [vmem:[#allocation3 + $0xd0] sm:$0xff]
      %v2847 = vld [vmem:[#allocation3 + $0xd8] sm:$0xff]
      %v2848 = vld [vmem:[#allocation3 + $0xe0] sm:$0xff]
      %v2849 = vld [vmem:[#allocation3 + $0xe8] sm:$0xff]
      %v2850 = vld [vmem:[#allocation3 + $0xf0] sm:$0xff]
      %v2851 = vld [vmem:[#allocation3 + $0xf8] sm:$0xff]
      %s2852 = scalar_lea.vmem %s2, 8
      %v2853 = vld [vmem:[%s2852] sm:$0x3]
      %v2854 = vunpack.c.l.b16 %v2497
      %v2855 = vunpack.c.l.b16 %v2507
      %v2856 = vunpack.c.l.b16 %v2517
      %v2857 = vunpack.c.l.b16 %v2527
      %v2858 = vunpack.c.l.b16 %v2537
      %v2859 = vunpack.c.l.b16 %v2547
      %v2860 = vunpack.c.l.b16 %v2557
      %v2861 = vunpack.c.l.b16 %v2567
      %v2862 = vunpack.c.l.b16 %v2581
      %v2863 = vunpack.c.l.b16 %v2591
      %v2864 = vunpack.c.l.b16 %v2601
      %v2865 = vunpack.c.l.b16 %v2611
      %v2866 = vunpack.c.l.b16 %v2621
      %v2867 = vunpack.c.l.b16 %v2631
      %v2868 = vunpack.c.l.b16 %v2641
      %v2869 = vunpack.c.l.b16 %v2651
      %v2870 = vunpack.c.l.b16 %v2665
      %v2871 = vunpack.c.l.b16 %v2675
      %v2872 = vunpack.c.l.b16 %v2685
      %v2873 = vunpack.c.l.b16 %v2695
      %v2874 = vunpack.c.l.b16 %v2705
      %v2875 = vunpack.c.l.b16 %v2715
      %v2876 = vunpack.c.l.b16 %v2725
      %v2877 = vunpack.c.l.b16 %v2735
      %v2878 = vunpack.c.l.b16 %v2749
      %v2879 = vunpack.c.l.b16 %v2759
      %v2880 = vunpack.c.l.b16 %v2769
      %v2881 = vunpack.c.l.b16 %v2779
      %v2882 = vunpack.c.l.b16 %v2789
      %v2883 = vunpack.c.l.b16 %v2799
      %v2884 = vunpack.c.l.b16 %v2809
      %v2885 = vunpack.c.l.b16 %v2819
      %v2886 = vpack.c.b16 %v2855, %v2854
      %v2887 = vpack.c.b16 %v2857, %v2856
      %v2888 = vpack.c.b16 %v2859, %v2858
      %v2889 = vpack.c.b16 %v2861, %v2860
      %v2890 = vpack.c.b16 %v2863, %v2862
      %v2891 = vpack.c.b16 %v2865, %v2864
      %v2892 = vpack.c.b16 %v2867, %v2866
      %v2893 = vpack.c.b16 %v2869, %v2868
      %v2894 = vpack.c.b16 %v2871, %v2870
      %v2895 = vpack.c.b16 %v2873, %v2872
      %v2896 = vpack.c.b16 %v2875, %v2874
      %v2897 = vpack.c.b16 %v2877, %v2876
      %v2898 = vpack.c.b16 %v2879, %v2878
      %v2899 = vpack.c.b16 %v2881, %v2880
      %v2900 = vpack.c.b16 %v2883, %v2882
      %v2901 = vpack.c.b16 %v2885, %v2884
      %v2903 = vsel %vm614, %v2886, 0
      %v2906 = vsel %vm614, %v2887, 0
      %v2909 = vsel %vm614, %v2888, 0
      %v2912 = vsel %vm614, %v2889, 0
      %v2915 = vsel %vm614, %v2890, 0
      %v2918 = vsel %vm614, %v2891, 0
      %v2921 = vsel %vm614, %v2892, 0
      %v2924 = vsel %vm614, %v2893, 0
      %v2927 = vsel %vm614, %v2894, 0
      %v2930 = vsel %vm614, %v2895, 0
      %v2933 = vsel %vm614, %v2896, 0
      %v2936 = vsel %vm614, %v2897, 0
      %v2939 = vsel %vm614, %v2898, 0
      %v2942 = vsel %vm614, %v2899, 0
      %v2945 = vsel %vm614, %v2900, 0
      %v2948 = vsel %vm614, %v2901, 0
      %v2951 = vand.u32 %v2853, %v666
      %2953 = vmatprep.subr.bf16.mxu0 0
      %2954 = vmatpush1.bf16.msra.mxu0 %v2951
      %2955 = vmatprep.subr.bf16.mxu0 0
      %2956 = vmatpush1.bf16.msra.mxu0 0
      %2957 = vmatprep.subr.bf16.mxu0 0
      %2958 = vmatpush1.bf16.msra.mxu0 0
      %2959 = vmatprep.subr.bf16.mxu0 0
      %2960 = vmatpush1.bf16.msra.mxu0 0
      %2961 = vmatprep.subr.bf16.mxu0 0
      %2962 = vmatpush1.bf16.msra.mxu0 0
      %2963 = vmatprep.subr.bf16.mxu0 0
      %2964 = vmatpush1.bf16.msra.mxu0 0
      %2965 = vmatprep.subr.bf16.mxu0 0
      %2966 = vmatpush1.bf16.msra.mxu0 0
      %2967 = vmatprep.subr.bf16.mxu0 0
      %2968 = vmatpush1.bf16.msra.mxu0 0
      %2969 = vmatprep.subr.bf16.mxu0 0
      %2970 = vmatpush1.bf16.msra.mxu0 0
      %2971 = vmatprep.subr.bf16.mxu0 0
      %2972 = vmatpush1.bf16.msra.mxu0 0
      %2973 = vmatprep.subr.bf16.mxu0 0
      %2974 = vmatpush1.bf16.msra.mxu0 0
      %2975 = vmatprep.subr.bf16.mxu0 0
      %2976 = vmatpush1.bf16.msra.mxu0 0
      %2977 = vmatprep.subr.bf16.mxu0 0
      %2978 = vmatpush1.bf16.msra.mxu0 0
      %2979 = vmatprep.subr.bf16.mxu0 0
      %2980 = vmatpush1.bf16.msra.mxu0 0
      %2981 = vmatprep.subr.bf16.mxu0 0
      %2982 = vmatpush1.bf16.msra.mxu0 0
      %2983 = vmatprep.subr.bf16.mxu0 0
      %2984 = vmatpush1.bf16.msra.mxu0 0
      %2985 = vmatprep.mubr.bf16.mxu0 0
      %2986 = vmatmul.mubr.bf16.gmra.mrb[0].mxu0 %v2903
      %v2987 = vpop.f32.mrb[0].mxu0
      %v2988 = vadd.f32 0.0, %v2987
      %v2989 = vpop.f32.mrb[0].mxu0
      %v2990 = vpop.f32.mrb[0].mxu0
      %v2991 = vadd.f32 0.0, %v2990
      %v2992 = vpop.f32.mrb[0].mxu0
      %2993 = vmatprep.mubr.bf16.mxu0 0
      %2994 = vmatmul.mubr.bf16.gmra.mrb[0].mxu0 %v2906
      %v2995 = vpop.f32.mrb[0].mxu0
      %v2996 = vadd.f32 0.0, %v2995
      %v2997 = vpop.f32.mrb[0].mxu0
      %v2998 = vpop.f32.mrb[0].mxu0
      %v2999 = vadd.f32 0.0, %v2998
      %v3000 = vpop.f32.mrb[0].mxu0
      %3001 = vmatprep.mubr.bf16.mxu0 0
      %3002 = vmatmul.mubr.bf16.gmra.mrb[0].mxu0 %v2909
      %v3003 = vpop.f32.mrb[0].mxu0
      %v3004 = vadd.f32 0.0, %v3003
      %v3005 = vpop.f32.mrb[0].mxu0
      %v3006 = vpop.f32.mrb[0].mxu0
      %v3007 = vadd.f32 0.0, %v3006
      %v3008 = vpop.f32.mrb[0].mxu0
      %3009 = vmatprep.mubr.bf16.mxu0 0
      %3010 = vmatmul.mubr.bf16.gmra.mrb[0].mxu0 %v2912
      %v3011 = vpop.f32.mrb[0].mxu0
      %v3012 = vadd.f32 0.0, %v3011
      %v3013 = vpop.f32.mrb[0].mxu0
      %v3014 = vpop.f32.mrb[0].mxu0
      %v3015 = vadd.f32 0.0, %v3014
      %v3016 = vpop.f32.mrb[0].mxu0
      %3017 = vmatprep.mubr.bf16.mxu0 0
      %3018 = vmatmul.mubr.bf16.gmra.mrb[0].mxu0 %v2915
      %v3019 = vpop.f32.mrb[0].mxu0
      %v3020 = vadd.f32 0.0, %v3019
      %v3021 = vpop.f32.mrb[0].mxu0
      %v3022 = vpop.f32.mrb[0].mxu0
      %v3023 = vadd.f32 0.0, %v3022
      %v3024 = vpop.f32.mrb[0].mxu0
      %3025 = vmatprep.mubr.bf16.mxu0 0
      %3026 = vmatmul.mubr.bf16.gmra.mrb[0].mxu0 %v2918
      %v3027 = vpop.f32.mrb[0].mxu0
      %v3028 = vadd.f32 0.0, %v3027
      %v3029 = vpop.f32.mrb[0].mxu0
      %v3030 = vpop.f32.mrb[0].mxu0
      %v3031 = vadd.f32 0.0, %v3030
      %v3032 = vpop.f32.mrb[0].mxu0
      %3033 = vmatprep.mubr.bf16.mxu0 0
      %3034 = vmatmul.mubr.bf16.gmra.mrb[0].mxu0 %v2921
      %v3035 = vpop.f32.mrb[0].mxu0
      %v3036 = vadd.f32 0.0, %v3035
      %v3037 = vpop.f32.mrb[0].mxu0
      %v3038 = vpop.f32.mrb[0].mxu0
      %v3039 = vadd.f32 0.0, %v3038
      %v3040 = vpop.f32.mrb[0].mxu0
      %3041 = vmatprep.mubr.bf16.mxu0 0
      %3042 = vmatmul.mubr.bf16.gmra.mrb[0].mxu0 %v2924
      %v3043 = vpop.f32.mrb[0].mxu0
      %v3044 = vadd.f32 0.0, %v3043
      %v3045 = vpop.f32.mrb[0].mxu0
      %v3046 = vpop.f32.mrb[0].mxu0
      %v3047 = vadd.f32 0.0, %v3046
      %v3048 = vpop.f32.mrb[0].mxu0
      %3049 = vmatprep.mubr.bf16.mxu0 0
      %3050 = vmatmul.mubr.bf16.gmra.mrb[0].mxu0 %v2927
      %v3051 = vpop.f32.mrb[0].mxu0
      %v3052 = vadd.f32 0.0, %v3051
      %v3053 = vpop.f32.mrb[0].mxu0
      %v3054 = vpop.f32.mrb[0].mxu0
      %v3055 = vadd.f32 0.0, %v3054
      %v3056 = vpop.f32.mrb[0].mxu0
      %3057 = vmatprep.mubr.bf16.mxu0 0
      %3058 = vmatmul.mubr.bf16.gmra.mrb[0].mxu0 %v2930
      %v3059 = vpop.f32.mrb[0].mxu0
      %v3060 = vadd.f32 0.0, %v3059
      %v3061 = vpop.f32.mrb[0].mxu0
      %v3062 = vpop.f32.mrb[0].mxu0
      %v3063 = vadd.f32 0.0, %v3062
      %v3064 = vpop.f32.mrb[0].mxu0
      %3065 = vmatprep.mubr.bf16.mxu0 0
      %3066 = vmatmul.mubr.bf16.gmra.mrb[0].mxu0 %v2933
      %v3067 = vpop.f32.mrb[0].mxu0
      %v3068 = vadd.f32 0.0, %v3067
      %v3069 = vpop.f32.mrb[0].mxu0
      %v3070 = vpop.f32.mrb[0].mxu0
      %v3071 = vadd.f32 0.0, %v3070
      %v3072 = vpop.f32.mrb[0].mxu0
      %3073 = vmatprep.mubr.bf16.mxu0 0
      %3074 = vmatmul.mubr.bf16.gmra.mrb[0].mxu0 %v2936
      %v3075 = vpop.f32.mrb[0].mxu0
      %v3076 = vadd.f32 0.0, %v3075
      %v3077 = vpop.f32.mrb[0].mxu0
      %v3078 = vpop.f32.mrb[0].mxu0
      %v3079 = vadd.f32 0.0, %v3078
      %v3080 = vpop.f32.mrb[0].mxu0
      %3081 = vmatprep.mubr.bf16.mxu0 0
      %3082 = vmatmul.mubr.bf16.gmra.mrb[0].mxu0 %v2939
      %v3083 = vpop.f32.mrb[0].mxu0
      %v3084 = vadd.f32 0.0, %v3083
      %v3085 = vpop.f32.mrb[0].mxu0
      %v3086 = vpop.f32.mrb[0].mxu0
      %v3087 = vadd.f32 0.0, %v3086
      %v3088 = vpop.f32.mrb[0].mxu0
      %3089 = vmatprep.mubr.bf16.mxu0 0
      %3090 = vmatmul.mubr.bf16.gmra.mrb[0].mxu0 %v2942
      %v3091 = vpop.f32.mrb[0].mxu0
      %v3092 = vadd.f32 0.0, %v3091
      %v3093 = vpop.f32.mrb[0].mxu0
      %v3094 = vpop.f32.mrb[0].mxu0
      %v3095 = vadd.f32 0.0, %v3094
      %v3096 = vpop.f32.mrb[0].mxu0
      %3097 = vmatprep.mubr.bf16.mxu0 0
      %3098 = vmatmul.mubr.bf16.gmra.mrb[0].mxu0 %v2945
      %v3099 = vpop.f32.mrb[0].mxu0
      %v3100 = vadd.f32 0.0, %v3099
      %v3101 = vpop.f32.mrb[0].mxu0
      %v3102 = vpop.f32.mrb[0].mxu0
      %v3103 = vadd.f32 0.0, %v3102
      %v3104 = vpop.f32.mrb[0].mxu0
      %3105 = vmatprep.mubr.bf16.mxu0 0
      %3106 = vmatmul.mubr.bf16.gmra.mrb[0].mxu0 %v2948
      %v3107 = vpop.f32.mrb[0].mxu0
      %v3108 = vadd.f32 0.0, %v3107
      %v3109 = vpop.f32.mrb[0].mxu0
      %v3110 = vpop.f32.mrb[0].mxu0
      %v3111 = vadd.f32 0.0, %v3110
      %v3112 = vpop.f32.mrb[0].mxu0
      %3113 = vdwg.mxu0
      %v3114 = vadd.f32 %v2820, %v2988
      %v3115 = vadd.f32 %v2821, %v2991
      %v3116 = vadd.f32 %v2822, %v2996
      %v3117 = vadd.f32 %v2823, %v2999
      %v3118 = vadd.f32 %v2824, %v3004
      %v3119 = vadd.f32 %v2825, %v3007
      %v3120 = vadd.f32 %v2826, %v3012
      %v3121 = vadd.f32 %v2827, %v3015
      %v3122 = vadd.f32 %v2828, %v3020
      %v3123 = vadd.f32 %v2829, %v3023
      %v3124 = vadd.f32 %v2830, %v3028
      %v3125 = vadd.f32 %v2831, %v3031
      %v3126 = vadd.f32 %v2832, %v3036
      %v3127 = vadd.f32 %v2833, %v3039
      %v3128 = vadd.f32 %v2834, %v3044
      %v3129 = vadd.f32 %v2835, %v3047
      %v3130 = vadd.f32 %v2836, %v3052
      %v3131 = vadd.f32 %v2837, %v3055
      %v3132 = vadd.f32 %v2838, %v3060
      %v3133 = vadd.f32 %v2839, %v3063
      %v3134 = vadd.f32 %v2840, %v3068
      %v3135 = vadd.f32 %v2841, %v3071
      %v3136 = vadd.f32 %v2842, %v3076
      %v3137 = vadd.f32 %v2843, %v3079
      %v3138 = vadd.f32 %v2844, %v3084
      %v3139 = vadd.f32 %v2845, %v3087
      %v3140 = vadd.f32 %v2846, %v3092
      %v3141 = vadd.f32 %v2847, %v3095
      %v3142 = vadd.f32 %v2848, %v3100
      %v3143 = vadd.f32 %v2849, %v3103
      %v3144 = vadd.f32 %v2850, %v3108
      %v3145 = vadd.f32 %v2851, %v3111
      %3146 = vst.msk [vmem:[#allocation3] sm:$0xff] %vm432, %v3114
      %3147 = vst.msk [vmem:[#allocation3 + $0x8] sm:$0xff] %vm432, %v3115
      %3148 = vst.msk [vmem:[#allocation3 + $0x10] sm:$0xff] %vm432, %v3116
      %3149 = vst.msk [vmem:[#allocation3 + $0x18] sm:$0xff] %vm432, %v3117
      %3150 = vst.msk [vmem:[#allocation3 + $0x20] sm:$0xff] %vm432, %v3118
      %3151 = vst.msk [vmem:[#allocation3 + $0x28] sm:$0xff] %vm432, %v3119
      %3152 = vst.msk [vmem:[#allocation3 + $0x30] sm:$0xff] %vm432, %v3120
      %3153 = vst.msk [vmem:[#allocation3 + $0x38] sm:$0xff] %vm432, %v3121
      %3154 = vst.msk [vmem:[#allocation3 + $0x40] sm:$0xff] %vm432, %v3122
      %3155 = vst.msk [vmem:[#allocation3 + $0x48] sm:$0xff] %vm432, %v3123
      %3156 = vst.msk [vmem:[#allocation3 + $0x50] sm:$0xff] %vm432, %v3124
      %3157 = vst.msk [vmem:[#allocation3 + $0x58] sm:$0xff] %vm432, %v3125
      %3158 = vst.msk [vmem:[#allocation3 + $0x60] sm:$0xff] %vm432, %v3126
      %3159 = vst.msk [vmem:[#allocation3 + $0x68] sm:$0xff] %vm432, %v3127
      %3160 = vst.msk [vmem:[#allocation3 + $0x70] sm:$0xff] %vm432, %v3128
      %3161 = vst.msk [vmem:[#allocation3 + $0x78] sm:$0xff] %vm432, %v3129
      %3162 = vst.msk [vmem:[#allocation3 + $0x80] sm:$0xff] %vm432, %v3130
      %3163 = vst.msk [vmem:[#allocation3 + $0x88] sm:$0xff] %vm432, %v3131
      %3164 = vst.msk [vmem:[#allocation3 + $0x90] sm:$0xff] %vm432, %v3132
      %3165 = vst.msk [vmem:[#allocation3 + $0x98] sm:$0xff] %vm432, %v3133
      %3166 = vst.msk [vmem:[#allocation3 + $0xa0] sm:$0xff] %vm432, %v3134
      %3167 = vst.msk [vmem:[#allocation3 + $0xa8] sm:$0xff] %vm432, %v3135
      %3168 = vst.msk [vmem:[#allocation3 + $0xb0] sm:$0xff] %vm432, %v3136
      %3169 = vst.msk [vmem:[#allocation3 + $0xb8] sm:$0xff] %vm432, %v3137
      %3170 = vst.msk [vmem:[#allocation3 + $0xc0] sm:$0xff] %vm432, %v3138
      %3171 = vst.msk [vmem:[#allocation3 + $0xc8] sm:$0xff] %vm432, %v3139
      %3172 = vst.msk [vmem:[#allocation3 + $0xd0] sm:$0xff] %vm432, %v3140
      %3173 = vst.msk [vmem:[#allocation3 + $0xd8] sm:$0xff] %vm432, %v3141
      %3174 = vst.msk [vmem:[#allocation3 + $0xe0] sm:$0xff] %vm432, %v3142
      %3175 = vst.msk [vmem:[#allocation3 + $0xe8] sm:$0xff] %vm432, %v3143
      %3176 = vst.msk [vmem:[#allocation3 + $0xf0] sm:$0xff] %vm432, %v3144
      %3177 = vst.msk [vmem:[#allocation3 + $0xf8] sm:$0xff] %vm432, %v3145
      %v3182 = vrot.slane %v2058, 5
      %v3183 = vrot.slane %v3182, 4
      %v3184 = vrot.slane %v2059, 5
      %v3185 = vsel %vm1598, %v3183, %v3184
      %v3186 = vrot.slane %v3184, 4
      %v3187 = vrot.slane %v2060, 5
      %v3188 = vsel %vm1598, %v3186, %v3187
      %v3189 = vrot.slane %v3187, 4
      %v3190 = vrot.slane %v2061, 5
      %v3191 = vsel %vm1598, %v3189, %v3190
      %v3192 = vrot.slane %v3190, 4
      %v3193 = vrot.slane %v2062, 5
      %v3194 = vsel %vm1598, %v3192, %v3193
      %v3195 = vrot.slane %v3193, 4
      %v3196 = vrot.slane %v2063, 5
      %v3197 = vsel %vm1598, %v3195, %v3196
      %v3198 = vrot.slane %v3196, 4
      %v3199 = vrot.slane %v2064, 5
      %v3200 = vsel %vm1598, %v3198, %v3199
      %v3201 = vrot.slane %v3199, 4
      %v3202 = vrot.slane %v2065, 5
      %v3203 = vsel %vm1598, %v3201, %v3202
      %v3204 = vrot.slane %v3202, 4
      %v3205 = vrot.slane %v2066, 5
      %v3206 = vsel %vm1598, %v3204, %v3205
      %v3207 = vrot.slane %v2067, 5
      %v3208 = vrot.slane %v3207, 4
      %v3209 = vrot.slane %v2068, 5
      %v3210 = vsel %vm1598, %v3208, %v3209
      %v3211 = vrot.slane %v3209, 4
      %v3212 = vrot.slane %v2069, 5
      %v3213 = vsel %vm1598, %v3211, %v3212
      %v3214 = vrot.slane %v3212, 4
      %v3215 = vrot.slane %v2070, 5
      %v3216 = vsel %vm1598, %v3214, %v3215
      %v3217 = vrot.slane %v3215, 4
      %v3218 = vrot.slane %v2071, 5
      %v3219 = vsel %vm1598, %v3217, %v3218
      %v3220 = vrot.slane %v3218, 4
      %v3221 = vrot.slane %v2072, 5
      %v3222 = vsel %vm1598, %v3220, %v3221
      %v3223 = vrot.slane %v3221, 4
      %v3224 = vrot.slane %v2073, 5
      %v3225 = vsel %vm1598, %v3223, %v3224
      %v3226 = vrot.slane %v3224, 4
      %v3227 = vrot.slane %v2074, 5
      %v3228 = vsel %vm1598, %v3226, %v3227
      %v3229 = vrot.slane %v3227, 4
      %v3230 = vrot.slane %v2075, 5
      %v3231 = vsel %vm1598, %v3229, %v3230
      %v3232 = vrot.slane %v2076, 5
      %v3233 = vrot.slane %v3232, 4
      %v3234 = vrot.slane %v2077, 5
      %v3235 = vsel %vm1598, %v3233, %v3234
      %v3236 = vrot.slane %v3234, 4
      %v3237 = vrot.slane %v2078, 5
      %v3238 = vsel %vm1598, %v3236, %v3237
      %v3239 = vrot.slane %v3237, 4
      %v3240 = vrot.slane %v2079, 5
      %v3241 = vsel %vm1598, %v3239, %v3240
      %v3242 = vrot.slane %v3240, 4
      %v3243 = vrot.slane %v2080, 5
      %v3244 = vsel %vm1598, %v3242, %v3243
      %v3245 = vrot.slane %v3243, 4
      %v3246 = vrot.slane %v2081, 5
      %v3247 = vsel %vm1598, %v3245, %v3246
      %v3248 = vrot.slane %v3246, 4
      %v3249 = vrot.slane %v2082, 5
      %v3250 = vsel %vm1598, %v3248, %v3249
      %v3251 = vrot.slane %v3249, 4
      %v3252 = vrot.slane %v2083, 5
      %v3253 = vsel %vm1598, %v3251, %v3252
      %v3254 = vrot.slane %v3252, 4
      %v3255 = vrot.slane %v2084, 5
      %v3256 = vsel %vm1598, %v3254, %v3255
      %v3257 = vrot.slane %v2085, 5
      %v3258 = vrot.slane %v3257, 4
      %v3259 = vrot.slane %v2086, 5
      %v3260 = vsel %vm1598, %v3258, %v3259
      %v3261 = vrot.slane %v3259, 4
      %v3262 = vrot.slane %v2087, 5
      %v3263 = vsel %vm1598, %v3261, %v3262
      %v3264 = vrot.slane %v3262, 4
      %v3265 = vrot.slane %v2088, 5
      %v3266 = vsel %vm1598, %v3264, %v3265
      %v3267 = vrot.slane %v3265, 4
      %v3268 = vrot.slane %v2089, 5
      %v3269 = vsel %vm1598, %v3267, %v3268
      %v3270 = vrot.slane %v3268, 4
      %v3271 = vrot.slane %v2090, 5
      %v3272 = vsel %vm1598, %v3270, %v3271
      %v3273 = vrot.slane %v3271, 4
      %v3274 = vrot.slane %v2091, 5
      %v3275 = vsel %vm1598, %v3273, %v3274
      %v3276 = vrot.slane %v3274, 4
      %v3277 = vrot.slane %v2092, 5
      %v3278 = vsel %vm1598, %v3276, %v3277
      %v3279 = vrot.slane %v3277, 4
      %v3280 = vrot.slane %v2093, 5
      %v3281 = vsel %vm1598, %v3279, %v3280
      %v3282 = vld [vmem:[#allocation3] sm:$0xff]
      %v3283 = vld [vmem:[#allocation3 + $0x8] sm:$0xff]
      %v3284 = vld [vmem:[#allocation3 + $0x10] sm:$0xff]
      %v3285 = vld [vmem:[#allocation3 + $0x18] sm:$0xff]
      %v3286 = vld [vmem:[#allocation3 + $0x20] sm:$0xff]
      %v3287 = vld [vmem:[#allocation3 + $0x28] sm:$0xff]
      %v3288 = vld [vmem:[#allocation3 + $0x30] sm:$0xff]
      %v3289 = vld [vmem:[#allocation3 + $0x38] sm:$0xff]
      %v3290 = vld [vmem:[#allocation3 + $0x40] sm:$0xff]
      %v3291 = vld [vmem:[#allocation3 + $0x48] sm:$0xff]
      %v3292 = vld [vmem:[#allocation3 + $0x50] sm:$0xff]
      %v3293 = vld [vmem:[#allocation3 + $0x58] sm:$0xff]
      %v3294 = vld [vmem:[#allocation3 + $0x60] sm:$0xff]
      %v3295 = vld [vmem:[#allocation3 + $0x68] sm:$0xff]
      %v3296 = vld [vmem:[#allocation3 + $0x70] sm:$0xff]
      %v3297 = vld [vmem:[#allocation3 + $0x78] sm:$0xff]
      %v3298 = vld [vmem:[#allocation3 + $0x80] sm:$0xff]
      %v3299 = vld [vmem:[#allocation3 + $0x88] sm:$0xff]
      %v3300 = vld [vmem:[#allocation3 + $0x90] sm:$0xff]
      %v3301 = vld [vmem:[#allocation3 + $0x98] sm:$0xff]
      %v3302 = vld [vmem:[#allocation3 + $0xa0] sm:$0xff]
      %v3303 = vld [vmem:[#allocation3 + $0xa8] sm:$0xff]
      %v3304 = vld [vmem:[#allocation3 + $0xb0] sm:$0xff]
      %v3305 = vld [vmem:[#allocation3 + $0xb8] sm:$0xff]
      %v3306 = vld [vmem:[#allocation3 + $0xc0] sm:$0xff]
      %v3307 = vld [vmem:[#allocation3 + $0xc8] sm:$0xff]
      %v3308 = vld [vmem:[#allocation3 + $0xd0] sm:$0xff]
      %v3309 = vld [vmem:[#allocation3 + $0xd8] sm:$0xff]
      %v3310 = vld [vmem:[#allocation3 + $0xe0] sm:$0xff]
      %v3311 = vld [vmem:[#allocation3 + $0xe8] sm:$0xff]
      %v3312 = vld [vmem:[#allocation3 + $0xf0] sm:$0xff]
      %v3313 = vld [vmem:[#allocation3 + $0xf8] sm:$0xff]
      %s3314 = scalar_lea.vmem %s2, 10
      %v3315 = vld [vmem:[%s3314] sm:$0x3]
      %v3316 = vunpack.c.l.b16 %v3185
      %v3317 = vunpack.c.l.b16 %v3188
      %v3318 = vunpack.c.l.b16 %v3191
      %v3319 = vunpack.c.l.b16 %v3194
      %v3320 = vunpack.c.l.b16 %v3197
      %v3321 = vunpack.c.l.b16 %v3200
      %v3322 = vunpack.c.l.b16 %v3203
      %v3323 = vunpack.c.l.b16 %v3206
      %v3324 = vunpack.c.l.b16 %v3210
      %v3325 = vunpack.c.l.b16 %v3213
      %v3326 = vunpack.c.l.b16 %v3216
      %v3327 = vunpack.c.l.b16 %v3219
      %v3328 = vunpack.c.l.b16 %v3222
      %v3329 = vunpack.c.l.b16 %v3225
      %v3330 = vunpack.c.l.b16 %v3228
      %v3331 = vunpack.c.l.b16 %v3231
      %v3332 = vunpack.c.l.b16 %v3235
      %v3333 = vunpack.c.l.b16 %v3238
      %v3334 = vunpack.c.l.b16 %v3241
      %v3335 = vunpack.c.l.b16 %v3244
      %v3336 = vunpack.c.l.b16 %v3247
      %v3337 = vunpack.c.l.b16 %v3250
      %v3338 = vunpack.c.l.b16 %v3253
      %v3339 = vunpack.c.l.b16 %v3256
      %v3340 = vunpack.c.l.b16 %v3260
      %v3341 = vunpack.c.l.b16 %v3263
      %v3342 = vunpack.c.l.b16 %v3266
      %v3343 = vunpack.c.l.b16 %v3269
      %v3344 = vunpack.c.l.b16 %v3272
      %v3345 = vunpack.c.l.b16 %v3275
      %v3346 = vunpack.c.l.b16 %v3278
      %v3347 = vunpack.c.l.b16 %v3281
      %v3348 = vpack.c.b16 %v3317, %v3316
      %v3349 = vpack.c.b16 %v3319, %v3318
      %v3350 = vpack.c.b16 %v3321, %v3320
      %v3351 = vpack.c.b16 %v3323, %v3322
      %v3352 = vpack.c.b16 %v3325, %v3324
      %v3353 = vpack.c.b16 %v3327, %v3326
      %v3354 = vpack.c.b16 %v3329, %v3328
      %v3355 = vpack.c.b16 %v3331, %v3330
      %v3356 = vpack.c.b16 %v3333, %v3332
      %v3357 = vpack.c.b16 %v3335, %v3334
      %v3358 = vpack.c.b16 %v3337, %v3336
      %v3359 = vpack.c.b16 %v3339, %v3338
      %v3360 = vpack.c.b16 %v3341, %v3340
      %v3361 = vpack.c.b16 %v3343, %v3342
      %v3362 = vpack.c.b16 %v3345, %v3344
      %v3363 = vpack.c.b16 %v3347, %v3346
      %v3365 = vsel %vm614, %v3348, 0
      %v3368 = vsel %vm614, %v3349, 0
      %v3371 = vsel %vm614, %v3350, 0
      %v3374 = vsel %vm614, %v3351, 0
      %v3377 = vsel %vm614, %v3352, 0
      %v3380 = vsel %vm614, %v3353, 0
      %v3383 = vsel %vm614, %v3354, 0
      %v3386 = vsel %vm614, %v3355, 0
      %v3389 = vsel %vm614, %v3356, 0
      %v3392 = vsel %vm614, %v3357, 0
      %v3395 = vsel %vm614, %v3358, 0
      %v3398 = vsel %vm614, %v3359, 0
      %v3401 = vsel %vm614, %v3360, 0
      %v3404 = vsel %vm614, %v3361, 0
      %v3407 = vsel %vm614, %v3362, 0
      %v3410 = vsel %vm614, %v3363, 0
      %v3413 = vand.u32 %v3315, %v666
      %3415 = vmatprep.subr.bf16.mxu0 0
      %3416 = vmatpush1.bf16.msra.mxu0 %v3413
      %3417 = vmatprep.subr.bf16.mxu0 0
      %3418 = vmatpush1.bf16.msra.mxu0 0
      %3419 = vmatprep.subr.bf16.mxu0 0
      %3420 = vmatpush1.bf16.msra.mxu0 0
      %3421 = vmatprep.subr.bf16.mxu0 0
      %3422 = vmatpush1.bf16.msra.mxu0 0
      %3423 = vmatprep.subr.bf16.mxu0 0
      %3424 = vmatpush1.bf16.msra.mxu0 0
      %3425 = vmatprep.subr.bf16.mxu0 0
      %3426 = vmatpush1.bf16.msra.mxu0 0
      %3427 = vmatprep.subr.bf16.mxu0 0
      %3428 = vmatpush1.bf16.msra.mxu0 0
      %3429 = vmatprep.subr.bf16.mxu0 0
      %3430 = vmatpush1.bf16.msra.mxu0 0
      %3431 = vmatprep.subr.bf16.mxu0 0
      %3432 = vmatpush1.bf16.msra.mxu0 0
      %3433 = vmatprep.subr.bf16.mxu0 0
      %3434 = vmatpush1.bf16.msra.mxu0 0
      %3435 = vmatprep.subr.bf16.mxu0 0
      %3436 = vmatpush1.bf16.msra.mxu0 0
      %3437 = vmatprep.subr.bf16.mxu0 0
      %3438 = vmatpush1.bf16.msra.mxu0 0
      %3439 = vmatprep.subr.bf16.mxu0 0
      %3440 = vmatpush1.bf16.msra.mxu0 0
      %3441 = vmatprep.subr.bf16.mxu0 0
      %3442 = vmatpush1.bf16.msra.mxu0 0
      %3443 = vmatprep.subr.bf16.mxu0 0
      %3444 = vmatpush1.bf16.msra.mxu0 0
      %3445 = vmatprep.subr.bf16.mxu0 0
      %3446 = vmatpush1.bf16.msra.mxu0 0
      %3447 = vmatprep.mubr.bf16.mxu0 0
      %3448 = vmatmul.mubr.bf16.gmra.mrb[0].mxu0 %v3365
      %v3449 = vpop.f32.mrb[0].mxu0
      %v3450 = vadd.f32 0.0, %v3449
      %v3451 = vpop.f32.mrb[0].mxu0
      %v3452 = vpop.f32.mrb[0].mxu0
      %v3453 = vadd.f32 0.0, %v3452
      %v3454 = vpop.f32.mrb[0].mxu0
      %3455 = vmatprep.mubr.bf16.mxu0 0
      %3456 = vmatmul.mubr.bf16.gmra.mrb[0].mxu0 %v3368
      %v3457 = vpop.f32.mrb[0].mxu0
      %v3458 = vadd.f32 0.0, %v3457
      %v3459 = vpop.f32.mrb[0].mxu0
      %v3460 = vpop.f32.mrb[0].mxu0
      %v3461 = vadd.f32 0.0, %v3460
      %v3462 = vpop.f32.mrb[0].mxu0
      %3463 = vmatprep.mubr.bf16.mxu0 0
      %3464 = vmatmul.mubr.bf16.gmra.mrb[0].mxu0 %v3371
      %v3465 = vpop.f32.mrb[0].mxu0
      %v3466 = vadd.f32 0.0, %v3465
      %v3467 = vpop.f32.mrb[0].mxu0
      %v3468 = vpop.f32.mrb[0].mxu0
      %v3469 = vadd.f32 0.0, %v3468
      %v3470 = vpop.f32.mrb[0].mxu0
      %3471 = vmatprep.mubr.bf16.mxu0 0
      %3472 = vmatmul.mubr.bf16.gmra.mrb[0].mxu0 %v3374
      %v3473 = vpop.f32.mrb[0].mxu0
      %v3474 = vadd.f32 0.0, %v3473
      %v3475 = vpop.f32.mrb[0].mxu0
      %v3476 = vpop.f32.mrb[0].mxu0
      %v3477 = vadd.f32 0.0, %v3476
      %v3478 = vpop.f32.mrb[0].mxu0
      %3479 = vmatprep.mubr.bf16.mxu0 0
      %3480 = vmatmul.mubr.bf16.gmra.mrb[0].mxu0 %v3377
      %v3481 = vpop.f32.mrb[0].mxu0
      %v3482 = vadd.f32 0.0, %v3481
      %v3483 = vpop.f32.mrb[0].mxu0
      %v3484 = vpop.f32.mrb[0].mxu0
      %v3485 = vadd.f32 0.0, %v3484
      %v3486 = vpop.f32.mrb[0].mxu0
      %3487 = vmatprep.mubr.bf16.mxu0 0
      %3488 = vmatmul.mubr.bf16.gmra.mrb[0].mxu0 %v3380
      %v3489 = vpop.f32.mrb[0].mxu0
      %v3490 = vadd.f32 0.0, %v3489
      %v3491 = vpop.f32.mrb[0].mxu0
      %v3492 = vpop.f32.mrb[0].mxu0
      %v3493 = vadd.f32 0.0, %v3492
      %v3494 = vpop.f32.mrb[0].mxu0
      %3495 = vmatprep.mubr.bf16.mxu0 0
      %3496 = vmatmul.mubr.bf16.gmra.mrb[0].mxu0 %v3383
      %v3497 = vpop.f32.mrb[0].mxu0
      %v3498 = vadd.f32 0.0, %v3497
      %v3499 = vpop.f32.mrb[0].mxu0
      %v3500 = vpop.f32.mrb[0].mxu0
      %v3501 = vadd.f32 0.0, %v3500
      %v3502 = vpop.f32.mrb[0].mxu0
      %3503 = vmatprep.mubr.bf16.mxu0 0
      %3504 = vmatmul.mubr.bf16.gmra.mrb[0].mxu0 %v3386
      %v3505 = vpop.f32.mrb[0].mxu0
      %v3506 = vadd.f32 0.0, %v3505
      %v3507 = vpop.f32.mrb[0].mxu0
      %v3508 = vpop.f32.mrb[0].mxu0
      %v3509 = vadd.f32 0.0, %v3508
      %v3510 = vpop.f32.mrb[0].mxu0
      %3511 = vmatprep.mubr.bf16.mxu0 0
      %3512 = vmatmul.mubr.bf16.gmra.mrb[0].mxu0 %v3389
      %v3513 = vpop.f32.mrb[0].mxu0
      %v3514 = vadd.f32 0.0, %v3513
      %v3515 = vpop.f32.mrb[0].mxu0
      %v3516 = vpop.f32.mrb[0].mxu0
      %v3517 = vadd.f32 0.0, %v3516
      %v3518 = vpop.f32.mrb[0].mxu0
      %3519 = vmatprep.mubr.bf16.mxu0 0
      %3520 = vmatmul.mubr.bf16.gmra.mrb[0].mxu0 %v3392
      %v3521 = vpop.f32.mrb[0].mxu0
      %v3522 = vadd.f32 0.0, %v3521
      %v3523 = vpop.f32.mrb[0].mxu0
      %v3524 = vpop.f32.mrb[0].mxu0
      %v3525 = vadd.f32 0.0, %v3524
      %v3526 = vpop.f32.mrb[0].mxu0
      %3527 = vmatprep.mubr.bf16.mxu0 0
      %3528 = vmatmul.mubr.bf16.gmra.mrb[0].mxu0 %v3395
      %v3529 = vpop.f32.mrb[0].mxu0
      %v3530 = vadd.f32 0.0, %v3529
      %v3531 = vpop.f32.mrb[0].mxu0
      %v3532 = vpop.f32.mrb[0].mxu0
      %v3533 = vadd.f32 0.0, %v3532
      %v3534 = vpop.f32.mrb[0].mxu0
      %3535 = vmatprep.mubr.bf16.mxu0 0
      %3536 = vmatmul.mubr.bf16.gmra.mrb[0].mxu0 %v3398
      %v3537 = vpop.f32.mrb[0].mxu0
      %v3538 = vadd.f32 0.0, %v3537
      %v3539 = vpop.f32.mrb[0].mxu0
      %v3540 = vpop.f32.mrb[0].mxu0
      %v3541 = vadd.f32 0.0, %v3540
      %v3542 = vpop.f32.mrb[0].mxu0
      %3543 = vmatprep.mubr.bf16.mxu0 0
      %3544 = vmatmul.mubr.bf16.gmra.mrb[0].mxu0 %v3401
      %v3545 = vpop.f32.mrb[0].mxu0
      %v3546 = vadd.f32 0.0, %v3545
      %v3547 = vpop.f32.mrb[0].mxu0
      %v3548 = vpop.f32.mrb[0].mxu0
      %v3549 = vadd.f32 0.0, %v3548
      %v3550 = vpop.f32.mrb[0].mxu0
      %3551 = vmatprep.mubr.bf16.mxu0 0
      %3552 = vmatmul.mubr.bf16.gmra.mrb[0].mxu0 %v3404
      %v3553 = vpop.f32.mrb[0].mxu0
      %v3554 = vadd.f32 0.0, %v3553
      %v3555 = vpop.f32.mrb[0].mxu0
      %v3556 = vpop.f32.mrb[0].mxu0
      %v3557 = vadd.f32 0.0, %v3556
      %v3558 = vpop.f32.mrb[0].mxu0
      %3559 = vmatprep.mubr.bf16.mxu0 0
      %3560 = vmatmul.mubr.bf16.gmra.mrb[0].mxu0 %v3407
      %v3561 = vpop.f32.mrb[0].mxu0
      %v3562 = vadd.f32 0.0, %v3561
      %v3563 = vpop.f32.mrb[0].mxu0
      %v3564 = vpop.f32.mrb[0].mxu0
      %v3565 = vadd.f32 0.0, %v3564
      %v3566 = vpop.f32.mrb[0].mxu0
      %3567 = vmatprep.mubr.bf16.mxu0 0
      %3568 = vmatmul.mubr.bf16.gmra.mrb[0].mxu0 %v3410
      %v3569 = vpop.f32.mrb[0].mxu0
      %v3570 = vadd.f32 0.0, %v3569
      %v3571 = vpop.f32.mrb[0].mxu0
      %v3572 = vpop.f32.mrb[0].mxu0
      %v3573 = vadd.f32 0.0, %v3572
      %v3574 = vpop.f32.mrb[0].mxu0
      %3575 = vdwg.mxu0
      %v3576 = vadd.f32 %v3282, %v3450
      %v3577 = vadd.f32 %v3283, %v3453
      %v3578 = vadd.f32 %v3284, %v3458
      %v3579 = vadd.f32 %v3285, %v3461
      %v3580 = vadd.f32 %v3286, %v3466
      %v3581 = vadd.f32 %v3287, %v3469
      %v3582 = vadd.f32 %v3288, %v3474
      %v3583 = vadd.f32 %v3289, %v3477
      %v3584 = vadd.f32 %v3290, %v3482
      %v3585 = vadd.f32 %v3291, %v3485
      %v3586 = vadd.f32 %v3292, %v3490
      %v3587 = vadd.f32 %v3293, %v3493
      %v3588 = vadd.f32 %v3294, %v3498
      %v3589 = vadd.f32 %v3295, %v3501
      %v3590 = vadd.f32 %v3296, %v3506
      %v3591 = vadd.f32 %v3297, %v3509
      %v3592 = vadd.f32 %v3298, %v3514
      %v3593 = vadd.f32 %v3299, %v3517
      %v3594 = vadd.f32 %v3300, %v3522
      %v3595 = vadd.f32 %v3301, %v3525
      %v3596 = vadd.f32 %v3302, %v3530
      %v3597 = vadd.f32 %v3303, %v3533
      %v3598 = vadd.f32 %v3304, %v3538
      %v3599 = vadd.f32 %v3305, %v3541
      %v3600 = vadd.f32 %v3306, %v3546
      %v3601 = vadd.f32 %v3307, %v3549
      %v3602 = vadd.f32 %v3308, %v3554
      %v3603 = vadd.f32 %v3309, %v3557
      %v3604 = vadd.f32 %v3310, %v3562
      %v3605 = vadd.f32 %v3311, %v3565
      %v3606 = vadd.f32 %v3312, %v3570
      %v3607 = vadd.f32 %v3313, %v3573
      %3608 = vst.msk [vmem:[#allocation3] sm:$0xff] %vm432, %v3576
      %3609 = vst.msk [vmem:[#allocation3 + $0x8] sm:$0xff] %vm432, %v3577
      %3610 = vst.msk [vmem:[#allocation3 + $0x10] sm:$0xff] %vm432, %v3578
      %3611 = vst.msk [vmem:[#allocation3 + $0x18] sm:$0xff] %vm432, %v3579
      %3612 = vst.msk [vmem:[#allocation3 + $0x20] sm:$0xff] %vm432, %v3580
      %3613 = vst.msk [vmem:[#allocation3 + $0x28] sm:$0xff] %vm432, %v3581
      %3614 = vst.msk [vmem:[#allocation3 + $0x30] sm:$0xff] %vm432, %v3582
      %3615 = vst.msk [vmem:[#allocation3 + $0x38] sm:$0xff] %vm432, %v3583
      %3616 = vst.msk [vmem:[#allocation3 + $0x40] sm:$0xff] %vm432, %v3584
      %3617 = vst.msk [vmem:[#allocation3 + $0x48] sm:$0xff] %vm432, %v3585
      %3618 = vst.msk [vmem:[#allocation3 + $0x50] sm:$0xff] %vm432, %v3586
      %3619 = vst.msk [vmem:[#allocation3 + $0x58] sm:$0xff] %vm432, %v3587
      %3620 = vst.msk [vmem:[#allocation3 + $0x60] sm:$0xff] %vm432, %v3588
      %3621 = vst.msk [vmem:[#allocation3 + $0x68] sm:$0xff] %vm432, %v3589
      %3622 = vst.msk [vmem:[#allocation3 + $0x70] sm:$0xff] %vm432, %v3590
      %3623 = vst.msk [vmem:[#allocation3 + $0x78] sm:$0xff] %vm432, %v3591
      %3624 = vst.msk [vmem:[#allocation3 + $0x80] sm:$0xff] %vm432, %v3592
      %3625 = vst.msk [vmem:[#allocation3 + $0x88] sm:$0xff] %vm432, %v3593
      %3626 = vst.msk [vmem:[#allocation3 + $0x90] sm:$0xff] %vm432, %v3594
      %3627 = vst.msk [vmem:[#allocation3 + $0x98] sm:$0xff] %vm432, %v3595
      %3628 = vst.msk [vmem:[#allocation3 + $0xa0] sm:$0xff] %vm432, %v3596
      %3629 = vst.msk [vmem:[#allocation3 + $0xa8] sm:$0xff] %vm432, %v3597
      %3630 = vst.msk [vmem:[#allocation3 + $0xb0] sm:$0xff] %vm432, %v3598
      %3631 = vst.msk [vmem:[#allocation3 + $0xb8] sm:$0xff] %vm432, %v3599
      %3632 = vst.msk [vmem:[#allocation3 + $0xc0] sm:$0xff] %vm432, %v3600
      %3633 = vst.msk [vmem:[#allocation3 + $0xc8] sm:$0xff] %vm432, %v3601
      %3634 = vst.msk [vmem:[#allocation3 + $0xd0] sm:$0xff] %vm432, %v3602
      %3635 = vst.msk [vmem:[#allocation3 + $0xd8] sm:$0xff] %vm432, %v3603
      %3636 = vst.msk [vmem:[#allocation3 + $0xe0] sm:$0xff] %vm432, %v3604
      %3637 = vst.msk [vmem:[#allocation3 + $0xe8] sm:$0xff] %vm432, %v3605
      %3638 = vst.msk [vmem:[#allocation3 + $0xf0] sm:$0xff] %vm432, %v3606
      %3639 = vst.msk [vmem:[#allocation3 + $0xf8] sm:$0xff] %vm432, %v3607
      %s3640 = scalar_lea.vmem [#allocation2], 72
      %v3641 = vld [vmem:[%s3640] sm:$0xf]
      %v3642 = vld [vmem:[%s3640 + $0x4] sm:$0xf]
      %v3643 = vld [vmem:[%s3640 + $0x8] sm:$0xf]
      %v3644 = vld [vmem:[%s3640 + $0xc] sm:$0xf]
      %v3645 = vld [vmem:[%s3640 + $0x10] sm:$0xf]
      %v3646 = vld [vmem:[%s3640 + $0x14] sm:$0xf]
      %v3647 = vld [vmem:[%s3640 + $0x18] sm:$0xf]
      %v3648 = vld [vmem:[%s3640 + $0x1c] sm:$0xf]
      %v3649 = vld [vmem:[%s3640 + $0x20] sm:$0x1]
      %v3650 = vld [vmem:[%s3640 + $0x24] sm:$0xf]
      %v3651 = vld [vmem:[%s3640 + $0x28] sm:$0xf]
      %v3652 = vld [vmem:[%s3640 + $0x2c] sm:$0xf]
      %v3653 = vld [vmem:[%s3640 + $0x30] sm:$0xf]
      %v3654 = vld [vmem:[%s3640 + $0x34] sm:$0xf]
      %v3655 = vld [vmem:[%s3640 + $0x38] sm:$0xf]
      %v3656 = vld [vmem:[%s3640 + $0x3c] sm:$0xf]
      %v3657 = vld [vmem:[%s3640 + $0x40] sm:$0xf]
      %v3658 = vld [vmem:[%s3640 + $0x44] sm:$0x1]
      %v3659 = vld [vmem:[%s3640 + $0x48] sm:$0xf]
      %v3660 = vld [vmem:[%s3640 + $0x4c] sm:$0xf]
      %v3661 = vld [vmem:[%s3640 + $0x50] sm:$0xf]
      %v3662 = vld [vmem:[%s3640 + $0x54] sm:$0xf]
      %v3663 = vld [vmem:[%s3640 + $0x58] sm:$0xf]
      %v3664 = vld [vmem:[%s3640 + $0x5c] sm:$0xf]
      %v3665 = vld [vmem:[%s3640 + $0x60] sm:$0xf]
      %v3666 = vld [vmem:[%s3640 + $0x64] sm:$0xf]
      %v3667 = vld [vmem:[%s3640 + $0x68] sm:$0x1]
      %v3668 = vld [vmem:[%s3640 + $0x6c] sm:$0xf]
      %v3669 = vld [vmem:[%s3640 + $0x70] sm:$0xf]
      %v3670 = vld [vmem:[%s3640 + $0x74] sm:$0xf]
      %v3671 = vld [vmem:[%s3640 + $0x78] sm:$0xf]
      %v3672 = vld [vmem:[%s3640 + $0x7c] sm:$0xf]
      %v3673 = vld [vmem:[%s3640 + $0x80] sm:$0xf]
      %v3674 = vld [vmem:[%s3640 + $0x84] sm:$0xf]
      %v3675 = vld [vmem:[%s3640 + $0x88] sm:$0xf]
      %v3676 = vld [vmem:[%s3640 + $0x8c] sm:$0x1]
      %v3677 = vld [vmem:[#allocation3] sm:$0xff]
      %v3678 = vld [vmem:[#allocation3 + $0x8] sm:$0xff]
      %v3679 = vld [vmem:[#allocation3 + $0x10] sm:$0xff]
      %v3680 = vld [vmem:[#allocation3 + $0x18] sm:$0xff]
      %v3681 = vld [vmem:[#allocation3 + $0x20] sm:$0xff]
      %v3682 = vld [vmem:[#allocation3 + $0x28] sm:$0xff]
      %v3683 = vld [vmem:[#allocation3 + $0x30] sm:$0xff]
      %v3684 = vld [vmem:[#allocation3 + $0x38] sm:$0xff]
      %v3685 = vld [vmem:[#allocation3 + $0x40] sm:$0xff]
      %v3686 = vld [vmem:[#allocation3 + $0x48] sm:$0xff]
      %v3687 = vld [vmem:[#allocation3 + $0x50] sm:$0xff]
      %v3688 = vld [vmem:[#allocation3 + $0x58] sm:$0xff]
      %v3689 = vld [vmem:[#allocation3 + $0x60] sm:$0xff]
      %v3690 = vld [vmem:[#allocation3 + $0x68] sm:$0xff]
      %v3691 = vld [vmem:[#allocation3 + $0x70] sm:$0xff]
      %v3692 = vld [vmem:[#allocation3 + $0x78] sm:$0xff]
      %v3693 = vld [vmem:[#allocation3 + $0x80] sm:$0xff]
      %v3694 = vld [vmem:[#allocation3 + $0x88] sm:$0xff]
      %v3695 = vld [vmem:[#allocation3 + $0x90] sm:$0xff]
      %v3696 = vld [vmem:[#allocation3 + $0x98] sm:$0xff]
      %v3697 = vld [vmem:[#allocation3 + $0xa0] sm:$0xff]
      %v3698 = vld [vmem:[#allocation3 + $0xa8] sm:$0xff]
      %v3699 = vld [vmem:[#allocation3 + $0xb0] sm:$0xff]
      %v3700 = vld [vmem:[#allocation3 + $0xb8] sm:$0xff]
      %v3701 = vld [vmem:[#allocation3 + $0xc0] sm:$0xff]
      %v3702 = vld [vmem:[#allocation3 + $0xc8] sm:$0xff]
      %v3703 = vld [vmem:[#allocation3 + $0xd0] sm:$0xff]
      %v3704 = vld [vmem:[#allocation3 + $0xd8] sm:$0xff]
      %v3705 = vld [vmem:[#allocation3 + $0xe0] sm:$0xff]
      %v3706 = vld [vmem:[#allocation3 + $0xe8] sm:$0xff]
      %v3707 = vld [vmem:[#allocation3 + $0xf0] sm:$0xff]
      %v3708 = vld [vmem:[#allocation3 + $0xf8] sm:$0xff]
      %s3709 = scalar_lea.vmem %s2, 12
      %v3710 = vld [vmem:[%s3709] sm:$0x3]
      %v3743 = vunpack.c.l.b16 %v3641
      %v3744 = vunpack.c.l.b16 %v3642
      %v3745 = vunpack.c.l.b16 %v3643
      %v3746 = vunpack.c.l.b16 %v3644
      %v3747 = vunpack.c.l.b16 %v3645
      %v3748 = vunpack.c.l.b16 %v3646
      %v3749 = vunpack.c.l.b16 %v3647
      %v3750 = vunpack.c.l.b16 %v3648
      %v3751 = vunpack.c.l.b16 %v3650
      %v3752 = vunpack.c.l.b16 %v3651
      %v3753 = vunpack.c.l.b16 %v3652
      %v3754 = vunpack.c.l.b16 %v3653
      %v3755 = vunpack.c.l.b16 %v3654
      %v3756 = vunpack.c.l.b16 %v3655
      %v3757 = vunpack.c.l.b16 %v3656
      %v3758 = vunpack.c.l.b16 %v3657
      %v3759 = vunpack.c.l.b16 %v3659
      %v3760 = vunpack.c.l.b16 %v3660
      %v3761 = vunpack.c.l.b16 %v3661
      %v3762 = vunpack.c.l.b16 %v3662
      %v3763 = vunpack.c.l.b16 %v3663
      %v3764 = vunpack.c.l.b16 %v3664
      %v3765 = vunpack.c.l.b16 %v3665
      %v3766 = vunpack.c.l.b16 %v3666
      %v3767 = vunpack.c.l.b16 %v3668
      %v3768 = vunpack.c.l.b16 %v3669
      %v3769 = vunpack.c.l.b16 %v3670
      %v3770 = vunpack.c.l.b16 %v3671
      %v3771 = vunpack.c.l.b16 %v3672
      %v3772 = vunpack.c.l.b16 %v3673
      %v3773 = vunpack.c.l.b16 %v3674
      %v3774 = vunpack.c.l.b16 %v3675
      %v3775 = vpack.c.b16 %v3744, %v3743
      %v3776 = vpack.c.b16 %v3746, %v3745
      %v3777 = vpack.c.b16 %v3748, %v3747
      %v3778 = vpack.c.b16 %v3750, %v3749
      %v3779 = vpack.c.b16 %v3752, %v3751
      %v3780 = vpack.c.b16 %v3754, %v3753
      %v3781 = vpack.c.b16 %v3756, %v3755
      %v3782 = vpack.c.b16 %v3758, %v3757
      %v3783 = vpack.c.b16 %v3760, %v3759
      %v3784 = vpack.c.b16 %v3762, %v3761
      %v3785 = vpack.c.b16 %v3764, %v3763
      %v3786 = vpack.c.b16 %v3766, %v3765
      %v3787 = vpack.c.b16 %v3768, %v3767
      %v3788 = vpack.c.b16 %v3770, %v3769
      %v3789 = vpack.c.b16 %v3772, %v3771
      %v3790 = vpack.c.b16 %v3774, %v3773
      %v3792 = vsel %vm614, %v3775, 0
      %v3795 = vsel %vm614, %v3776, 0
      %v3798 = vsel %vm614, %v3777, 0
      %v3801 = vsel %vm614, %v3778, 0
      %v3804 = vsel %vm614, %v3779, 0
      %v3807 = vsel %vm614, %v3780, 0
      %v3810 = vsel %vm614, %v3781, 0
      %v3813 = vsel %vm614, %v3782, 0
      %v3816 = vsel %vm614, %v3783, 0
      %v3819 = vsel %vm614, %v3784, 0
      %v3822 = vsel %vm614, %v3785, 0
      %v3825 = vsel %vm614, %v3786, 0
      %v3828 = vsel %vm614, %v3787, 0
      %v3831 = vsel %vm614, %v3788, 0
      %v3834 = vsel %vm614, %v3789, 0
      %v3837 = vsel %vm614, %v3790, 0
      %v3840 = vand.u32 %v3710, %v666
      %3842 = vmatprep.subr.bf16.mxu0 0
      %3843 = vmatpush1.bf16.msra.mxu0 %v3840
      %3844 = vmatprep.subr.bf16.mxu0 0
      %3845 = vmatpush1.bf16.msra.mxu0 0
      %3846 = vmatprep.subr.bf16.mxu0 0
      %3847 = vmatpush1.bf16.msra.mxu0 0
      %3848 = vmatprep.subr.bf16.mxu0 0
      %3849 = vmatpush1.bf16.msra.mxu0 0
      %3850 = vmatprep.subr.bf16.mxu0 0
      %3851 = vmatpush1.bf16.msra.mxu0 0
      %3852 = vmatprep.subr.bf16.mxu0 0
      %3853 = vmatpush1.bf16.msra.mxu0 0
      %3854 = vmatprep.subr.bf16.mxu0 0
      %3855 = vmatpush1.bf16.msra.mxu0 0
      %3856 = vmatprep.subr.bf16.mxu0 0
      %3857 = vmatpush1.bf16.msra.mxu0 0
      %3858 = vmatprep.subr.bf16.mxu0 0
      %3859 = vmatpush1.bf16.msra.mxu0 0
      %3860 = vmatprep.subr.bf16.mxu0 0
      %3861 = vmatpush1.bf16.msra.mxu0 0
      %3862 = vmatprep.subr.bf16.mxu0 0
      %3863 = vmatpush1.bf16.msra.mxu0 0
      %3864 = vmatprep.subr.bf16.mxu0 0
      %3865 = vmatpush1.bf16.msra.mxu0 0
      %3866 = vmatprep.subr.bf16.mxu0 0
      %3867 = vmatpush1.bf16.msra.mxu0 0
      %3868 = vmatprep.subr.bf16.mxu0 0
      %3869 = vmatpush1.bf16.msra.mxu0 0
      %3870 = vmatprep.subr.bf16.mxu0 0
      %3871 = vmatpush1.bf16.msra.mxu0 0
      %3872 = vmatprep.subr.bf16.mxu0 0
      %3873 = vmatpush1.bf16.msra.mxu0 0
      %3874 = vmatprep.mubr.bf16.mxu0 0
      %3875 = vmatmul.mubr.bf16.gmra.mrb[0].mxu0 %v3792
      %v3876 = vpop.f32.mrb[0].mxu0
      %v3877 = vadd.f32 0.0, %v3876
      %v3878 = vpop.f32.mrb[0].mxu0
      %v3879 = vpop.f32.mrb[0].mxu0
      %v3880 = vadd.f32 0.0, %v3879
      %v3881 = vpop.f32.mrb[0].mxu0
      %3882 = vmatprep.mubr.bf16.mxu0 0
      %3883 = vmatmul.mubr.bf16.gmra.mrb[0].mxu0 %v3795
      %v3884 = vpop.f32.mrb[0].mxu0
      %v3885 = vadd.f32 0.0, %v3884
      %v3886 = vpop.f32.mrb[0].mxu0
      %v3887 = vpop.f32.mrb[0].mxu0
      %v3888 = vadd.f32 0.0, %v3887
      %v3889 = vpop.f32.mrb[0].mxu0
      %3890 = vmatprep.mubr.bf16.mxu0 0
      %3891 = vmatmul.mubr.bf16.gmra.mrb[0].mxu0 %v3798
      %v3892 = vpop.f32.mrb[0].mxu0
      %v3893 = vadd.f32 0.0, %v3892
      %v3894 = vpop.f32.mrb[0].mxu0
      %v3895 = vpop.f32.mrb[0].mxu0
      %v3896 = vadd.f32 0.0, %v3895
      %v3897 = vpop.f32.mrb[0].mxu0
      %3898 = vmatprep.mubr.bf16.mxu0 0
      %3899 = vmatmul.mubr.bf16.gmra.mrb[0].mxu0 %v3801
      %v3900 = vpop.f32.mrb[0].mxu0
      %v3901 = vadd.f32 0.0, %v3900
      %v3902 = vpop.f32.mrb[0].mxu0
      %v3903 = vpop.f32.mrb[0].mxu0
      %v3904 = vadd.f32 0.0, %v3903
      %v3905 = vpop.f32.mrb[0].mxu0
      %3906 = vmatprep.mubr.bf16.mxu0 0
      %3907 = vmatmul.mubr.bf16.gmra.mrb[0].mxu0 %v3804
      %v3908 = vpop.f32.mrb[0].mxu0
      %v3909 = vadd.f32 0.0, %v3908
      %v3910 = vpop.f32.mrb[0].mxu0
      %v3911 = vpop.f32.mrb[0].mxu0
      %v3912 = vadd.f32 0.0, %v3911
      %v3913 = vpop.f32.mrb[0].mxu0
      %3914 = vmatprep.mubr.bf16.mxu0 0
      %3915 = vmatmul.mubr.bf16.gmra.mrb[0].mxu0 %v3807
      %v3916 = vpop.f32.mrb[0].mxu0
      %v3917 = vadd.f32 0.0, %v3916
      %v3918 = vpop.f32.mrb[0].mxu0
      %v3919 = vpop.f32.mrb[0].mxu0
      %v3920 = vadd.f32 0.0, %v3919
      %v3921 = vpop.f32.mrb[0].mxu0
      %3922 = vmatprep.mubr.bf16.mxu0 0
      %3923 = vmatmul.mubr.bf16.gmra.mrb[0].mxu0 %v3810
      %v3924 = vpop.f32.mrb[0].mxu0
      %v3925 = vadd.f32 0.0, %v3924
      %v3926 = vpop.f32.mrb[0].mxu0
      %v3927 = vpop.f32.mrb[0].mxu0
      %v3928 = vadd.f32 0.0, %v3927
      %v3929 = vpop.f32.mrb[0].mxu0
      %3930 = vmatprep.mubr.bf16.mxu0 0
      %3931 = vmatmul.mubr.bf16.gmra.mrb[0].mxu0 %v3813
      %v3932 = vpop.f32.mrb[0].mxu0
      %v3933 = vadd.f32 0.0, %v3932
      %v3934 = vpop.f32.mrb[0].mxu0
      %v3935 = vpop.f32.mrb[0].mxu0
      %v3936 = vadd.f32 0.0, %v3935
      %v3937 = vpop.f32.mrb[0].mxu0
      %3938 = vmatprep.mubr.bf16.mxu0 0
      %3939 = vmatmul.mubr.bf16.gmra.mrb[0].mxu0 %v3816
      %v3940 = vpop.f32.mrb[0].mxu0
      %v3941 = vadd.f32 0.0, %v3940
      %v3942 = vpop.f32.mrb[0].mxu0
      %v3943 = vpop.f32.mrb[0].mxu0
      %v3944 = vadd.f32 0.0, %v3943
      %v3945 = vpop.f32.mrb[0].mxu0
      %3946 = vmatprep.mubr.bf16.mxu0 0
      %3947 = vmatmul.mubr.bf16.gmra.mrb[0].mxu0 %v3819
      %v3948 = vpop.f32.mrb[0].mxu0
      %v3949 = vadd.f32 0.0, %v3948
      %v3950 = vpop.f32.mrb[0].mxu0
      %v3951 = vpop.f32.mrb[0].mxu0
      %v3952 = vadd.f32 0.0, %v3951
      %v3953 = vpop.f32.mrb[0].mxu0
      %3954 = vmatprep.mubr.bf16.mxu0 0
      %3955 = vmatmul.mubr.bf16.gmra.mrb[0].mxu0 %v3822
      %v3956 = vpop.f32.mrb[0].mxu0
      %v3957 = vadd.f32 0.0, %v3956
      %v3958 = vpop.f32.mrb[0].mxu0
      %v3959 = vpop.f32.mrb[0].mxu0
      %v3960 = vadd.f32 0.0, %v3959
      %v3961 = vpop.f32.mrb[0].mxu0
      %3962 = vmatprep.mubr.bf16.mxu0 0
      %3963 = vmatmul.mubr.bf16.gmra.mrb[0].mxu0 %v3825
      %v3964 = vpop.f32.mrb[0].mxu0
      %v3965 = vadd.f32 0.0, %v3964
      %v3966 = vpop.f32.mrb[0].mxu0
      %v3967 = vpop.f32.mrb[0].mxu0
      %v3968 = vadd.f32 0.0, %v3967
      %v3969 = vpop.f32.mrb[0].mxu0
      %3970 = vmatprep.mubr.bf16.mxu0 0
      %3971 = vmatmul.mubr.bf16.gmra.mrb[0].mxu0 %v3828
      %v3972 = vpop.f32.mrb[0].mxu0
      %v3973 = vadd.f32 0.0, %v3972
      %v3974 = vpop.f32.mrb[0].mxu0
      %v3975 = vpop.f32.mrb[0].mxu0
      %v3976 = vadd.f32 0.0, %v3975
      %v3977 = vpop.f32.mrb[0].mxu0
      %3978 = vmatprep.mubr.bf16.mxu0 0
      %3979 = vmatmul.mubr.bf16.gmra.mrb[0].mxu0 %v3831
      %v3980 = vpop.f32.mrb[0].mxu0
      %v3981 = vadd.f32 0.0, %v3980
      %v3982 = vpop.f32.mrb[0].mxu0
      %v3983 = vpop.f32.mrb[0].mxu0
      %v3984 = vadd.f32 0.0, %v3983
      %v3985 = vpop.f32.mrb[0].mxu0
      %3986 = vmatprep.mubr.bf16.mxu0 0
      %3987 = vmatmul.mubr.bf16.gmra.mrb[0].mxu0 %v3834
      %v3988 = vpop.f32.mrb[0].mxu0
      %v3989 = vadd.f32 0.0, %v3988
      %v3990 = vpop.f32.mrb[0].mxu0
      %v3991 = vpop.f32.mrb[0].mxu0
      %v3992 = vadd.f32 0.0, %v3991
      %v3993 = vpop.f32.mrb[0].mxu0
      %3994 = vmatprep.mubr.bf16.mxu0 0
      %3995 = vmatmul.mubr.bf16.gmra.mrb[0].mxu0 %v3837
      %v3996 = vpop.f32.mrb[0].mxu0
      %v3997 = vadd.f32 0.0, %v3996
      %v3998 = vpop.f32.mrb[0].mxu0
      %v3999 = vpop.f32.mrb[0].mxu0
      %v4000 = vadd.f32 0.0, %v3999
      %v4001 = vpop.f32.mrb[0].mxu0
      %4002 = vdwg.mxu0
      %v4003 = vadd.f32 %v3677, %v3877
      %v4004 = vadd.f32 %v3678, %v3880
      %v4005 = vadd.f32 %v3679, %v3885
      %v4006 = vadd.f32 %v3680, %v3888
      %v4007 = vadd.f32 %v3681, %v3893
      %v4008 = vadd.f32 %v3682, %v3896
      %v4009 = vadd.f32 %v3683, %v3901
      %v4010 = vadd.f32 %v3684, %v3904
      %v4011 = vadd.f32 %v3685, %v3909
      %v4012 = vadd.f32 %v3686, %v3912
      %v4013 = vadd.f32 %v3687, %v3917
      %v4014 = vadd.f32 %v3688, %v3920
      %v4015 = vadd.f32 %v3689, %v3925
      %v4016 = vadd.f32 %v3690, %v3928
      %v4017 = vadd.f32 %v3691, %v3933
      %v4018 = vadd.f32 %v3692, %v3936
      %v4019 = vadd.f32 %v3693, %v3941
      %v4020 = vadd.f32 %v3694, %v3944
      %v4021 = vadd.f32 %v3695, %v3949
      %v4022 = vadd.f32 %v3696, %v3952
      %v4023 = vadd.f32 %v3697, %v3957
      %v4024 = vadd.f32 %v3698, %v3960
      %v4025 = vadd.f32 %v3699, %v3965
      %v4026 = vadd.f32 %v3700, %v3968
      %v4027 = vadd.f32 %v3701, %v3973
      %v4028 = vadd.f32 %v3702, %v3976
      %v4029 = vadd.f32 %v3703, %v3981
      %v4030 = vadd.f32 %v3704, %v3984
      %v4031 = vadd.f32 %v3705, %v3989
      %v4032 = vadd.f32 %v3706, %v3992
      %v4033 = vadd.f32 %v3707, %v3997
      %v4034 = vadd.f32 %v3708, %v4000
      %4035 = vst.msk [vmem:[#allocation3] sm:$0xff] %vm432, %v4003
      %4036 = vst.msk [vmem:[#allocation3 + $0x8] sm:$0xff] %vm432, %v4004
      %4037 = vst.msk [vmem:[#allocation3 + $0x10] sm:$0xff] %vm432, %v4005
      %4038 = vst.msk [vmem:[#allocation3 + $0x18] sm:$0xff] %vm432, %v4006
      %4039 = vst.msk [vmem:[#allocation3 + $0x20] sm:$0xff] %vm432, %v4007
      %4040 = vst.msk [vmem:[#allocation3 + $0x28] sm:$0xff] %vm432, %v4008
      %4041 = vst.msk [vmem:[#allocation3 + $0x30] sm:$0xff] %vm432, %v4009
      %4042 = vst.msk [vmem:[#allocation3 + $0x38] sm:$0xff] %vm432, %v4010
      %4043 = vst.msk [vmem:[#allocation3 + $0x40] sm:$0xff] %vm432, %v4011
      %4044 = vst.msk [vmem:[#allocation3 + $0x48] sm:$0xff] %vm432, %v4012
      %4045 = vst.msk [vmem:[#allocation3 + $0x50] sm:$0xff] %vm432, %v4013
      %4046 = vst.msk [vmem:[#allocation3 + $0x58] sm:$0xff] %vm432, %v4014
      %4047 = vst.msk [vmem:[#allocation3 + $0x60] sm:$0xff] %vm432, %v4015
      %4048 = vst.msk [vmem:[#allocation3 + $0x68] sm:$0xff] %vm432, %v4016
      %4049 = vst.msk [vmem:[#allocation3 + $0x70] sm:$0xff] %vm432, %v4017
      %4050 = vst.msk [vmem:[#allocation3 + $0x78] sm:$0xff] %vm432, %v4018
      %4051 = vst.msk [vmem:[#allocation3 + $0x80] sm:$0xff] %vm432, %v4019
      %4052 = vst.msk [vmem:[#allocation3 + $0x88] sm:$0xff] %vm432, %v4020
      %4053 = vst.msk [vmem:[#allocation3 + $0x90] sm:$0xff] %vm432, %v4021
      %4054 = vst.msk [vmem:[#allocation3 + $0x98] sm:$0xff] %vm432, %v4022
      %4055 = vst.msk [vmem:[#allocation3 + $0xa0] sm:$0xff] %vm432, %v4023
      %4056 = vst.msk [vmem:[#allocation3 + $0xa8] sm:$0xff] %vm432, %v4024
      %4057 = vst.msk [vmem:[#allocation3 + $0xb0] sm:$0xff] %vm432, %v4025
      %4058 = vst.msk [vmem:[#allocation3 + $0xb8] sm:$0xff] %vm432, %v4026
      %4059 = vst.msk [vmem:[#allocation3 + $0xc0] sm:$0xff] %vm432, %v4027
      %4060 = vst.msk [vmem:[#allocation3 + $0xc8] sm:$0xff] %vm432, %v4028
      %4061 = vst.msk [vmem:[#allocation3 + $0xd0] sm:$0xff] %vm432, %v4029
      %4062 = vst.msk [vmem:[#allocation3 + $0xd8] sm:$0xff] %vm432, %v4030
      %4063 = vst.msk [vmem:[#allocation3 + $0xe0] sm:$0xff] %vm432, %v4031
      %4064 = vst.msk [vmem:[#allocation3 + $0xe8] sm:$0xff] %vm432, %v4032
      %4065 = vst.msk [vmem:[#allocation3 + $0xf0] sm:$0xff] %vm432, %v4033
      %4066 = vst.msk [vmem:[#allocation3 + $0xf8] sm:$0xff] %vm432, %v4034
      %v4068 = vshrl.u32 %v3641, 16
      %v4070 = vrot.slane %v4068, 4
      %v4071 = vshll.u32 %v3641, 16
      %v4073 = vrot.slane %v4071, 5
      %v4074 = vor.u32 %v4070, %v4073
      %v4075 = vrot.slane %v4074, 4
      %v4077 = vshll.u32 %v3642, 16
      %v4079 = vrot.slane %v4077, 5
      %v4080 = vsel %vm897, %v4075, %v4079
      %v4081 = vshrl.u32 %v3642, 16
      %v4083 = vrot.slane %v4081, 4
      %v4084 = vor.u32 %v4083, %v4079
      %v4085 = vrot.slane %v4084, 4
      %v4087 = vshll.u32 %v3643, 16
      %v4089 = vrot.slane %v4087, 5
      %v4090 = vsel %vm897, %v4085, %v4089
      %v4091 = vshrl.u32 %v3643, 16
      %v4093 = vrot.slane %v4091, 4
      %v4094 = vor.u32 %v4093, %v4089
      %v4095 = vrot.slane %v4094, 4
      %v4097 = vshll.u32 %v3644, 16
      %v4099 = vrot.slane %v4097, 5
      %v4100 = vsel %vm897, %v4095, %v4099
      %v4101 = vshrl.u32 %v3644, 16
      %v4103 = vrot.slane %v4101, 4
      %v4104 = vor.u32 %v4103, %v4099
      %v4105 = vrot.slane %v4104, 4
      %v4107 = vshll.u32 %v3645, 16
      %v4109 = vrot.slane %v4107, 5
      %v4110 = vsel %vm897, %v4105, %v4109
      %v4111 = vshrl.u32 %v3645, 16
      %v4113 = vrot.slane %v4111, 4
      %v4114 = vor.u32 %v4113, %v4109
      %v4115 = vrot.slane %v4114, 4
      %v4117 = vshll.u32 %v3646, 16
      %v4119 = vrot.slane %v4117, 5
      %v4120 = vsel %vm897, %v4115, %v4119
      %v4121 = vshrl.u32 %v3646, 16
      %v4123 = vrot.slane %v4121, 4
      %v4124 = vor.u32 %v4123, %v4119
      %v4125 = vrot.slane %v4124, 4
      %v4127 = vshll.u32 %v3647, 16
      %v4129 = vrot.slane %v4127, 5
      %v4130 = vsel %vm897, %v4125, %v4129
      %v4131 = vshrl.u32 %v3647, 16
      %v4133 = vrot.slane %v4131, 4
      %v4134 = vor.u32 %v4133, %v4129
      %v4135 = vrot.slane %v4134, 4
      %v4137 = vshll.u32 %v3648, 16
      %v4139 = vrot.slane %v4137, 5
      %v4140 = vsel %vm897, %v4135, %v4139
      %v4141 = vshrl.u32 %v3648, 16
      %v4143 = vrot.slane %v4141, 4
      %v4144 = vor.u32 %v4143, %v4139
      %v4145 = vrot.slane %v4144, 4
      %v4147 = vshll.u32 %v3649, 16
      %v4149 = vrot.slane %v4147, 5
      %v4150 = vsel %vm897, %v4145, %v4149
      %v4152 = vshrl.u32 %v3650, 16
      %v4154 = vrot.slane %v4152, 4
      %v4155 = vshll.u32 %v3650, 16
      %v4157 = vrot.slane %v4155, 5
      %v4158 = vor.u32 %v4154, %v4157
      %v4159 = vrot.slane %v4158, 4
      %v4161 = vshll.u32 %v3651, 16
      %v4163 = vrot.slane %v4161, 5
      %v4164 = vsel %vm897, %v4159, %v4163
      %v4165 = vshrl.u32 %v3651, 16
      %v4167 = vrot.slane %v4165, 4
      %v4168 = vor.u32 %v4167, %v4163
      %v4169 = vrot.slane %v4168, 4
      %v4171 = vshll.u32 %v3652, 16
      %v4173 = vrot.slane %v4171, 5
      %v4174 = vsel %vm897, %v4169, %v4173
      %v4175 = vshrl.u32 %v3652, 16
      %v4177 = vrot.slane %v4175, 4
      %v4178 = vor.u32 %v4177, %v4173
      %v4179 = vrot.slane %v4178, 4
      %v4181 = vshll.u32 %v3653, 16
      %v4183 = vrot.slane %v4181, 5
      %v4184 = vsel %vm897, %v4179, %v4183
      %v4185 = vshrl.u32 %v3653, 16
      %v4187 = vrot.slane %v4185, 4
      %v4188 = vor.u32 %v4187, %v4183
      %v4189 = vrot.slane %v4188, 4
      %v4191 = vshll.u32 %v3654, 16
      %v4193 = vrot.slane %v4191, 5
      %v4194 = vsel %vm897, %v4189, %v4193
      %v4195 = vshrl.u32 %v3654, 16
      %v4197 = vrot.slane %v4195, 4
      %v4198 = vor.u32 %v4197, %v4193
      %v4199 = vrot.slane %v4198, 4
      %v4201 = vshll.u32 %v3655, 16
      %v4203 = vrot.slane %v4201, 5
      %v4204 = vsel %vm897, %v4199, %v4203
      %v4205 = vshrl.u32 %v3655, 16
      %v4207 = vrot.slane %v4205, 4
      %v4208 = vor.u32 %v4207, %v4203
      %v4209 = vrot.slane %v4208, 4
      %v4211 = vshll.u32 %v3656, 16
      %v4213 = vrot.slane %v4211, 5
      %v4214 = vsel %vm897, %v4209, %v4213
      %v4215 = vshrl.u32 %v3656, 16
      %v4217 = vrot.slane %v4215, 4
      %v4218 = vor.u32 %v4217, %v4213
      %v4219 = vrot.slane %v4218, 4
      %v4221 = vshll.u32 %v3657, 16
      %v4223 = vrot.slane %v4221, 5
      %v4224 = vsel %vm897, %v4219, %v4223
      %v4225 = vshrl.u32 %v3657, 16
      %v4227 = vrot.slane %v4225, 4
      %v4228 = vor.u32 %v4227, %v4223
      %v4229 = vrot.slane %v4228, 4
      %v4231 = vshll.u32 %v3658, 16
      %v4233 = vrot.slane %v4231, 5
      %v4234 = vsel %vm897, %v4229, %v4233
      %v4236 = vshrl.u32 %v3659, 16
      %v4238 = vrot.slane %v4236, 4
      %v4239 = vshll.u32 %v3659, 16
      %v4241 = vrot.slane %v4239, 5
      %v4242 = vor.u32 %v4238, %v4241
      %v4243 = vrot.slane %v4242, 4
      %v4245 = vshll.u32 %v3660, 16
      %v4247 = vrot.slane %v4245, 5
      %v4248 = vsel %vm897, %v4243, %v4247
      %v4249 = vshrl.u32 %v3660, 16
      %v4251 = vrot.slane %v4249, 4
      %v4252 = vor.u32 %v4251, %v4247
      %v4253 = vrot.slane %v4252, 4
      %v4255 = vshll.u32 %v3661, 16
      %v4257 = vrot.slane %v4255, 5
      %v4258 = vsel %vm897, %v4253, %v4257
      %v4259 = vshrl.u32 %v3661, 16
      %v4261 = vrot.slane %v4259, 4
      %v4262 = vor.u32 %v4261, %v4257
      %v4263 = vrot.slane %v4262, 4
      %v4265 = vshll.u32 %v3662, 16
      %v4267 = vrot.slane %v4265, 5
      %v4268 = vsel %vm897, %v4263, %v4267
      %v4269 = vshrl.u32 %v3662, 16
      %v4271 = vrot.slane %v4269, 4
      %v4272 = vor.u32 %v4271, %v4267
      %v4273 = vrot.slane %v4272, 4
      %v4275 = vshll.u32 %v3663, 16
      %v4277 = vrot.slane %v4275, 5
      %v4278 = vsel %vm897, %v4273, %v4277
      %v4279 = vshrl.u32 %v3663, 16
      %v4281 = vrot.slane %v4279, 4
      %v4282 = vor.u32 %v4281, %v4277
      %v4283 = vrot.slane %v4282, 4
      %v4285 = vshll.u32 %v3664, 16
      %v4287 = vrot.slane %v4285, 5
      %v4288 = vsel %vm897, %v4283, %v4287
      %v4289 = vshrl.u32 %v3664, 16
      %v4291 = vrot.slane %v4289, 4
      %v4292 = vor.u32 %v4291, %v4287
      %v4293 = vrot.slane %v4292, 4
      %v4295 = vshll.u32 %v3665, 16
      %v4297 = vrot.slane %v4295, 5
      %v4298 = vsel %vm897, %v4293, %v4297
      %v4299 = vshrl.u32 %v3665, 16
      %v4301 = vrot.slane %v4299, 4
      %v4302 = vor.u32 %v4301, %v4297
      %v4303 = vrot.slane %v4302, 4
      %v4305 = vshll.u32 %v3666, 16
      %v4307 = vrot.slane %v4305, 5
      %v4308 = vsel %vm897, %v4303, %v4307
      %v4309 = vshrl.u32 %v3666, 16
      %v4311 = vrot.slane %v4309, 4
      %v4312 = vor.u32 %v4311, %v4307
      %v4313 = vrot.slane %v4312, 4
      %v4315 = vshll.u32 %v3667, 16
      %v4317 = vrot.slane %v4315, 5
      %v4318 = vsel %vm897, %v4313, %v4317
      %v4320 = vshrl.u32 %v3668, 16
      %v4322 = vrot.slane %v4320, 4
      %v4323 = vshll.u32 %v3668, 16
      %v4325 = vrot.slane %v4323, 5
      %v4326 = vor.u32 %v4322, %v4325
      %v4327 = vrot.slane %v4326, 4
      %v4329 = vshll.u32 %v3669, 16
      %v4331 = vrot.slane %v4329, 5
      %v4332 = vsel %vm897, %v4327, %v4331
      %v4333 = vshrl.u32 %v3669, 16
      %v4335 = vrot.slane %v4333, 4
      %v4336 = vor.u32 %v4335, %v4331
      %v4337 = vrot.slane %v4336, 4
      %v4339 = vshll.u32 %v3670, 16
      %v4341 = vrot.slane %v4339, 5
      %v4342 = vsel %vm897, %v4337, %v4341
      %v4343 = vshrl.u32 %v3670, 16
      %v4345 = vrot.slane %v4343, 4
      %v4346 = vor.u32 %v4345, %v4341
      %v4347 = vrot.slane %v4346, 4
      %v4349 = vshll.u32 %v3671, 16
      %v4351 = vrot.slane %v4349, 5
      %v4352 = vsel %vm897, %v4347, %v4351
      %v4353 = vshrl.u32 %v3671, 16
      %v4355 = vrot.slane %v4353, 4
      %v4356 = vor.u32 %v4355, %v4351
      %v4357 = vrot.slane %v4356, 4
      %v4359 = vshll.u32 %v3672, 16
      %v4361 = vrot.slane %v4359, 5
      %v4362 = vsel %vm897, %v4357, %v4361
      %v4363 = vshrl.u32 %v3672, 16
      %v4365 = vrot.slane %v4363, 4
      %v4366 = vor.u32 %v4365, %v4361
      %v4367 = vrot.slane %v4366, 4
      %v4369 = vshll.u32 %v3673, 16
      %v4371 = vrot.slane %v4369, 5
      %v4372 = vsel %vm897, %v4367, %v4371
      %v4373 = vshrl.u32 %v3673, 16
      %v4375 = vrot.slane %v4373, 4
      %v4376 = vor.u32 %v4375, %v4371
      %v4377 = vrot.slane %v4376, 4
      %v4379 = vshll.u32 %v3674, 16
      %v4381 = vrot.slane %v4379, 5
      %v4382 = vsel %vm897, %v4377, %v4381
      %v4383 = vshrl.u32 %v3674, 16
      %v4385 = vrot.slane %v4383, 4
      %v4386 = vor.u32 %v4385, %v4381
      %v4387 = vrot.slane %v4386, 4
      %v4389 = vshll.u32 %v3675, 16
      %v4391 = vrot.slane %v4389, 5
      %v4392 = vsel %vm897, %v4387, %v4391
      %v4393 = vshrl.u32 %v3675, 16
      %v4395 = vrot.slane %v4393, 4
      %v4396 = vor.u32 %v4395, %v4391
      %v4397 = vrot.slane %v4396, 4
      %v4399 = vshll.u32 %v3676, 16
      %v4401 = vrot.slane %v4399, 5
      %v4402 = vsel %vm897, %v4397, %v4401
      %v4403 = vld [vmem:[#allocation3] sm:$0xff]
      %v4404 = vld [vmem:[#allocation3 + $0x8] sm:$0xff]
      %v4405 = vld [vmem:[#allocation3 + $0x10] sm:$0xff]
      %v4406 = vld [vmem:[#allocation3 + $0x18] sm:$0xff]
      %v4407 = vld [vmem:[#allocation3 + $0x20] sm:$0xff]
      %v4408 = vld [vmem:[#allocation3 + $0x28] sm:$0xff]
      %v4409 = vld [vmem:[#allocation3 + $0x30] sm:$0xff]
      %v4410 = vld [vmem:[#allocation3 + $0x38] sm:$0xff]
      %v4411 = vld [vmem:[#allocation3 + $0x40] sm:$0xff]
      %v4412 = vld [vmem:[#allocation3 + $0x48] sm:$0xff]
      %v4413 = vld [vmem:[#allocation3 + $0x50] sm:$0xff]
      %v4414 = vld [vmem:[#allocation3 + $0x58] sm:$0xff]
      %v4415 = vld [vmem:[#allocation3 + $0x60] sm:$0xff]
      %v4416 = vld [vmem:[#allocation3 + $0x68] sm:$0xff]
      %v4417 = vld [vmem:[#allocation3 + $0x70] sm:$0xff]
      %v4418 = vld [vmem:[#allocation3 + $0x78] sm:$0xff]
      %v4419 = vld [vmem:[#allocation3 + $0x80] sm:$0xff]
      %v4420 = vld [vmem:[#allocation3 + $0x88] sm:$0xff]
      %v4421 = vld [vmem:[#allocation3 + $0x90] sm:$0xff]
      %v4422 = vld [vmem:[#allocation3 + $0x98] sm:$0xff]
      %v4423 = vld [vmem:[#allocation3 + $0xa0] sm:$0xff]
      %v4424 = vld [vmem:[#allocation3 + $0xa8] sm:$0xff]
      %v4425 = vld [vmem:[#allocation3 + $0xb0] sm:$0xff]
      %v4426 = vld [vmem:[#allocation3 + $0xb8] sm:$0xff]
      %v4427 = vld [vmem:[#allocation3 + $0xc0] sm:$0xff]
      %v4428 = vld [vmem:[#allocation3 + $0xc8] sm:$0xff]
      %v4429 = vld [vmem:[#allocation3 + $0xd0] sm:$0xff]
      %v4430 = vld [vmem:[#allocation3 + $0xd8] sm:$0xff]
      %v4431 = vld [vmem:[#allocation3 + $0xe0] sm:$0xff]
      %v4432 = vld [vmem:[#allocation3 + $0xe8] sm:$0xff]
      %v4433 = vld [vmem:[#allocation3 + $0xf0] sm:$0xff]
      %v4434 = vld [vmem:[#allocation3 + $0xf8] sm:$0xff]
      %s4435 = scalar_lea.vmem %s2, 14
      %v4436 = vld [vmem:[%s4435] sm:$0x3]
      %v4437 = vunpack.c.l.b16 %v4080
      %v4438 = vunpack.c.l.b16 %v4090
      %v4439 = vunpack.c.l.b16 %v4100
      %v4440 = vunpack.c.l.b16 %v4110
      %v4441 = vunpack.c.l.b16 %v4120
      %v4442 = vunpack.c.l.b16 %v4130
      %v4443 = vunpack.c.l.b16 %v4140
      %v4444 = vunpack.c.l.b16 %v4150
      %v4445 = vunpack.c.l.b16 %v4164
      %v4446 = vunpack.c.l.b16 %v4174
      %v4447 = vunpack.c.l.b16 %v4184
      %v4448 = vunpack.c.l.b16 %v4194
      %v4449 = vunpack.c.l.b16 %v4204
      %v4450 = vunpack.c.l.b16 %v4214
      %v4451 = vunpack.c.l.b16 %v4224
      %v4452 = vunpack.c.l.b16 %v4234
      %v4453 = vunpack.c.l.b16 %v4248
      %v4454 = vunpack.c.l.b16 %v4258
      %v4455 = vunpack.c.l.b16 %v4268
      %v4456 = vunpack.c.l.b16 %v4278
      %v4457 = vunpack.c.l.b16 %v4288
      %v4458 = vunpack.c.l.b16 %v4298
      %v4459 = vunpack.c.l.b16 %v4308
      %v4460 = vunpack.c.l.b16 %v4318
      %v4461 = vunpack.c.l.b16 %v4332
      %v4462 = vunpack.c.l.b16 %v4342
      %v4463 = vunpack.c.l.b16 %v4352
      %v4464 = vunpack.c.l.b16 %v4362
      %v4465 = vunpack.c.l.b16 %v4372
      %v4466 = vunpack.c.l.b16 %v4382
      %v4467 = vunpack.c.l.b16 %v4392
      %v4468 = vunpack.c.l.b16 %v4402
      %v4469 = vpack.c.b16 %v4438, %v4437
      %v4470 = vpack.c.b16 %v4440, %v4439
      %v4471 = vpack.c.b16 %v4442, %v4441
      %v4472 = vpack.c.b16 %v4444, %v4443
      %v4473 = vpack.c.b16 %v4446, %v4445
      %v4474 = vpack.c.b16 %v4448, %v4447
      %v4475 = vpack.c.b16 %v4450, %v4449
      %v4476 = vpack.c.b16 %v4452, %v4451
      %v4477 = vpack.c.b16 %v4454, %v4453
      %v4478 = vpack.c.b16 %v4456, %v4455
      %v4479 = vpack.c.b16 %v4458, %v4457
      %v4480 = vpack.c.b16 %v4460, %v4459
      %v4481 = vpack.c.b16 %v4462, %v4461
      %v4482 = vpack.c.b16 %v4464, %v4463
      %v4483 = vpack.c.b16 %v4466, %v4465
      %v4484 = vpack.c.b16 %v4468, %v4467
      %v4486 = vsel %vm614, %v4469, 0
      %v4489 = vsel %vm614, %v4470, 0
      %v4492 = vsel %vm614, %v4471, 0
      %v4495 = vsel %vm614, %v4472, 0
      %v4498 = vsel %vm614, %v4473, 0
      %v4501 = vsel %vm614, %v4474, 0
      %v4504 = vsel %vm614, %v4475, 0
      %v4507 = vsel %vm614, %v4476, 0
      %v4510 = vsel %vm614, %v4477, 0
      %v4513 = vsel %vm614, %v4478, 0
      %v4516 = vsel %vm614, %v4479, 0
      %v4519 = vsel %vm614, %v4480, 0
      %v4522 = vsel %vm614, %v4481, 0
      %v4525 = vsel %vm614, %v4482, 0
      %v4528 = vsel %vm614, %v4483, 0
      %v4531 = vsel %vm614, %v4484, 0
      %v4534 = vand.u32 %v4436, %v666
      %4536 = vmatprep.subr.bf16.mxu0 0
      %4537 = vmatpush1.bf16.msra.mxu0 %v4534
      %4538 = vmatprep.subr.bf16.mxu0 0
      %4539 = vmatpush1.bf16.msra.mxu0 0
      %4540 = vmatprep.subr.bf16.mxu0 0
      %4541 = vmatpush1.bf16.msra.mxu0 0
      %4542 = vmatprep.subr.bf16.mxu0 0
      %4543 = vmatpush1.bf16.msra.mxu0 0
      %4544 = vmatprep.subr.bf16.mxu0 0
      %4545 = vmatpush1.bf16.msra.mxu0 0
      %4546 = vmatprep.subr.bf16.mxu0 0
      %4547 = vmatpush1.bf16.msra.mxu0 0
      %4548 = vmatprep.subr.bf16.mxu0 0
      %4549 = vmatpush1.bf16.msra.mxu0 0
      %4550 = vmatprep.subr.bf16.mxu0 0
      %4551 = vmatpush1.bf16.msra.mxu0 0
      %4552 = vmatprep.subr.bf16.mxu0 0
      %4553 = vmatpush1.bf16.msra.mxu0 0
      %4554 = vmatprep.subr.bf16.mxu0 0
      %4555 = vmatpush1.bf16.msra.mxu0 0
      %4556 = vmatprep.subr.bf16.mxu0 0
      %4557 = vmatpush1.bf16.msra.mxu0 0
      %4558 = vmatprep.subr.bf16.mxu0 0
      %4559 = vmatpush1.bf16.msra.mxu0 0
      %4560 = vmatprep.subr.bf16.mxu0 0
      %4561 = vmatpush1.bf16.msra.mxu0 0
      %4562 = vmatprep.subr.bf16.mxu0 0
      %4563 = vmatpush1.bf16.msra.mxu0 0
      %4564 = vmatprep.subr.bf16.mxu0 0
      %4565 = vmatpush1.bf16.msra.mxu0 0
      %4566 = vmatprep.subr.bf16.mxu0 0
      %4567 = vmatpush1.bf16.msra.mxu0 0
      %4568 = vmatprep.mubr.bf16.mxu0 0
      %4569 = vmatmul.mubr.bf16.gmra.mrb[0].mxu0 %v4486
      %v4570 = vpop.f32.mrb[0].mxu0
      %v4571 = vadd.f32 0.0, %v4570
      %v4572 = vpop.f32.mrb[0].mxu0
      %v4573 = vpop.f32.mrb[0].mxu0
      %v4574 = vadd.f32 0.0, %v4573
      %v4575 = vpop.f32.mrb[0].mxu0
      %4576 = vmatprep.mubr.bf16.mxu0 0
      %4577 = vmatmul.mubr.bf16.gmra.mrb[0].mxu0 %v4489
      %v4578 = vpop.f32.mrb[0].mxu0
      %v4579 = vadd.f32 0.0, %v4578
      %v4580 = vpop.f32.mrb[0].mxu0
      %v4581 = vpop.f32.mrb[0].mxu0
      %v4582 = vadd.f32 0.0, %v4581
      %v4583 = vpop.f32.mrb[0].mxu0
      %4584 = vmatprep.mubr.bf16.mxu0 0
      %4585 = vmatmul.mubr.bf16.gmra.mrb[0].mxu0 %v4492
      %v4586 = vpop.f32.mrb[0].mxu0
      %v4587 = vadd.f32 0.0, %v4586
      %v4588 = vpop.f32.mrb[0].mxu0
      %v4589 = vpop.f32.mrb[0].mxu0
      %v4590 = vadd.f32 0.0, %v4589
      %v4591 = vpop.f32.mrb[0].mxu0
      %4592 = vmatprep.mubr.bf16.mxu0 0
      %4593 = vmatmul.mubr.bf16.gmra.mrb[0].mxu0 %v4495
      %v4594 = vpop.f32.mrb[0].mxu0
      %v4595 = vadd.f32 0.0, %v4594
      %v4596 = vpop.f32.mrb[0].mxu0
      %v4597 = vpop.f32.mrb[0].mxu0
      %v4598 = vadd.f32 0.0, %v4597
      %v4599 = vpop.f32.mrb[0].mxu0
      %4600 = vmatprep.mubr.bf16.mxu0 0
      %4601 = vmatmul.mubr.bf16.gmra.mrb[0].mxu0 %v4498
      %v4602 = vpop.f32.mrb[0].mxu0
      %v4603 = vadd.f32 0.0, %v4602
      %v4604 = vpop.f32.mrb[0].mxu0
      %v4605 = vpop.f32.mrb[0].mxu0
      %v4606 = vadd.f32 0.0, %v4605
      %v4607 = vpop.f32.mrb[0].mxu0
      %4608 = vmatprep.mubr.bf16.mxu0 0
      %4609 = vmatmul.mubr.bf16.gmra.mrb[0].mxu0 %v4501
      %v4610 = vpop.f32.mrb[0].mxu0
      %v4611 = vadd.f32 0.0, %v4610
      %v4612 = vpop.f32.mrb[0].mxu0
      %v4613 = vpop.f32.mrb[0].mxu0
      %v4614 = vadd.f32 0.0, %v4613
      %v4615 = vpop.f32.mrb[0].mxu0
      %4616 = vmatprep.mubr.bf16.mxu0 0
      %4617 = vmatmul.mubr.bf16.gmra.mrb[0].mxu0 %v4504
      %v4618 = vpop.f32.mrb[0].mxu0
      %v4619 = vadd.f32 0.0, %v4618
      %v4620 = vpop.f32.mrb[0].mxu0
      %v4621 = vpop.f32.mrb[0].mxu0
      %v4622 = vadd.f32 0.0, %v4621
      %v4623 = vpop.f32.mrb[0].mxu0
      %4624 = vmatprep.mubr.bf16.mxu0 0
      %4625 = vmatmul.mubr.bf16.gmra.mrb[0].mxu0 %v4507
      %v4626 = vpop.f32.mrb[0].mxu0
      %v4627 = vadd.f32 0.0, %v4626
      %v4628 = vpop.f32.mrb[0].mxu0
      %v4629 = vpop.f32.mrb[0].mxu0
      %v4630 = vadd.f32 0.0, %v4629
      %v4631 = vpop.f32.mrb[0].mxu0
      %4632 = vmatprep.mubr.bf16.mxu0 0
      %4633 = vmatmul.mubr.bf16.gmra.mrb[0].mxu0 %v4510
      %v4634 = vpop.f32.mrb[0].mxu0
      %v4635 = vadd.f32 0.0, %v4634
      %v4636 = vpop.f32.mrb[0].mxu0
      %v4637 = vpop.f32.mrb[0].mxu0
      %v4638 = vadd.f32 0.0, %v4637
      %v4639 = vpop.f32.mrb[0].mxu0
      %4640 = vmatprep.mubr.bf16.mxu0 0
      %4641 = vmatmul.mubr.bf16.gmra.mrb[0].mxu0 %v4513
      %v4642 = vpop.f32.mrb[0].mxu0
      %v4643 = vadd.f32 0.0, %v4642
      %v4644 = vpop.f32.mrb[0].mxu0
      %v4645 = vpop.f32.mrb[0].mxu0
      %v4646 = vadd.f32 0.0, %v4645
      %v4647 = vpop.f32.mrb[0].mxu0
      %4648 = vmatprep.mubr.bf16.mxu0 0
      %4649 = vmatmul.mubr.bf16.gmra.mrb[0].mxu0 %v4516
      %v4650 = vpop.f32.mrb[0].mxu0
      %v4651 = vadd.f32 0.0, %v4650
      %v4652 = vpop.f32.mrb[0].mxu0
      %v4653 = vpop.f32.mrb[0].mxu0
      %v4654 = vadd.f32 0.0, %v4653
      %v4655 = vpop.f32.mrb[0].mxu0
      %4656 = vmatprep.mubr.bf16.mxu0 0
      %4657 = vmatmul.mubr.bf16.gmra.mrb[0].mxu0 %v4519
      %v4658 = vpop.f32.mrb[0].mxu0
      %v4659 = vadd.f32 0.0, %v4658
      %v4660 = vpop.f32.mrb[0].mxu0
      %v4661 = vpop.f32.mrb[0].mxu0
      %v4662 = vadd.f32 0.0, %v4661
      %v4663 = vpop.f32.mrb[0].mxu0
      %4664 = vmatprep.mubr.bf16.mxu0 0
      %4665 = vmatmul.mubr.bf16.gmra.mrb[0].mxu0 %v4522
      %v4666 = vpop.f32.mrb[0].mxu0
      %v4667 = vadd.f32 0.0, %v4666
      %v4668 = vpop.f32.mrb[0].mxu0
      %v4669 = vpop.f32.mrb[0].mxu0
      %v4670 = vadd.f32 0.0, %v4669
      %v4671 = vpop.f32.mrb[0].mxu0
      %4672 = vmatprep.mubr.bf16.mxu0 0
      %4673 = vmatmul.mubr.bf16.gmra.mrb[0].mxu0 %v4525
      %v4674 = vpop.f32.mrb[0].mxu0
      %v4675 = vadd.f32 0.0, %v4674
      %v4676 = vpop.f32.mrb[0].mxu0
      %v4677 = vpop.f32.mrb[0].mxu0
      %v4678 = vadd.f32 0.0, %v4677
      %v4679 = vpop.f32.mrb[0].mxu0
      %4680 = vmatprep.mubr.bf16.mxu0 0
      %4681 = vmatmul.mubr.bf16.gmra.mrb[0].mxu0 %v4528
      %v4682 = vpop.f32.mrb[0].mxu0
      %v4683 = vadd.f32 0.0, %v4682
      %v4684 = vpop.f32.mrb[0].mxu0
      %v4685 = vpop.f32.mrb[0].mxu0
      %v4686 = vadd.f32 0.0, %v4685
      %v4687 = vpop.f32.mrb[0].mxu0
      %4688 = vmatprep.mubr.bf16.mxu0 0
      %4689 = vmatmul.mubr.bf16.gmra.mrb[0].mxu0 %v4531
      %v4690 = vpop.f32.mrb[0].mxu0
      %v4691 = vadd.f32 0.0, %v4690
      %v4692 = vpop.f32.mrb[0].mxu0
      %v4693 = vpop.f32.mrb[0].mxu0
      %v4694 = vadd.f32 0.0, %v4693
      %v4695 = vpop.f32.mrb[0].mxu0
      %4696 = vdwg.mxu0
      %v4697 = vadd.f32 %v4403, %v4571
      %v4698 = vadd.f32 %v4404, %v4574
      %v4699 = vadd.f32 %v4405, %v4579
      %v4700 = vadd.f32 %v4406, %v4582
      %v4701 = vadd.f32 %v4407, %v4587
      %v4702 = vadd.f32 %v4408, %v4590
      %v4703 = vadd.f32 %v4409, %v4595
      %v4704 = vadd.f32 %v4410, %v4598
      %v4705 = vadd.f32 %v4411, %v4603
      %v4706 = vadd.f32 %v4412, %v4606
      %v4707 = vadd.f32 %v4413, %v4611
      %v4708 = vadd.f32 %v4414, %v4614
      %v4709 = vadd.f32 %v4415, %v4619
      %v4710 = vadd.f32 %v4416, %v4622
      %v4711 = vadd.f32 %v4417, %v4627
      %v4712 = vadd.f32 %v4418, %v4630
      %v4713 = vadd.f32 %v4419, %v4635
      %v4714 = vadd.f32 %v4420, %v4638
      %v4715 = vadd.f32 %v4421, %v4643
      %v4716 = vadd.f32 %v4422, %v4646
      %v4717 = vadd.f32 %v4423, %v4651
      %v4718 = vadd.f32 %v4424, %v4654
      %v4719 = vadd.f32 %v4425, %v4659
      %v4720 = vadd.f32 %v4426, %v4662
      %v4721 = vadd.f32 %v4427, %v4667
      %v4722 = vadd.f32 %v4428, %v4670
      %v4723 = vadd.f32 %v4429, %v4675
      %v4724 = vadd.f32 %v4430, %v4678
      %v4725 = vadd.f32 %v4431, %v4683
      %v4726 = vadd.f32 %v4432, %v4686
      %v4727 = vadd.f32 %v4433, %v4691
      %v4728 = vadd.f32 %v4434, %v4694
      %4729 = vst.msk [vmem:[#allocation3] sm:$0xff] %vm432, %v4697
      %4730 = vst.msk [vmem:[#allocation3 + $0x8] sm:$0xff] %vm432, %v4698
      %4731 = vst.msk [vmem:[#allocation3 + $0x10] sm:$0xff] %vm432, %v4699
      %4732 = vst.msk [vmem:[#allocation3 + $0x18] sm:$0xff] %vm432, %v4700
      %4733 = vst.msk [vmem:[#allocation3 + $0x20] sm:$0xff] %vm432, %v4701
      %4734 = vst.msk [vmem:[#allocation3 + $0x28] sm:$0xff] %vm432, %v4702
      %4735 = vst.msk [vmem:[#allocation3 + $0x30] sm:$0xff] %vm432, %v4703
      %4736 = vst.msk [vmem:[#allocation3 + $0x38] sm:$0xff] %vm432, %v4704
      %4737 = vst.msk [vmem:[#allocation3 + $0x40] sm:$0xff] %vm432, %v4705
      %4738 = vst.msk [vmem:[#allocation3 + $0x48] sm:$0xff] %vm432, %v4706
      %4739 = vst.msk [vmem:[#allocation3 + $0x50] sm:$0xff] %vm432, %v4707
      %4740 = vst.msk [vmem:[#allocation3 + $0x58] sm:$0xff] %vm432, %v4708
      %4741 = vst.msk [vmem:[#allocation3 + $0x60] sm:$0xff] %vm432, %v4709
      %4742 = vst.msk [vmem:[#allocation3 + $0x68] sm:$0xff] %vm432, %v4710
      %4743 = vst.msk [vmem:[#allocation3 + $0x70] sm:$0xff] %vm432, %v4711
      %4744 = vst.msk [vmem:[#allocation3 + $0x78] sm:$0xff] %vm432, %v4712
      %4745 = vst.msk [vmem:[#allocation3 + $0x80] sm:$0xff] %vm432, %v4713
      %4746 = vst.msk [vmem:[#allocation3 + $0x88] sm:$0xff] %vm432, %v4714
      %4747 = vst.msk [vmem:[#allocation3 + $0x90] sm:$0xff] %vm432, %v4715
      %4748 = vst.msk [vmem:[#allocation3 + $0x98] sm:$0xff] %vm432, %v4716
      %4749 = vst.msk [vmem:[#allocation3 + $0xa0] sm:$0xff] %vm432, %v4717
      %4750 = vst.msk [vmem:[#allocation3 + $0xa8] sm:$0xff] %vm432, %v4718
      %4751 = vst.msk [vmem:[#allocation3 + $0xb0] sm:$0xff] %vm432, %v4719
      %4752 = vst.msk [vmem:[#allocation3 + $0xb8] sm:$0xff] %vm432, %v4720
      %4753 = vst.msk [vmem:[#allocation3 + $0xc0] sm:$0xff] %vm432, %v4721
      %4754 = vst.msk [vmem:[#allocation3 + $0xc8] sm:$0xff] %vm432, %v4722
      %4755 = vst.msk [vmem:[#allocation3 + $0xd0] sm:$0xff] %vm432, %v4723
      %4756 = vst.msk [vmem:[#allocation3 + $0xd8] sm:$0xff] %vm432, %v4724
      %4757 = vst.msk [vmem:[#allocation3 + $0xe0] sm:$0xff] %vm432, %v4725
      %4758 = vst.msk [vmem:[#allocation3 + $0xe8] sm:$0xff] %vm432, %v4726
      %4759 = vst.msk [vmem:[#allocation3 + $0xf0] sm:$0xff] %vm432, %v4727
      %4760 = vst.msk [vmem:[#allocation3 + $0xf8] sm:$0xff] %vm432, %v4728
      %v4765 = vrot.slane %v3641, 5
      %v4766 = vrot.slane %v4765, 4
      %v4767 = vrot.slane %v3642, 5
      %v4768 = vsel %vm1598, %v4766, %v4767
      %v4769 = vrot.slane %v4767, 4
      %v4770 = vrot.slane %v3643, 5
      %v4771 = vsel %vm1598, %v4769, %v4770
      %v4772 = vrot.slane %v4770, 4
      %v4773 = vrot.slane %v3644, 5
      %v4774 = vsel %vm1598, %v4772, %v4773
      %v4775 = vrot.slane %v4773, 4
      %v4776 = vrot.slane %v3645, 5
      %v4777 = vsel %vm1598, %v4775, %v4776
      %v4778 = vrot.slane %v4776, 4
      %v4779 = vrot.slane %v3646, 5
      %v4780 = vsel %vm1598, %v4778, %v4779
      %v4781 = vrot.slane %v4779, 4
      %v4782 = vrot.slane %v3647, 5
      %v4783 = vsel %vm1598, %v4781, %v4782
      %v4784 = vrot.slane %v4782, 4
      %v4785 = vrot.slane %v3648, 5
      %v4786 = vsel %vm1598, %v4784, %v4785
      %v4787 = vrot.slane %v4785, 4
      %v4788 = vrot.slane %v3649, 5
      %v4789 = vsel %vm1598, %v4787, %v4788
      %v4790 = vrot.slane %v3650, 5
      %v4791 = vrot.slane %v4790, 4
      %v4792 = vrot.slane %v3651, 5
      %v4793 = vsel %vm1598, %v4791, %v4792
      %v4794 = vrot.slane %v4792, 4
      %v4795 = vrot.slane %v3652, 5
      %v4796 = vsel %vm1598, %v4794, %v4795
      %v4797 = vrot.slane %v4795, 4
      %v4798 = vrot.slane %v3653, 5
      %v4799 = vsel %vm1598, %v4797, %v4798
      %v4800 = vrot.slane %v4798, 4
      %v4801 = vrot.slane %v3654, 5
      %v4802 = vsel %vm1598, %v4800, %v4801
      %v4803 = vrot.slane %v4801, 4
      %v4804 = vrot.slane %v3655, 5
      %v4805 = vsel %vm1598, %v4803, %v4804
      %v4806 = vrot.slane %v4804, 4
      %v4807 = vrot.slane %v3656, 5
      %v4808 = vsel %vm1598, %v4806, %v4807
      %v4809 = vrot.slane %v4807, 4
      %v4810 = vrot.slane %v3657, 5
      %v4811 = vsel %vm1598, %v4809, %v4810
      %v4812 = vrot.slane %v4810, 4
      %v4813 = vrot.slane %v3658, 5
      %v4814 = vsel %vm1598, %v4812, %v4813
      %v4815 = vrot.slane %v3659, 5
      %v4816 = vrot.slane %v4815, 4
      %v4817 = vrot.slane %v3660, 5
      %v4818 = vsel %vm1598, %v4816, %v4817
      %v4819 = vrot.slane %v4817, 4
      %v4820 = vrot.slane %v3661, 5
      %v4821 = vsel %vm1598, %v4819, %v4820
      %v4822 = vrot.slane %v4820, 4
      %v4823 = vrot.slane %v3662, 5
      %v4824 = vsel %vm1598, %v4822, %v4823
      %v4825 = vrot.slane %v4823, 4
      %v4826 = vrot.slane %v3663, 5
      %v4827 = vsel %vm1598, %v4825, %v4826
      %v4828 = vrot.slane %v4826, 4
      %v4829 = vrot.slane %v3664, 5
      %v4830 = vsel %vm1598, %v4828, %v4829
      %v4831 = vrot.slane %v4829, 4
      %v4832 = vrot.slane %v3665, 5
      %v4833 = vsel %vm1598, %v4831, %v4832
      %v4834 = vrot.slane %v4832, 4
      %v4835 = vrot.slane %v3666, 5
      %v4836 = vsel %vm1598, %v4834, %v4835
      %v4837 = vrot.slane %v4835, 4
      %v4838 = vrot.slane %v3667, 5
      %v4839 = vsel %vm1598, %v4837, %v4838
      %v4840 = vrot.slane %v3668, 5
      %v4841 = vrot.slane %v4840, 4
      %v4842 = vrot.slane %v3669, 5
      %v4843 = vsel %vm1598, %v4841, %v4842
      %v4844 = vrot.slane %v4842, 4
      %v4845 = vrot.slane %v3670, 5
      %v4846 = vsel %vm1598, %v4844, %v4845
      %v4847 = vrot.slane %v4845, 4
      %v4848 = vrot.slane %v3671, 5
      %v4849 = vsel %vm1598, %v4847, %v4848
      %v4850 = vrot.slane %v4848, 4
      %v4851 = vrot.slane %v3672, 5
      %v4852 = vsel %vm1598, %v4850, %v4851
      %v4853 = vrot.slane %v4851, 4
      %v4854 = vrot.slane %v3673, 5
      %v4855 = vsel %vm1598, %v4853, %v4854
      %v4856 = vrot.slane %v4854, 4
      %v4857 = vrot.slane %v3674, 5
      %v4858 = vsel %vm1598, %v4856, %v4857
      %v4859 = vrot.slane %v4857, 4
      %v4860 = vrot.slane %v3675, 5
      %v4861 = vsel %vm1598, %v4859, %v4860
      %v4862 = vrot.slane %v4860, 4
      %v4863 = vrot.slane %v3676, 5
      %v4864 = vsel %vm1598, %v4862, %v4863
      %v4865 = vld [vmem:[#allocation3] sm:$0xff]
      %v4866 = vld [vmem:[#allocation3 + $0x8] sm:$0xff]
      %v4867 = vld [vmem:[#allocation3 + $0x10] sm:$0xff]
      %v4868 = vld [vmem:[#allocation3 + $0x18] sm:$0xff]
      %v4869 = vld [vmem:[#allocation3 + $0x20] sm:$0xff]
      %v4870 = vld [vmem:[#allocation3 + $0x28] sm:$0xff]
      %v4871 = vld [vmem:[#allocation3 + $0x30] sm:$0xff]
      %v4872 = vld [vmem:[#allocation3 + $0x38] sm:$0xff]
      %v4873 = vld [vmem:[#allocation3 + $0x40] sm:$0xff]
      %v4874 = vld [vmem:[#allocation3 + $0x48] sm:$0xff]
      %v4875 = vld [vmem:[#allocation3 + $0x50] sm:$0xff]
      %v4876 = vld [vmem:[#allocation3 + $0x58] sm:$0xff]
      %v4877 = vld [vmem:[#allocation3 + $0x60] sm:$0xff]
      %v4878 = vld [vmem:[#allocation3 + $0x68] sm:$0xff]
      %v4879 = vld [vmem:[#allocation3 + $0x70] sm:$0xff]
      %v4880 = vld [vmem:[#allocation3 + $0x78] sm:$0xff]
      %v4881 = vld [vmem:[#allocation3 + $0x80] sm:$0xff]
      %v4882 = vld [vmem:[#allocation3 + $0x88] sm:$0xff]
      %v4883 = vld [vmem:[#allocation3 + $0x90] sm:$0xff]
      %v4884 = vld [vmem:[#allocation3 + $0x98] sm:$0xff]
      %v4885 = vld [vmem:[#allocation3 + $0xa0] sm:$0xff]
      %v4886 = vld [vmem:[#allocation3 + $0xa8] sm:$0xff]
      %v4887 = vld [vmem:[#allocation3 + $0xb0] sm:$0xff]
      %v4888 = vld [vmem:[#allocation3 + $0xb8] sm:$0xff]
      %v4889 = vld [vmem:[#allocation3 + $0xc0] sm:$0xff]
      %v4890 = vld [vmem:[#allocation3 + $0xc8] sm:$0xff]
      %v4891 = vld [vmem:[#allocation3 + $0xd0] sm:$0xff]
      %v4892 = vld [vmem:[#allocation3 + $0xd8] sm:$0xff]
      %v4893 = vld [vmem:[#allocation3 + $0xe0] sm:$0xff]
      %v4894 = vld [vmem:[#allocation3 + $0xe8] sm:$0xff]
      %v4895 = vld [vmem:[#allocation3 + $0xf0] sm:$0xff]
      %v4896 = vld [vmem:[#allocation3 + $0xf8] sm:$0xff]
      %s4897 = scalar_lea.vmem %s2, 16
      %v4898 = vld [vmem:[%s4897] sm:$0x3]
      %v4899 = vunpack.c.l.b16 %v4768
      %v4900 = vunpack.c.l.b16 %v4771
      %v4901 = vunpack.c.l.b16 %v4774
      %v4902 = vunpack.c.l.b16 %v4777
      %v4903 = vunpack.c.l.b16 %v4780
      %v4904 = vunpack.c.l.b16 %v4783
      %v4905 = vunpack.c.l.b16 %v4786
      %v4906 = vunpack.c.l.b16 %v4789
      %v4907 = vunpack.c.l.b16 %v4793
      %v4908 = vunpack.c.l.b16 %v4796
      %v4909 = vunpack.c.l.b16 %v4799
      %v4910 = vunpack.c.l.b16 %v4802
      %v4911 = vunpack.c.l.b16 %v4805
      %v4912 = vunpack.c.l.b16 %v4808
      %v4913 = vunpack.c.l.b16 %v4811
      %v4914 = vunpack.c.l.b16 %v4814
      %v4915 = vunpack.c.l.b16 %v4818
      %v4916 = vunpack.c.l.b16 %v4821
      %v4917 = vunpack.c.l.b16 %v4824
      %v4918 = vunpack.c.l.b16 %v4827
      %v4919 = vunpack.c.l.b16 %v4830
      %v4920 = vunpack.c.l.b16 %v4833
      %v4921 = vunpack.c.l.b16 %v4836
      %v4922 = vunpack.c.l.b16 %v4839
      %v4923 = vunpack.c.l.b16 %v4843
      %v4924 = vunpack.c.l.b16 %v4846
      %v4925 = vunpack.c.l.b16 %v4849
      %v4926 = vunpack.c.l.b16 %v4852
      %v4927 = vunpack.c.l.b16 %v4855
      %v4928 = vunpack.c.l.b16 %v4858
      %v4929 = vunpack.c.l.b16 %v4861
      %v4930 = vunpack.c.l.b16 %v4864
      %v4931 = vpack.c.b16 %v4900, %v4899
      %v4932 = vpack.c.b16 %v4902, %v4901
      %v4933 = vpack.c.b16 %v4904, %v4903
      %v4934 = vpack.c.b16 %v4906, %v4905
      %v4935 = vpack.c.b16 %v4908, %v4907
      %v4936 = vpack.c.b16 %v4910, %v4909
      %v4937 = vpack.c.b16 %v4912, %v4911
      %v4938 = vpack.c.b16 %v4914, %v4913
      %v4939 = vpack.c.b16 %v4916, %v4915
      %v4940 = vpack.c.b16 %v4918, %v4917
      %v4941 = vpack.c.b16 %v4920, %v4919
      %v4942 = vpack.c.b16 %v4922, %v4921
      %v4943 = vpack.c.b16 %v4924, %v4923
      %v4944 = vpack.c.b16 %v4926, %v4925
      %v4945 = vpack.c.b16 %v4928, %v4927
      %v4946 = vpack.c.b16 %v4930, %v4929
      %v4948 = vsel %vm614, %v4931, 0
      %v4951 = vsel %vm614, %v4932, 0
      %v4954 = vsel %vm614, %v4933, 0
      %v4957 = vsel %vm614, %v4934, 0
      %v4960 = vsel %vm614, %v4935, 0
      %v4963 = vsel %vm614, %v4936, 0
      %v4966 = vsel %vm614, %v4937, 0
      %v4969 = vsel %vm614, %v4938, 0
      %v4972 = vsel %vm614, %v4939, 0
      %v4975 = vsel %vm614, %v4940, 0
      %v4978 = vsel %vm614, %v4941, 0
      %v4981 = vsel %vm614, %v4942, 0
      %v4984 = vsel %vm614, %v4943, 0
      %v4987 = vsel %vm614, %v4944, 0
      %v4990 = vsel %vm614, %v4945, 0
      %v4993 = vsel %vm614, %v4946, 0
      %v4996 = vand.u32 %v4898, %v666
      %4998 = vmatprep.subr.bf16.mxu0 0
      %4999 = vmatpush1.bf16.msra.mxu0 %v4996
      %5000 = vmatprep.subr.bf16.mxu0 0
      %5001 = vmatpush1.bf16.msra.mxu0 0
      %5002 = vmatprep.subr.bf16.mxu0 0
      %5003 = vmatpush1.bf16.msra.mxu0 0
      %5004 = vmatprep.subr.bf16.mxu0 0
      %5005 = vmatpush1.bf16.msra.mxu0 0
      %5006 = vmatprep.subr.bf16.mxu0 0
      %5007 = vmatpush1.bf16.msra.mxu0 0
      %5008 = vmatprep.subr.bf16.mxu0 0
      %5009 = vmatpush1.bf16.msra.mxu0 0
      %5010 = vmatprep.subr.bf16.mxu0 0
      %5011 = vmatpush1.bf16.msra.mxu0 0
      %5012 = vmatprep.subr.bf16.mxu0 0
      %5013 = vmatpush1.bf16.msra.mxu0 0
      %5014 = vmatprep.subr.bf16.mxu0 0
      %5015 = vmatpush1.bf16.msra.mxu0 0
      %5016 = vmatprep.subr.bf16.mxu0 0
      %5017 = vmatpush1.bf16.msra.mxu0 0
      %5018 = vmatprep.subr.bf16.mxu0 0
      %5019 = vmatpush1.bf16.msra.mxu0 0
      %5020 = vmatprep.subr.bf16.mxu0 0
      %5021 = vmatpush1.bf16.msra.mxu0 0
      %5022 = vmatprep.subr.bf16.mxu0 0
      %5023 = vmatpush1.bf16.msra.mxu0 0
      %5024 = vmatprep.subr.bf16.mxu0 0
      %5025 = vmatpush1.bf16.msra.mxu0 0
      %5026 = vmatprep.subr.bf16.mxu0 0
      %5027 = vmatpush1.bf16.msra.mxu0 0
      %5028 = vmatprep.subr.bf16.mxu0 0
      %5029 = vmatpush1.bf16.msra.mxu0 0
      %5030 = vmatprep.mubr.bf16.mxu0 0
      %5031 = vmatmul.mubr.bf16.gmra.mrb[0].mxu0 %v4948
      %v5032 = vpop.f32.mrb[0].mxu0
      %v5033 = vadd.f32 0.0, %v5032
      %v5034 = vpop.f32.mrb[0].mxu0
      %v5035 = vpop.f32.mrb[0].mxu0
      %v5036 = vadd.f32 0.0, %v5035
      %v5037 = vpop.f32.mrb[0].mxu0
      %5038 = vmatprep.mubr.bf16.mxu0 0
      %5039 = vmatmul.mubr.bf16.gmra.mrb[0].mxu0 %v4951
      %v5040 = vpop.f32.mrb[0].mxu0
      %v5041 = vadd.f32 0.0, %v5040
      %v5042 = vpop.f32.mrb[0].mxu0
      %v5043 = vpop.f32.mrb[0].mxu0
      %v5044 = vadd.f32 0.0, %v5043
      %v5045 = vpop.f32.mrb[0].mxu0
      %5046 = vmatprep.mubr.bf16.mxu0 0
      %5047 = vmatmul.mubr.bf16.gmra.mrb[0].mxu0 %v4954
      %v5048 = vpop.f32.mrb[0].mxu0
      %v5049 = vadd.f32 0.0, %v5048
      %v5050 = vpop.f32.mrb[0].mxu0
      %v5051 = vpop.f32.mrb[0].mxu0
      %v5052 = vadd.f32 0.0, %v5051
      %v5053 = vpop.f32.mrb[0].mxu0
      %5054 = vmatprep.mubr.bf16.mxu0 0
      %5055 = vmatmul.mubr.bf16.gmra.mrb[0].mxu0 %v4957
      %v5056 = vpop.f32.mrb[0].mxu0
      %v5057 = vadd.f32 0.0, %v5056
      %v5058 = vpop.f32.mrb[0].mxu0
      %v5059 = vpop.f32.mrb[0].mxu0
      %v5060 = vadd.f32 0.0, %v5059
      %v5061 = vpop.f32.mrb[0].mxu0
      %5062 = vmatprep.mubr.bf16.mxu0 0
      %5063 = vmatmul.mubr.bf16.gmra.mrb[0].mxu0 %v4960
      %v5064 = vpop.f32.mrb[0].mxu0
      %v5065 = vadd.f32 0.0, %v5064
      %v5066 = vpop.f32.mrb[0].mxu0
      %v5067 = vpop.f32.mrb[0].mxu0
      %v5068 = vadd.f32 0.0, %v5067
      %v5069 = vpop.f32.mrb[0].mxu0
      %5070 = vmatprep.mubr.bf16.mxu0 0
      %5071 = vmatmul.mubr.bf16.gmra.mrb[0].mxu0 %v4963
      %v5072 = vpop.f32.mrb[0].mxu0
      %v5073 = vadd.f32 0.0, %v5072
      %v5074 = vpop.f32.mrb[0].mxu0
      %v5075 = vpop.f32.mrb[0].mxu0
      %v5076 = vadd.f32 0.0, %v5075
      %v5077 = vpop.f32.mrb[0].mxu0
      %5078 = vmatprep.mubr.bf16.mxu0 0
      %5079 = vmatmul.mubr.bf16.gmra.mrb[0].mxu0 %v4966
      %v5080 = vpop.f32.mrb[0].mxu0
      %v5081 = vadd.f32 0.0, %v5080
      %v5082 = vpop.f32.mrb[0].mxu0
      %v5083 = vpop.f32.mrb[0].mxu0
      %v5084 = vadd.f32 0.0, %v5083
      %v5085 = vpop.f32.mrb[0].mxu0
      %5086 = vmatprep.mubr.bf16.mxu0 0
      %5087 = vmatmul.mubr.bf16.gmra.mrb[0].mxu0 %v4969
      %v5088 = vpop.f32.mrb[0].mxu0
      %v5089 = vadd.f32 0.0, %v5088
      %v5090 = vpop.f32.mrb[0].mxu0
      %v5091 = vpop.f32.mrb[0].mxu0
      %v5092 = vadd.f32 0.0, %v5091
      %v5093 = vpop.f32.mrb[0].mxu0
      %5094 = vmatprep.mubr.bf16.mxu0 0
      %5095 = vmatmul.mubr.bf16.gmra.mrb[0].mxu0 %v4972
      %v5096 = vpop.f32.mrb[0].mxu0
      %v5097 = vadd.f32 0.0, %v5096
      %v5098 = vpop.f32.mrb[0].mxu0
      %v5099 = vpop.f32.mrb[0].mxu0
      %v5100 = vadd.f32 0.0, %v5099
      %v5101 = vpop.f32.mrb[0].mxu0
      %5102 = vmatprep.mubr.bf16.mxu0 0
      %5103 = vmatmul.mubr.bf16.gmra.mrb[0].mxu0 %v4975
      %v5104 = vpop.f32.mrb[0].mxu0
      %v5105 = vadd.f32 0.0, %v5104
      %v5106 = vpop.f32.mrb[0].mxu0
      %v5107 = vpop.f32.mrb[0].mxu0
      %v5108 = vadd.f32 0.0, %v5107
      %v5109 = vpop.f32.mrb[0].mxu0
      %5110 = vmatprep.mubr.bf16.mxu0 0
      %5111 = vmatmul.mubr.bf16.gmra.mrb[0].mxu0 %v4978
      %v5112 = vpop.f32.mrb[0].mxu0
      %v5113 = vadd.f32 0.0, %v5112
      %v5114 = vpop.f32.mrb[0].mxu0
      %v5115 = vpop.f32.mrb[0].mxu0
      %v5116 = vadd.f32 0.0, %v5115
      %v5117 = vpop.f32.mrb[0].mxu0
      %5118 = vmatprep.mubr.bf16.mxu0 0
      %5119 = vmatmul.mubr.bf16.gmra.mrb[0].mxu0 %v4981
      %v5120 = vpop.f32.mrb[0].mxu0
      %v5121 = vadd.f32 0.0, %v5120
      %v5122 = vpop.f32.mrb[0].mxu0
      %v5123 = vpop.f32.mrb[0].mxu0
      %v5124 = vadd.f32 0.0, %v5123
      %v5125 = vpop.f32.mrb[0].mxu0
      %5126 = vmatprep.mubr.bf16.mxu0 0
      %5127 = vmatmul.mubr.bf16.gmra.mrb[0].mxu0 %v4984
      %v5128 = vpop.f32.mrb[0].mxu0
      %v5129 = vadd.f32 0.0, %v5128
      %v5130 = vpop.f32.mrb[0].mxu0
      %v5131 = vpop.f32.mrb[0].mxu0
      %v5132 = vadd.f32 0.0, %v5131
      %v5133 = vpop.f32.mrb[0].mxu0
      %5134 = vmatprep.mubr.bf16.mxu0 0
      %5135 = vmatmul.mubr.bf16.gmra.mrb[0].mxu0 %v4987
      %v5136 = vpop.f32.mrb[0].mxu0
      %v5137 = vadd.f32 0.0, %v5136
      %v5138 = vpop.f32.mrb[0].mxu0
      %v5139 = vpop.f32.mrb[0].mxu0
      %v5140 = vadd.f32 0.0, %v5139
      %v5141 = vpop.f32.mrb[0].mxu0
      %5142 = vmatprep.mubr.bf16.mxu0 0
      %5143 = vmatmul.mubr.bf16.gmra.mrb[0].mxu0 %v4990
      %v5144 = vpop.f32.mrb[0].mxu0
      %v5145 = vadd.f32 0.0, %v5144
      %v5146 = vpop.f32.mrb[0].mxu0
      %v5147 = vpop.f32.mrb[0].mxu0
      %v5148 = vadd.f32 0.0, %v5147
      %v5149 = vpop.f32.mrb[0].mxu0
      %5150 = vmatprep.mubr.bf16.mxu0 0
      %5151 = vmatmul.mubr.bf16.gmra.mrb[0].mxu0 %v4993
      %v5152 = vpop.f32.mrb[0].mxu0
      %v5153 = vadd.f32 0.0, %v5152
      %v5154 = vpop.f32.mrb[0].mxu0
      %v5155 = vpop.f32.mrb[0].mxu0
      %v5156 = vadd.f32 0.0, %v5155
      %v5157 = vpop.f32.mrb[0].mxu0
      %5158 = vdwg.mxu0
      %v5159 = vadd.f32 %v4865, %v5033
      %v5160 = vadd.f32 %v4866, %v5036
      %v5161 = vadd.f32 %v4867, %v5041
      %v5162 = vadd.f32 %v4868, %v5044
      %v5163 = vadd.f32 %v4869, %v5049
      %v5164 = vadd.f32 %v4870, %v5052
      %v5165 = vadd.f32 %v4871, %v5057
      %v5166 = vadd.f32 %v4872, %v5060
      %v5167 = vadd.f32 %v4873, %v5065
      %v5168 = vadd.f32 %v4874, %v5068
      %v5169 = vadd.f32 %v4875, %v5073
      %v5170 = vadd.f32 %v4876, %v5076
      %v5171 = vadd.f32 %v4877, %v5081
      %v5172 = vadd.f32 %v4878, %v5084
      %v5173 = vadd.f32 %v4879, %v5089
      %v5174 = vadd.f32 %v4880, %v5092
      %v5175 = vadd.f32 %v4881, %v5097
      %v5176 = vadd.f32 %v4882, %v5100
      %v5177 = vadd.f32 %v4883, %v5105
      %v5178 = vadd.f32 %v4884, %v5108
      %v5179 = vadd.f32 %v4885, %v5113
      %v5180 = vadd.f32 %v4886, %v5116
      %v5181 = vadd.f32 %v4887, %v5121
      %v5182 = vadd.f32 %v4888, %v5124
      %v5183 = vadd.f32 %v4889, %v5129
      %v5184 = vadd.f32 %v4890, %v5132
      %v5185 = vadd.f32 %v4891, %v5137
      %v5186 = vadd.f32 %v4892, %v5140
      %v5187 = vadd.f32 %v4893, %v5145
      %v5188 = vadd.f32 %v4894, %v5148
      %v5189 = vadd.f32 %v4895, %v5153
      %v5190 = vadd.f32 %v4896, %v5156
      %5191 = vst.msk [vmem:[#allocation3] sm:$0xff] %vm432, %v5159
      %5192 = vst.msk [vmem:[#allocation3 + $0x8] sm:$0xff] %vm432, %v5160
      %5193 = vst.msk [vmem:[#allocation3 + $0x10] sm:$0xff] %vm432, %v5161
      %5194 = vst.msk [vmem:[#allocation3 + $0x18] sm:$0xff] %vm432, %v5162
      %5195 = vst.msk [vmem:[#allocation3 + $0x20] sm:$0xff] %vm432, %v5163
      %5196 = vst.msk [vmem:[#allocation3 + $0x28] sm:$0xff] %vm432, %v5164
      %5197 = vst.msk [vmem:[#allocation3 + $0x30] sm:$0xff] %vm432, %v5165
      %5198 = vst.msk [vmem:[#allocation3 + $0x38] sm:$0xff] %vm432, %v5166
      %5199 = vst.msk [vmem:[#allocation3 + $0x40] sm:$0xff] %vm432, %v5167
      %5200 = vst.msk [vmem:[#allocation3 + $0x48] sm:$0xff] %vm432, %v5168
      %5201 = vst.msk [vmem:[#allocation3 + $0x50] sm:$0xff] %vm432, %v5169
      %5202 = vst.msk [vmem:[#allocation3 + $0x58] sm:$0xff] %vm432, %v5170
      %5203 = vst.msk [vmem:[#allocation3 + $0x60] sm:$0xff] %vm432, %v5171
      %5204 = vst.msk [vmem:[#allocation3 + $0x68] sm:$0xff] %vm432, %v5172
      %5205 = vst.msk [vmem:[#allocation3 + $0x70] sm:$0xff] %vm432, %v5173
      %5206 = vst.msk [vmem:[#allocation3 + $0x78] sm:$0xff] %vm432, %v5174
      %5207 = vst.msk [vmem:[#allocation3 + $0x80] sm:$0xff] %vm432, %v5175
      %5208 = vst.msk [vmem:[#allocation3 + $0x88] sm:$0xff] %vm432, %v5176
      %5209 = vst.msk [vmem:[#allocation3 + $0x90] sm:$0xff] %vm432, %v5177
      %5210 = vst.msk [vmem:[#allocation3 + $0x98] sm:$0xff] %vm432, %v5178
      %5211 = vst.msk [vmem:[#allocation3 + $0xa0] sm:$0xff] %vm432, %v5179
      %5212 = vst.msk [vmem:[#allocation3 + $0xa8] sm:$0xff] %vm432, %v5180
      %5213 = vst.msk [vmem:[#allocation3 + $0xb0] sm:$0xff] %vm432, %v5181
      %5214 = vst.msk [vmem:[#allocation3 + $0xb8] sm:$0xff] %vm432, %v5182
      %5215 = vst.msk [vmem:[#allocation3 + $0xc0] sm:$0xff] %vm432, %v5183
      %5216 = vst.msk [vmem:[#allocation3 + $0xc8] sm:$0xff] %vm432, %v5184
      %5217 = vst.msk [vmem:[#allocation3 + $0xd0] sm:$0xff] %vm432, %v5185
      %5218 = vst.msk [vmem:[#allocation3 + $0xd8] sm:$0xff] %vm432, %v5186
      %5219 = vst.msk [vmem:[#allocation3 + $0xe0] sm:$0xff] %vm432, %v5187
      %5220 = vst.msk [vmem:[#allocation3 + $0xe8] sm:$0xff] %vm432, %v5188
      %5221 = vst.msk [vmem:[#allocation3 + $0xf0] sm:$0xff] %vm432, %v5189
      %5222 = vst.msk [vmem:[#allocation3 + $0xf8] sm:$0xff] %vm432, %v5190
      %v5223 = vld [vmem:[#allocation3] sm:$0xff]
      %v5224 = vld [vmem:[#allocation3 + $0x8] sm:$0xff]
      %v5225 = vld [vmem:[#allocation3 + $0x10] sm:$0xff]
      %v5226 = vld [vmem:[#allocation3 + $0x18] sm:$0xff]
      %v5227 = vld [vmem:[#allocation3 + $0x20] sm:$0xff]
      %v5228 = vld [vmem:[#allocation3 + $0x28] sm:$0xff]
      %v5229 = vld [vmem:[#allocation3 + $0x30] sm:$0xff]
      %v5230 = vld [vmem:[#allocation3 + $0x38] sm:$0xff]
      %v5231 = vld [vmem:[#allocation3 + $0x40] sm:$0xff]
      %v5232 = vld [vmem:[#allocation3 + $0x48] sm:$0xff]
      %v5233 = vld [vmem:[#allocation3 + $0x50] sm:$0xff]
      %v5234 = vld [vmem:[#allocation3 + $0x58] sm:$0xff]
      %v5235 = vld [vmem:[#allocation3 + $0x60] sm:$0xff]
      %v5236 = vld [vmem:[#allocation3 + $0x68] sm:$0xff]
      %v5237 = vld [vmem:[#allocation3 + $0x70] sm:$0xff]
      %v5238 = vld [vmem:[#allocation3 + $0x78] sm:$0xff]
      %v5239 = vld [vmem:[#allocation3 + $0x80] sm:$0xff]
      %v5240 = vld [vmem:[#allocation3 + $0x88] sm:$0xff]
      %v5241 = vld [vmem:[#allocation3 + $0x90] sm:$0xff]
      %v5242 = vld [vmem:[#allocation3 + $0x98] sm:$0xff]
      %v5243 = vld [vmem:[#allocation3 + $0xa0] sm:$0xff]
      %v5244 = vld [vmem:[#allocation3 + $0xa8] sm:$0xff]
      %v5245 = vld [vmem:[#allocation3 + $0xb0] sm:$0xff]
      %v5246 = vld [vmem:[#allocation3 + $0xb8] sm:$0xff]
      %v5247 = vld [vmem:[#allocation3 + $0xc0] sm:$0xff]
      %v5248 = vld [vmem:[#allocation3 + $0xc8] sm:$0xff]
      %v5249 = vld [vmem:[#allocation3 + $0xd0] sm:$0xff]
      %v5250 = vld [vmem:[#allocation3 + $0xd8] sm:$0xff]
      %v5251 = vld [vmem:[#allocation3 + $0xe0] sm:$0xff]
      %v5252 = vld [vmem:[#allocation3 + $0xe8] sm:$0xff]
      %v5253 = vld [vmem:[#allocation3 + $0xf0] sm:$0xff]
      %v5254 = vld [vmem:[#allocation3 + $0xf8] sm:$0xff]
      %v5255 = vld [vmem:[%s3] sm:$0x1]
      %v5257 = vlaneseq
      %v5258 = vshrl.u32 %v5257, 7
      %v5259 = vsub.s32 0, %v5258
      %v5260 = vrot.slane %v5255, %v5259
      %v5262 = vadd.f32 %v5223, %v5260
      %v5263 = vadd.f32 %v5224, %v5260
      %v5264 = vadd.f32 %v5225, %v5260
      %v5265 = vadd.f32 %v5226, %v5260
      %v5266 = vadd.f32 %v5227, %v5260
      %v5267 = vadd.f32 %v5228, %v5260
      %v5268 = vadd.f32 %v5229, %v5260
      %v5269 = vadd.f32 %v5230, %v5260
      %v5270 = vadd.f32 %v5231, %v5260
      %v5271 = vadd.f32 %v5232, %v5260
      %v5272 = vadd.f32 %v5233, %v5260
      %v5273 = vadd.f32 %v5234, %v5260
      %v5274 = vadd.f32 %v5235, %v5260
      %v5275 = vadd.f32 %v5236, %v5260
      %v5276 = vadd.f32 %v5237, %v5260
      %v5277 = vadd.f32 %v5238, %v5260
      %v5278 = vadd.f32 %v5239, %v5260
      %v5279 = vadd.f32 %v5240, %v5260
      %v5280 = vadd.f32 %v5241, %v5260
      %v5281 = vadd.f32 %v5242, %v5260
      %v5282 = vadd.f32 %v5243, %v5260
      %v5283 = vadd.f32 %v5244, %v5260
      %v5284 = vadd.f32 %v5245, %v5260
      %v5285 = vadd.f32 %v5246, %v5260
      %v5286 = vadd.f32 %v5247, %v5260
      %v5287 = vadd.f32 %v5248, %v5260
      %v5288 = vadd.f32 %v5249, %v5260
      %v5289 = vadd.f32 %v5250, %v5260
      %v5290 = vadd.f32 %v5251, %v5260
      %v5291 = vadd.f32 %v5252, %v5260
      %v5292 = vadd.f32 %v5253, %v5260
      %v5293 = vadd.f32 %v5254, %v5260
      %v5294 = vmax.f32 %v5262, 0.0
      %v5295 = vmax.f32 %v5263, 0.0
      %v5296 = vmax.f32 %v5264, 0.0
      %v5297 = vmax.f32 %v5265, 0.0
      %v5298 = vmax.f32 %v5266, 0.0
      %v5299 = vmax.f32 %v5267, 0.0
      %v5300 = vmax.f32 %v5268, 0.0
      %v5301 = vmax.f32 %v5269, 0.0
      %v5302 = vmax.f32 %v5270, 0.0
      %v5303 = vmax.f32 %v5271, 0.0
      %v5304 = vmax.f32 %v5272, 0.0
      %v5305 = vmax.f32 %v5273, 0.0
      %v5306 = vmax.f32 %v5274, 0.0
      %v5307 = vmax.f32 %v5275, 0.0
      %v5308 = vmax.f32 %v5276, 0.0
      %v5309 = vmax.f32 %v5277, 0.0
      %v5310 = vmax.f32 %v5278, 0.0
      %v5311 = vmax.f32 %v5279, 0.0
      %v5312 = vmax.f32 %v5280, 0.0
      %v5313 = vmax.f32 %v5281, 0.0
      %v5314 = vmax.f32 %v5282, 0.0
      %v5315 = vmax.f32 %v5283, 0.0
      %v5316 = vmax.f32 %v5284, 0.0
      %v5317 = vmax.f32 %v5285, 0.0
      %v5318 = vmax.f32 %v5286, 0.0
      %v5319 = vmax.f32 %v5287, 0.0
      %v5320 = vmax.f32 %v5288, 0.0
      %v5321 = vmax.f32 %v5289, 0.0
      %v5322 = vmax.f32 %v5290, 0.0
      %v5323 = vmax.f32 %v5291, 0.0
      %v5324 = vmax.f32 %v5292, 0.0
      %v5325 = vmax.f32 %v5293, 0.0
      %v5326 = vpack.c.bf16 %v5295, %v5294
      %v5327 = vpack.c.bf16 %v5297, %v5296
      %v5328 = vpack.c.bf16 %v5299, %v5298
      %v5329 = vpack.c.bf16 %v5301, %v5300
      %v5330 = vpack.c.bf16 %v5303, %v5302
      %v5331 = vpack.c.bf16 %v5305, %v5304
      %v5332 = vpack.c.bf16 %v5307, %v5306
      %v5333 = vpack.c.bf16 %v5309, %v5308
      %v5334 = vpack.c.bf16 %v5311, %v5310
      %v5335 = vpack.c.bf16 %v5313, %v5312
      %v5336 = vpack.c.bf16 %v5315, %v5314
      %v5337 = vpack.c.bf16 %v5317, %v5316
      %v5338 = vpack.c.bf16 %v5319, %v5318
      %v5339 = vpack.c.bf16 %v5321, %v5320
      %v5340 = vpack.c.bf16 %v5323, %v5322
      %v5341 = vpack.c.bf16 %v5325, %v5324
      %v5358 = vunpack.c.l.b16 %v5326
      %v5359 = vunpack.c.h.b16 %v5326
      %v5360 = vunpack.c.l.b16 %v5327
      %v5361 = vunpack.c.h.b16 %v5327
      %v5362 = vunpack.c.l.b16 %v5328
      %v5363 = vunpack.c.h.b16 %v5328
      %v5364 = vunpack.c.l.b16 %v5329
      %v5365 = vunpack.c.h.b16 %v5329
      %v5366 = vunpack.c.l.b16 %v5330
      %v5367 = vunpack.c.h.b16 %v5330
      %v5368 = vunpack.c.l.b16 %v5331
      %v5369 = vunpack.c.h.b16 %v5331
      %v5370 = vunpack.c.l.b16 %v5332
      %v5371 = vunpack.c.h.b16 %v5332
      %v5372 = vunpack.c.l.b16 %v5333
      %v5373 = vunpack.c.h.b16 %v5333
      %v5374 = vunpack.c.l.b16 %v5334
      %v5375 = vunpack.c.h.b16 %v5334
      %v5376 = vunpack.c.l.b16 %v5335
      %v5377 = vunpack.c.h.b16 %v5335
      %v5378 = vunpack.c.l.b16 %v5336
      %v5379 = vunpack.c.h.b16 %v5336
      %v5380 = vunpack.c.l.b16 %v5337
      %v5381 = vunpack.c.h.b16 %v5337
      %v5382 = vunpack.c.l.b16 %v5338
      %v5383 = vunpack.c.h.b16 %v5338
      %v5384 = vunpack.c.l.b16 %v5339
      %v5385 = vunpack.c.h.b16 %v5339
      %v5386 = vunpack.c.l.b16 %v5340
      %v5387 = vunpack.c.h.b16 %v5340
      %v5388 = vunpack.c.l.b16 %v5341
      %v5389 = vunpack.c.h.b16 %v5341
      %v5390 = vpack.c.b16 %v5358, %v5358
      %v5391 = vpack.c.b16 %v5359, %v5359
      %v5392 = vpack.c.b16 %v5360, %v5360
      %v5393 = vpack.c.b16 %v5361, %v5361
      %v5394 = vpack.c.b16 %v5362, %v5362
      %v5395 = vpack.c.b16 %v5363, %v5363
      %v5396 = vpack.c.b16 %v5364, %v5364
      %v5397 = vpack.c.b16 %v5365, %v5365
      %v5398 = vpack.c.b16 %v5366, %v5366
      %v5399 = vpack.c.b16 %v5367, %v5367
      %v5400 = vpack.c.b16 %v5368, %v5368
      %v5401 = vpack.c.b16 %v5369, %v5369
      %v5402 = vpack.c.b16 %v5370, %v5370
      %v5403 = vpack.c.b16 %v5371, %v5371
      %v5404 = vpack.c.b16 %v5372, %v5372
      %v5405 = vpack.c.b16 %v5373, %v5373
      %v5406 = vpack.c.b16 %v5374, %v5374
      %v5407 = vpack.c.b16 %v5375, %v5375
      %v5408 = vpack.c.b16 %v5376, %v5376
      %v5409 = vpack.c.b16 %v5377, %v5377
      %v5410 = vpack.c.b16 %v5378, %v5378
      %v5411 = vpack.c.b16 %v5379, %v5379
      %v5412 = vpack.c.b16 %v5380, %v5380
      %v5413 = vpack.c.b16 %v5381, %v5381
      %v5414 = vpack.c.b16 %v5382, %v5382
      %v5415 = vpack.c.b16 %v5383, %v5383
      %v5416 = vpack.c.b16 %v5384, %v5384
      %v5417 = vpack.c.b16 %v5385, %v5385
      %v5418 = vpack.c.b16 %v5386, %v5386
      %v5419 = vpack.c.b16 %v5387, %v5387
      %v5420 = vpack.c.b16 %v5388, %v5388
      %v5421 = vpack.c.b16 %v5389, %v5389
      %vm5454 = vcmask 125952
      %5455 = vst.msk [vmem:[%s318] sm:$0xf] %vm5454, %v5390
      %5456 = vst.msk [vmem:[%s318 + $0x4] sm:$0xf] %vm5454, %v5391
      %5457 = vst.msk [vmem:[%s318 + $0x8] sm:$0xf] %vm5454, %v5392
      %5458 = vst.msk [vmem:[%s318 + $0xc] sm:$0xf] %vm5454, %v5393
      %5459 = vst.msk [vmem:[%s318 + $0x10] sm:$0xf] %vm5454, %v5394
      %5460 = vst.msk [vmem:[%s318 + $0x14] sm:$0xf] %vm5454, %v5395
      %5461 = vst.msk [vmem:[%s318 + $0x18] sm:$0xf] %vm5454, %v5396
      %5462 = vst.msk [vmem:[%s318 + $0x1c] sm:$0xf] %vm5454, %v5397
      %5463 = vst.msk [vmem:[%s318 + $0x20] sm:$0xf] %vm5454, %v5398
      %5464 = vst.msk [vmem:[%s318 + $0x24] sm:$0xf] %vm5454, %v5399
      %5465 = vst.msk [vmem:[%s318 + $0x28] sm:$0xf] %vm5454, %v5400
      %5466 = vst.msk [vmem:[%s318 + $0x2c] sm:$0xf] %vm5454, %v5401
      %5467 = vst.msk [vmem:[%s318 + $0x30] sm:$0xf] %vm5454, %v5402
      %5468 = vst.msk [vmem:[%s318 + $0x34] sm:$0xf] %vm5454, %v5403
      %5469 = vst.msk [vmem:[%s318 + $0x38] sm:$0xf] %vm5454, %v5404
      %5470 = vst.msk [vmem:[%s318 + $0x3c] sm:$0xf] %vm5454, %v5405
      %5471 = vst.msk [vmem:[%s318 + $0x40] sm:$0xf] %vm5454, %v5406
      %5472 = vst.msk [vmem:[%s318 + $0x44] sm:$0xf] %vm5454, %v5407
      %5473 = vst.msk [vmem:[%s318 + $0x48] sm:$0xf] %vm5454, %v5408
      %5474 = vst.msk [vmem:[%s318 + $0x4c] sm:$0xf] %vm5454, %v5409
      %5475 = vst.msk [vmem:[%s318 + $0x50] sm:$0xf] %vm5454, %v5410
      %5476 = vst.msk [vmem:[%s318 + $0x54] sm:$0xf] %vm5454, %v5411
      %5477 = vst.msk [vmem:[%s318 + $0x58] sm:$0xf] %vm5454, %v5412
      %5478 = vst.msk [vmem:[%s318 + $0x5c] sm:$0xf] %vm5454, %v5413
      %5479 = vst.msk [vmem:[%s318 + $0x60] sm:$0xf] %vm5454, %v5414
      %5480 = vst.msk [vmem:[%s318 + $0x64] sm:$0xf] %vm5454, %v5415
      %5481 = vst.msk [vmem:[%s318 + $0x68] sm:$0xf] %vm5454, %v5416
      %5482 = vst.msk [vmem:[%s318 + $0x6c] sm:$0xf] %vm5454, %v5417
      %5483 = vst.msk [vmem:[%s318 + $0x70] sm:$0xf] %vm5454, %v5418
      %5484 = vst.msk [vmem:[%s318 + $0x74] sm:$0xf] %vm5454, %v5419
      %5485 = vst.msk [vmem:[%s318 + $0x78] sm:$0xf] %vm5454, %v5420
      %5486 = vst.msk [vmem:[%s318 + $0x7c] sm:$0xf] %vm5454, %v5421
      %s5487 = smul.u32 4, %s20
      %p5488 = scmp.lt.s32.totalorder %s19, 1
      %s5489 = scalar_select %p5488, %s19, 1
      %p5490 = scmp.lt.s32.totalorder %s5487, 63
      %s5491 = scalar_select %p5490, %s5487, 63
      %s5492 = smul.addr %s5491, 8
      %s5493 = smul.addr %s5489, 512
      %s5494 = sadd.s32 %s5492, %s5493
      %s5495 = smul.addr %s5494, 4
      %s5496 = scalar_lea.vmem %s4, %s5495
      // Predicated region
      $region37: #{tpu_custom_call.1} parent=35 // pred_check
        %p5497 = pneg %p149
      $region38: #{tpu_custom_call.1} parent=35 // pred_check_branch
        %5499 = sbr.rel (%p5497) target = $region40
      $region39: #{tpu_custom_call.1} parent=35 // pred_region
        %s5500 = smul.u32 4, %s20
      $region40: #{tpu_custom_call.1} parent=35 // pred_fallthru
        _
    $region36: #{tpu_custom_call.1} parent=5 // pred_fallthru
      _
    %p5501 = scmp.le.s32.totalorder 2, %s10
    // Predicated region
    $region41: #{tpu_custom_call.1} parent=5 // pred_check
      %p5502 = pneg %p5501
    $region42: #{tpu_custom_call.1} parent=5 // pred_check_branch
      %5504 = sbr.rel (%p5502) target = $region44
    $region43: #{tpu_custom_call.1} parent=5 // pred_region
      %s5505 = ssub.s32 %s10, 2
      // Predicated region
      $region45: #{tpu_custom_call.1} parent=43 // pred_check
        %p5506 = pneg %p155
      $region46: #{tpu_custom_call.1} parent=43 // pred_check_branch
        %5508 = sbr.rel (%p5506) target = $region48
      $region47: #{tpu_custom_call.1} parent=43 // pred_region
        %s5509 = smul.u32 4, %s22
        %p5510 = scmp.lt.s32.totalorder %s21, 1
        %s5511 = scalar_select %p5510, %s21, 1
        %p5512 = scmp.lt.s32.totalorder %s5509, 63
        %s5513 = scalar_select %p5512, %s5509, 63
        %s5514 = smul.addr %s5513, 8
        %s5515 = smul.addr %s5511, 512
        %s5516 = sadd.s32 %s5514, %s5515
        %s5517 = smul.addr %s5516, 4
        %s5518 = scalar_lea.vmem %s4, %s5517
      $region48: #{tpu_custom_call.1} parent=43 // pred_fallthru
        _
    $region44: #{tpu_custom_call.1} parent=5 // pred_fallthru
      _
  $region6: #{tpu_custom_call.1} parent=0 // loop_footer
    %s14 = sadd.s32 1, %s10
  $region7: #{tpu_custom_call.1} parent=0 // loop_footer_branch
    %9 = sbr.rel target = $region3
  $region8: #{tpu_custom_call.1} parent=0 // loop_exit
    _

</llo_original>
